<compile_context>
chip_gen: v7x
topology: tpu7x:2x2x1
jax: 0.10.0
libtpu: 0.0.40
codegen_flags: <defaults>
</compile_context>

<pallas_src>
import functools
import random

import jax
import jax.numpy as jnp
from jax import lax
from jax.experimental import pallas as pl
from jax.experimental.pallas import tpu as pltpu

_NEG = -1e30  # fc-bias pad value: keeps padded logits out of the argmax


# ----------------------------------------------------------------------------
# Pallas kernel: fused encoders + fused (single-matmul) autoregressive decoders
# ----------------------------------------------------------------------------
def _seq2seq_cat_kernel(
    mm_dtype,
    # SMEM scalars
    tf_ref,            # (Ts,) int32 shared teacher-forcing flag per decode step
    # VMEM per-batch-block inputs
    x_all_ref,         # (Tp, BB, Dc)   [log | trace] encoder features
    act_idx_ref,       # (Ts, BB, 1)    teacher activity class ids (int32)
    time_sfx_ref,      # (Ts, BB, 1)    teacher time values
    x_act0_ref,        # (BB, NA_PAD)   first act-decoder input
    x_time0_ref,       # (BB, 1)        first time-decoder input
    # fused encoder LSTM (both encoders, gate-interleaved block-diagonal)
    enc_wih, enc_whh, enc_b,
    # fused decoder LSTM ([x_act | x_time | h_joint] -> 8*Hd gates) + fc heads
    dec_w, dec_b, ad_fcw, ad_fcb, td_fcw, td_fcb,
    # outputs
    act_out_ref,       # (Ts, BB, NA_PAD)
    time_out_ref,      # (BB, TLANES)   column t = time prediction of step t
    # scratch
    gih_ref,           # (Tp*BB, 8*H)   hoisted encoder input projections
    hjoint_ref,        # (Ts*BB, 2*Hd)  per-step joint hidden (fed to fc GEMM)
):
    Ts, BB, NA_PAD = act_out_ref.shape
    TLANES = time_out_ref.shape[-1]
    Tp, _, Dc = x_all_ref.shape
    H2 = enc_whh.shape[0]          # fused encoder state width (= 2*enc_hidden = Hd)
    Hd2 = ad_fcw.shape[0]          # joint decoder state width (= 2*Hd)
    G = dec_b.shape[1]             # fused decoder gate width (= 4*Hd2)

    def mdot(a, w):                # activations cast per call, weights pre-cast
        return jnp.dot(a.astype(mm_dtype), w, preferred_element_type=jnp.float32)

    # ---- weight casts + bias broadcasts hoisted out of the serial loops ------
    enc_wih_v = enc_wih[...].astype(mm_dtype)
    enc_whh_v = enc_whh[...].astype(mm_dtype)
    dec_w_v = dec_w[...].astype(mm_dtype)
    ad_fcw_v = ad_fcw[...].astype(mm_dtype)

    enc_b_v = enc_b[...]
    dec_b_b = jnp.broadcast_to(dec_b[...], (BB, G))
    ad_fcb_b = jnp.broadcast_to(ad_fcb[...], (BB, NA_PAD))
    td_fcw_b = jnp.broadcast_to(td_fcw[...], (BB, Hd2))
    td_fcb_b = jnp.broadcast_to(td_fcb[...], (BB, 1))

    # ----------------- encoders: hoisted x @ W_ih, fused recurrence ----------
    x2d = x_all_ref[...].reshape(Tp * BB, Dc)
    gih_ref[...] = mdot(x2d, enc_wih_v) + enc_b_v       # one big GEMM, bias once

    z = jnp.zeros((BB, H2), jnp.float32)

    def enc_body(t, carry):
        h, c = carry
        row = pl.multiple_of(t * BB, BB)
        gates = gih_ref[pl.ds(row, BB), :] + mdot(h, enc_whh_v)   # single matmul
        i = jax.nn.sigmoid(gates[:, 0 * H2:1 * H2])
        f = jax.nn.sigmoid(gates[:, 1 * H2:2 * H2])
        g = jnp.tanh(gates[:, 2 * H2:3 * H2])
        o = jax.nn.sigmoid(gates[:, 3 * H2:4 * H2])
        c2 = f * c + i * g
        return o * jnp.tanh(c2), c2

    hidden, cell = lax.fori_loop(0, Tp, enc_body, (z, z), unroll=min(Tp, 8))
    # hidden/cell are already [h_log | h_trace] -> no concatenate needed.

    # ----------------- decoders: fused single-matmul autoregressive loop -----
    col = lax.broadcasted_iota(jnp.int32, (BB, NA_PAD), 1)
    tlane = lax.broadcasted_iota(jnp.int32, (BB, TLANES), 1)
    one = jnp.float32(1.0)
    zero = jnp.float32(0.0)

    h0 = jnp.concatenate([hidden, hidden], axis=-1)     # (BB, 2Hd) [h_act|h_time]
    c0 = jnp.concatenate([cell, cell], axis=-1)

    def dec_body(t, carry):
        xa, xt, h, c, tacc = carry

        # one fused matmul per step: [x_act | x_time | h_joint] @ W_fused
        xin = jnp.concatenate([xa, xt, h], axis=-1)     # (BB, NA_PAD+1+2Hd)
        gates = mdot(xin, dec_w_v) + dec_b_b            # (BB, 8Hd) interleaved
        i = jax.nn.sigmoid(gates[:, 0 * Hd2:1 * Hd2])
        f = jax.nn.sigmoid(gates[:, 1 * Hd2:2 * Hd2])
        g = jnp.tanh(gates[:, 2 * Hd2:3 * Hd2])
        o = jax.nn.sigmoid(gates[:, 3 * Hd2:4 * Hd2])
        c2 = f * c + i * g
        h2 = o * jnp.tanh(c2)                           # (BB, 2Hd) [h_act|h_time]

        # stash joint hidden; the act fc head runs as one GEMM after the loop
        row = pl.multiple_of(t * BB, BB)
        hjoint_ref[pl.ds(row, BB), :] = h2

        # time head: cheap VPU/XLU reduction (act lanes of td_fcw are zero)
        pred_t = jnp.sum(h2 * td_fcw_b, axis=-1, keepdims=True) + td_fcb_b
        tacc2 = jnp.where(tlane == t, pred_t, tacc)     # lane-dense accumulation

        # next inputs: single shared teacher-forcing draw per step
        tf = tf_ref[t]

        def _teacher():
            idx = act_idx_ref[t]                        # (BB, 1) int32
            return jnp.where((col == idx) & (col != 0), one, zero)

        def _best_guess():
            # fc only computed when actually needed (teacher forcing off)
            pred_a = mdot(h2, ad_fcw_v) + ad_fcb_b      # pads are -1e30
            mx = jnp.max(pred_a, axis=-1, keepdims=True)
            fi = jnp.min(jnp.where(pred_a == mx, col, NA_PAD),
                         axis=-1, keepdims=True)
            return jnp.where((col == fi) & (col != 0), one, zero)

        xa2 = lax.cond(tf == 1, _teacher, _best_guess)
        xt2 = jnp.where(tf == 1, time_sfx_ref[t], pred_t)
        return xa2, xt2, h2, c2, tacc2

    init = (x_act0_ref[...], x_time0_ref[...], h0, c0,
            jnp.zeros((BB, TLANES), jnp.float32))
    final = lax.fori_loop(0, Ts, dec_body, init, unroll=min(Ts, 8))
    time_out_ref[...] = final[4]                        # single lane-dense store

    # ----------------- activity fc head: one large post-loop GEMM ------------
    act_flat = mdot(hjoint_ref[...], ad_fcw_v) \
        + jnp.broadcast_to(ad_fcb[...], (Ts * BB, NA_PAD))
    act_out_ref[...] = act_flat.reshape(Ts, BB, NA_PAD)


# ----------------------------------------------------------------------------
# Host-side weight packing (block-diagonal, gate-interleaved layout)
# ----------------------------------------------------------------------------
def _gate_cols(w, h, slot):
    """(r, 4h) gate-ordered [i|f|g|o] -> (r, 8h) gate-interleaved, occupying
    slot 0 (first member) or slot 1 (second member) of each gate pair."""
    r = w.shape[0]
    out = jnp.zeros((r, 8 * h), jnp.float32)
    for g in range(4):
        out = out.at[:, (2 * g + slot) * h:(2 * g + slot + 1) * h].set(
            w[:, g * h:(g + 1) * h])
    return out


def _tile_bytes(shape, itemsize=4):
    s = list(shape)
    if len(s) == 1:
        s = [1] + s
    s[-2] = -(-s[-2] // 8) * 8
    s[-1] = -(-s[-1] // 128) * 128
    n = 1
    for d in s:
        n *= d
    return n * itemsize


# ----------------------------------------------------------------------------
# Wrapper: padding / packing / teacher-forcing draws / pallas_call
# ----------------------------------------------------------------------------
def seq2seq_cat_forward(params, log_prefix, trace_prefix, act_suffix,
                        time_suffix, teacher_force_ratio, seed=0,
                        matmul_dtype=jnp.bfloat16, batch_block=8):
    num_act = params["num_act"]
    B, Tp, _ = log_prefix.shape
    Ts = act_suffix.shape[1]
    H = params["le_whh"].shape[0]
    Hd = 2 * H                                   # decoder hidden (cat of encoders)

    BB = max(8, (int(batch_block) // 8) * 8)     # sublane-aligned batch block
    Bp = -(-B // BB) * BB                        # padded batch (multiple of BB)
    NA_PAD = 128 * ((num_act + 127) // 128)      # lane-aligned act feature dim
    TLANES = 128 * ((Ts + 127) // 128)           # lane-dense time-output slab

    # ---- fused / padded weights (host-side packing, done once) --------------
    enc_wih = jnp.concatenate([_gate_cols(params["le_wih"], H, 0),
                               _gate_cols(params["te_wih"], H, 1)], axis=0)
    enc_whh = jnp.concatenate([_gate_cols(params["le_whh"], H, 0),
                               _gate_cols(params["te_whh"], H, 1)], axis=0)
    enc_b = _gate_cols(params["le_b"], H, 0) + _gate_cols(params["te_b"], H, 1)

    ad_wih_p = jnp.pad(params["ad_wih"], ((0, NA_PAD - num_act), (0, 0)))
    dec_w = jnp.concatenate([
        _gate_cols(ad_wih_p, Hd, 0),             # rows [0, NA_PAD): act x
        _gate_cols(params["td_wih"], Hd, 1),     # row NA_PAD:        time x
        _gate_cols(params["ad_whh"], Hd, 0),     # rows: act h
        _gate_cols(params["td_whh"], Hd, 1),     # rows: time h
    ], axis=0)                                   # (NA_PAD + 1 + 2Hd, 8Hd)
    dec_b = _gate_cols(params["ad_b"], Hd, 0) + _gate_cols(params["td_b"], Hd, 1)

    ad_fcw_full = jnp.zeros((2 * Hd, NA_PAD), jnp.float32)
    ad_fcw_full = ad_fcw_full.at[:Hd, :num_act].set(params["ad_fcw"])
    ad_fcb_p = jnp.pad(params["ad_fcb"], ((0, 0), (0, NA_PAD - num_act)),
                       constant_values=_NEG)
    td_fcw_full = jnp.zeros((1, 2 * Hd), jnp.float32)
    td_fcw_full = td_fcw_full.at[:, Hd:].set(jnp.transpose(params["td_fcw"]))
    td_fcb = params["td_fcb"]

    # ---- padded, time-major inputs ------------------------------------------
    Dc = log_prefix.shape[-1] + trace_prefix.shape[-1]
    x_comb = jnp.concatenate([log_prefix.astype(jnp.float32),
                              trace_prefix.astype(jnp.float32)], axis=-1)
    x_comb = jnp.pad(x_comb, ((0, Bp - B), (0, 0), (0, 0)))
    x_all = jnp.transpose(x_comb, (1, 0, 2))                         # (Tp,Bp,Dc)

    act_idx = jnp.pad(act_suffix.astype(jnp.int32), ((0, Bp - B), (0, 0)))
    act_idx = jnp.transpose(act_idx, (1, 0))[..., None]              # (Ts,Bp,1)

    time_sfx = jnp.pad(time_suffix.astype(jnp.float32), ((0, Bp - B), (0, 0)))
    time_sfx = jnp.transpose(time_sfx, (1, 0))[..., None]            # (Ts,Bp,1)

    trace_last = trace_prefix[:, -1, :].astype(jnp.float32)
    x_act0 = jnp.zeros((Bp, NA_PAD), jnp.float32).at[:B, :num_act].set(
        trace_last[:, :num_act])
    x_time0 = jnp.zeros((Bp, 1), jnp.float32).at[:B, :].set(trace_last[:, -1:])

    # ---- teacher-forcing: one shared Bernoulli draw per decode step ---------
    rng = random.Random(seed)
    tf = jnp.array(
        [1 if rng.random() < teacher_force_ratio else 0 for _ in range(Ts)],
        dtype=jnp.int32)

    weights = (enc_wih, enc_whh, enc_b, dec_w, dec_b,
               ad_fcw_full, ad_fcb_p, td_fcw_full, td_fcb)

    # ---- specs / grid --------------------------------------------------------
    def _rep_spec(arr):
        zeros = (0,) * arr.ndim
        return pl.BlockSpec(arr.shape, lambda b: zeros)

    smem_spec = pl.BlockSpec(memory_space=pltpu.MemorySpace.SMEM)
    in_specs = [
        smem_spec,                                              # tf flags
        pl.BlockSpec((Tp, BB, Dc), lambda b: (0, b, 0)),        # x_all
        pl.BlockSpec((Ts, BB, 1), lambda b: (0, b, 0)),         # act_idx
        pl.BlockSpec((Ts, BB, 1), lambda b: (0, b, 0)),         # time_sfx
        pl.BlockSpec((BB, NA_PAD), lambda b: (b, 0)),           # x_act0
        pl.BlockSpec((BB, 1), lambda b: (b, 0)),                # x_time0
    ] + [_rep_spec(w) for w in weights]
    out_specs = (
        pl.BlockSpec((Ts, BB, NA_PAD), lambda b: (0, b, 0)),    # act logits
        pl.BlockSpec((BB, TLANES), lambda b: (b, 0)),           # time preds
    )

    block_shapes = [(Tp, BB, Dc), (Ts, BB, 1), (Ts, BB, 1), (BB, NA_PAD),
                    (BB, 1), (Ts, BB, NA_PAD), (BB, TLANES)]
    scratch = [(Tp * BB, 8 * H), (Ts * BB, 2 * Hd)]
    est = (2 * sum(_tile_bytes(s) for s in block_shapes)        # double buffers
           + sum(_tile_bytes(w.shape) for w in weights)
           + sum(_tile_bytes(s) for s in scratch))
    vmem_limit = int(min(max(est + (8 << 20), 32 << 20), 64 << 20))

    act_tm, time_lanes = pl.pallas_call(
        functools.partial(_seq2seq_cat_kernel, matmul_dtype),
        grid=(Bp // BB,),
        out_shape=(
            jax.ShapeDtypeStruct((Ts, Bp, NA_PAD), jnp.float32),
            jax.ShapeDtypeStruct((Bp, TLANES), jnp.float32),
        ),
        in_specs=in_specs,
        out_specs=out_specs,
        scratch_shapes=[
            pltpu.VMEM((Tp * BB, 8 * H), jnp.float32),
            pltpu.VMEM((Ts * BB, 2 * Hd), jnp.float32),
        ],
        compiler_params=pltpu.CompilerParams(
            dimension_semantics=("parallel",),
            vmem_limit_bytes=vmem_limit),
    )(tf, x_all, act_idx, time_sfx, x_act0, x_time0, *weights)

    act_predictions = jnp.transpose(act_tm[:, :B, :num_act], (1, 0, 2))  # (B,Ts,A)
    time_predictions = time_lanes[:B, :Ts][..., None]                    # (B,Ts,1)
    return act_predictions, time_predictions


# ----------------------------------------------------------------------------
# Deterministic parameter construction (shapes implied by the module __init__)
# ----------------------------------------------------------------------------
def init_params(key, num_act, enc_hidden):
    dec_hidden = 2 * enc_hidden            # cat of the two encoder states
    d_log = num_act + 1
    d_trace = num_act + 2

    def lstm_params(k, in_dim, hid):
        k1, k2, k3 = jax.random.split(k, 3)
        s = 1.0 / (hid ** 0.5)
        wih_t = jax.random.uniform(k1, (in_dim, 4 * hid), jnp.float32, -s, s)
        whh_t = jax.random.uniform(k2, (hid, 4 * hid), jnp.float32, -s, s)
        b = jax.random.uniform(k3, (1, 4 * hid), jnp.float32, -s, s)
        return wih_t, whh_t, b

    def linear_params(k, in_dim, out_dim):
        k1, k2 = jax.random.split(k)
        s = 1.0 / (in_dim ** 0.5)
        w_t = jax.random.uniform(k1, (in_dim, out_dim), jnp.float32, -s, s)
        b = jax.random.uniform(k2, (1, out_dim), jnp.float32, -s, s)
        return w_t, b

    keys = jax.random.split(key, 6)
    le_wih, le_whh, le_b = lstm_params(keys[0], d_log, enc_hidden)
    te_wih, te_whh, te_b = lstm_params(keys[1], d_trace, enc_hidden)
    ad_wih, ad_whh, ad_b = lstm_params(keys[2], num_act, dec_hidden)
    ad_fcw, ad_fcb = linear_params(keys[3], dec_hidden, num_act)
    td_wih, td_whh, td_b = lstm_params(keys[4], 1, dec_hidden)
    td_fcw, td_fcb = linear_params(keys[5], dec_hidden, 1)

    return dict(
        num_act=num_act,
        le_wih=le_wih, le_whh=le_whh, le_b=le_b,
        te_wih=te_wih, te_whh=te_whh, te_b=te_b,
        ad_wih=ad_wih, ad_whh=ad_whh, ad_b=ad_b, ad_fcw=ad_fcw, ad_fcb=ad_fcb,
        td_wih=td_wih, td_whh=td_whh, td_b=td_b, td_fcw=td_fcw, td_fcb=td_fcb,
    )


if __name__ == "__main__":
    num_act = 8
    enc_hidden = 16
    B, Tp, Ts = 2, 6, 5

    key = jax.random.PRNGKey(0)
    kp, k1, k2, k3, k4 = jax.random.split(key, 5)
    params = init_params(kp, num_act, enc_hidden)

    log_prefix = jax.random.uniform(k1, (B, Tp, num_act + 1), jnp.float32)
    trace_prefix = jax.random.uniform(k2, (B, Tp, num_act + 2), jnp.float32)
    act_suffix = jax.random.randint(k3, (B, Ts), 0, num_act)
    time_suffix = jax.random.uniform(k4, (B, Ts), jnp.float32)

    teacher_force_ratio = 1.0  # random.random() < 1.0 is always True

    act_pred, time_pred = seq2seq_cat_forward(
        params, log_prefix, trace_prefix, act_suffix, time_suffix,
        teacher_force_ratio, seed=0)
    jax.block_until_ready((act_pred, time_pred))

    assert act_pred.shape == (B, Ts, num_act)
    assert time_pred.shape == (B, Ts, 1)
    assert bool(jnp.all(jnp.isfinite(act_pred)))
    assert bool(jnp.all(jnp.isfinite(time_pred)))
    print("KERNEL_OK")
</pallas_src>

<mosaic_0001>
module attributes {stable_mosaic.version = 11 : i64} {
  func.func @_seq2seq_cat_kernel(%arg0: i32, %arg1: memref<5xi32, #tpu.memory_space<smem>>, %arg2: memref<6x8x19xf32, #tpu.memory_space<vmem>>, %arg3: memref<5x8x1xi32, #tpu.memory_space<vmem>>, %arg4: memref<5x8x1xf32, #tpu.memory_space<vmem>>, %arg5: memref<8x128xf32, #tpu.memory_space<vmem>>, %arg6: memref<8x1xf32, #tpu.memory_space<vmem>>, %arg7: memref<19x128xf32, #tpu.memory_space<vmem>>, %arg8: memref<32x128xf32, #tpu.memory_space<vmem>>, %arg9: memref<1x128xf32, #tpu.memory_space<vmem>>, %arg10: memref<193x256xf32, #tpu.memory_space<vmem>>, %arg11: memref<1x256xf32, #tpu.memory_space<vmem>>, %arg12: memref<64x128xf32, #tpu.memory_space<vmem>>, %arg13: memref<1x128xf32, #tpu.memory_space<vmem>>, %arg14: memref<1x64xf32, #tpu.memory_space<vmem>>, %arg15: memref<1x1xf32, #tpu.memory_space<vmem>>, %arg16: memref<5x8x128xf32, #tpu.memory_space<vmem>>, %arg17: memref<8x128xf32, #tpu.memory_space<vmem>>, %arg18: memref<48x128xf32, #tpu.memory_space<vmem>>, %arg19: memref<40x64xf32, #tpu.memory_space<vmem>>) attributes {dimension_semantics = [#tpu.dimension_semantics<parallel>], iteration_bounds = array<i64: 1>, scalar_prefetch = 0 : i64, scratch_operands = 2 : i64, tpu.core_type = #tpu.core_type<tc>, window_params = [{transform_indices = @transform_0, window_bounds = array<i64: 5>}, {transform_indices = @transform_1, window_bounds = array<i64: 6, 8, 19>}, {transform_indices = @transform_2, window_bounds = array<i64: 5, 8, 1>}, {transform_indices = @transform_3, window_bounds = array<i64: 5, 8, 1>}, {transform_indices = @transform_4, window_bounds = array<i64: 8, 128>}, {transform_indices = @transform_5, window_bounds = array<i64: 8, 1>}, {pipeline_mode = #tpu.pipeline_mode<synchronous>, transform_indices = @transform_6, window_bounds = array<i64: 19, 128>}, {pipeline_mode = #tpu.pipeline_mode<synchronous>, transform_indices = @transform_7, window_bounds = array<i64: 32, 128>}, {pipeline_mode = #tpu.pipeline_mode<synchronous>, transform_indices = @transform_8, window_bounds = array<i64: 1, 128>}, {pipeline_mode = #tpu.pipeline_mode<synchronous>, transform_indices = @transform_9, window_bounds = array<i64: 193, 256>}, {pipeline_mode = #tpu.pipeline_mode<synchronous>, transform_indices = @transform_10, window_bounds = array<i64: 1, 256>}, {pipeline_mode = #tpu.pipeline_mode<synchronous>, transform_indices = @transform_11, window_bounds = array<i64: 64, 128>}, {pipeline_mode = #tpu.pipeline_mode<synchronous>, transform_indices = @transform_12, window_bounds = array<i64: 1, 128>}, {pipeline_mode = #tpu.pipeline_mode<synchronous>, transform_indices = @transform_13, window_bounds = array<i64: 1, 64>}, {pipeline_mode = #tpu.pipeline_mode<synchronous>, transform_indices = @transform_14, window_bounds = array<i64: 1, 1>}, {transform_indices = @transform_15, window_bounds = array<i64: 5, 8, 128>}, {transform_indices = @transform_16, window_bounds = array<i64: 8, 128>}]} {
    %c0 = arith.constant 0 : index
    %c0_0 = arith.constant 0 : index
    %0 = vector.load %arg7[%c0, %c0_0] : memref<19x128xf32, #tpu.memory_space<vmem>>, vector<19x128xf32>
    %1 = arith.truncf %0 : vector<19x128xf32> to vector<19x128xbf16>
    %c0_1 = arith.constant 0 : index
    %c0_2 = arith.constant 0 : index
    %2 = vector.load %arg8[%c0_1, %c0_2] : memref<32x128xf32, #tpu.memory_space<vmem>>, vector<32x128xf32>
    %3 = arith.truncf %2 : vector<32x128xf32> to vector<32x128xbf16>
    %c0_3 = arith.constant 0 : index
    %c0_4 = arith.constant 0 : index
    %4 = vector.load %arg10[%c0_3, %c0_4] : memref<193x256xf32, #tpu.memory_space<vmem>>, vector<193x256xf32>
    %5 = arith.truncf %4 : vector<193x256xf32> to vector<193x256xbf16>
    %c0_5 = arith.constant 0 : index
    %c0_6 = arith.constant 0 : index
    %6 = vector.load %arg12[%c0_5, %c0_6] : memref<64x128xf32, #tpu.memory_space<vmem>>, vector<64x128xf32>
    %7 = arith.truncf %6 : vector<64x128xf32> to vector<64x128xbf16>
    %c0_7 = arith.constant 0 : index
    %c0_8 = arith.constant 0 : index
    %8 = vector.load %arg9[%c0_7, %c0_8] : memref<1x128xf32, #tpu.memory_space<vmem>>, vector<1x128xf32>
    %c0_9 = arith.constant 0 : index
    %c0_10 = arith.constant 0 : index
    %9 = vector.load %arg11[%c0_9, %c0_10] : memref<1x256xf32, #tpu.memory_space<vmem>>, vector<1x256xf32>
    %10 = vector.shape_cast %9 : vector<1x256xf32> to vector<1x256xf32>
    %11 = vector.broadcast %10 : vector<1x256xf32> to vector<8x256xf32>
    %c0_11 = arith.constant 0 : index
    %c0_12 = arith.constant 0 : index
    %12 = vector.load %arg13[%c0_11, %c0_12] : memref<1x128xf32, #tpu.memory_space<vmem>>, vector<1x128xf32>
    %13 = vector.shape_cast %12 : vector<1x128xf32> to vector<1x128xf32>
    %14 = vector.broadcast %13 : vector<1x128xf32> to vector<8x128xf32>
    %c0_13 = arith.constant 0 : index
    %c0_14 = arith.constant 0 : index
    %15 = vector.load %arg14[%c0_13, %c0_14] : memref<1x64xf32, #tpu.memory_space<vmem>>, vector<1x64xf32>
    %16 = vector.shape_cast %15 : vector<1x64xf32> to vector<1x64xf32>
    %17 = vector.broadcast %16 : vector<1x64xf32> to vector<8x64xf32>
    %c0_15 = arith.constant 0 : index
    %c0_16 = arith.constant 0 : index
    %18 = vector.load %arg15[%c0_15, %c0_16] : memref<1x1xf32, #tpu.memory_space<vmem>>, vector<1x1xf32>
    %19 = vector.shape_cast %18 : vector<1x1xf32> to vector<1x1xf32>
    %20 = vector.broadcast %19 : vector<1x1xf32> to vector<8x1xf32>
    %c0_17 = arith.constant 0 : index
    %c0_18 = arith.constant 0 : index
    %c0_19 = arith.constant 0 : index
    %21 = vector.load %arg2[%c0_17, %c0_18, %c0_19] : memref<6x8x19xf32, #tpu.memory_space<vmem>>, vector<6x8x19xf32>
    %22 = vector.shape_cast %21 : vector<6x8x19xf32> to vector<48x19xf32>
    %23 = arith.truncf %22 : vector<48x19xf32> to vector<48x19xbf16>
    %cst = arith.constant dense<0.000000e+00> : vector<48x128xf32>
    %24 = tpu.matmul %23, %1, %cst {dimension_numbers = #tpu.dot_dimension_numbers<[1], [0], [0], [1], [0, 0, 1, 1], [], []>} : vector<48x19xbf16>, vector<19x128xbf16>, vector<48x128xf32> -> vector<48x128xf32>
    %25 = vector.broadcast %8 : vector<1x128xf32> to vector<48x128xf32>
    %26 = arith.addf %24, %25 : vector<48x128xf32>
    %c0_20 = arith.constant 0 : index
    %c0_21 = arith.constant 0 : index
    %27 = vector.load %arg18[%c0_20, %c0_21] : memref<48x128xf32, #tpu.memory_space<vmem>>, vector<48x128xf32>
    tpu.vector_store %arg18[%c0_20, %c0_21], %26 {strides = array<i32>} : memref<48x128xf32, #tpu.memory_space<vmem>>, vector<48x128xf32>,
    %cst_22 = arith.constant 0.000000e+00 : f32
    %28 = vector.broadcast %cst_22 : f32 to vector<8x32xf32>
    %c0_i32 = arith.constant 0 : i32
    %c8_i32 = arith.constant 8 : i32
    %29 = arith.muli %c0_i32, %c8_i32 : i32
    %30 = tpu.assume_multiple %29, 8 : i32
    %31 = arith.index_cast %30 : i32 to index
    %c0_23 = arith.constant 0 : index
    %32 = vector.load %arg18[%31, %c0_23] : memref<48x128xf32, #tpu.memory_space<vmem>>, vector<8x128xf32>
    %33 = arith.truncf %28 : vector<8x32xf32> to vector<8x32xbf16>
    %cst_24 = arith.constant dense<0.000000e+00> : vector<8x128xf32>
    %34 = tpu.matmul %33, %3, %cst_24 {dimension_numbers = #tpu.dot_dimension_numbers<[1], [0], [0], [1], [0, 0, 1, 1], [], []>} : vector<8x32xbf16>, vector<32x128xbf16>, vector<8x128xf32> -> vector<8x128xf32>
    %35 = arith.addf %32, %34 : vector<8x128xf32>
    %36 = vector.extract_strided_slice %35 {offsets = [0, 0], sizes = [8, 32], strides = [1, 1]} : vector<8x128xf32> to vector<8x32xf32>
    %37 = arith.negf %36 : vector<8x32xf32>
    %38 = math.exp %37 : vector<8x32xf32>
    %cst_25 = arith.constant 1.000000e+00 : f32
    %39 = vector.broadcast %cst_25 : f32 to vector<8x32xf32>
    %40 = arith.addf %39, %38 : vector<8x32xf32>
    %41 = arith.divf %39, %40 : vector<8x32xf32>
    %42 = vector.extract_strided_slice %35 {offsets = [0, 32], sizes = [8, 32], strides = [1, 1]} : vector<8x128xf32> to vector<8x32xf32>
    %43 = arith.negf %42 : vector<8x32xf32>
    %44 = math.exp %43 : vector<8x32xf32>
    %cst_26 = arith.constant 1.000000e+00 : f32
    %45 = vector.broadcast %cst_26 : f32 to vector<8x32xf32>
    %46 = arith.addf %45, %44 : vector<8x32xf32>
    %47 = arith.divf %45, %46 : vector<8x32xf32>
    %48 = vector.extract_strided_slice %35 {offsets = [0, 64], sizes = [8, 32], strides = [1, 1]} : vector<8x128xf32> to vector<8x32xf32>
    %49 = math.tanh %48 : vector<8x32xf32>
    %50 = vector.extract_strided_slice %35 {offsets = [0, 96], sizes = [8, 32], strides = [1, 1]} : vector<8x128xf32> to vector<8x32xf32>
    %51 = arith.negf %50 : vector<8x32xf32>
    %52 = math.exp %51 : vector<8x32xf32>
    %cst_27 = arith.constant 1.000000e+00 : f32
    %53 = vector.broadcast %cst_27 : f32 to vector<8x32xf32>
    %54 = arith.addf %53, %52 : vector<8x32xf32>
    %55 = arith.divf %53, %54 : vector<8x32xf32>
    %56 = arith.mulf %47, %28 : vector<8x32xf32>
    %57 = arith.mulf %41, %49 : vector<8x32xf32>
    %58 = arith.addf %56, %57 : vector<8x32xf32>
    %59 = math.tanh %58 : vector<8x32xf32>
    %60 = arith.mulf %55, %59 : vector<8x32xf32>
    %c1_i32 = arith.constant 1 : i32
    %c8_i32_28 = arith.constant 8 : i32
    %61 = arith.muli %c1_i32, %c8_i32_28 : i32
    %62 = tpu.assume_multiple %61, 8 : i32
    %63 = arith.index_cast %62 : i32 to index
    %c0_29 = arith.constant 0 : index
    %64 = vector.load %arg18[%63, %c0_29] : memref<48x128xf32, #tpu.memory_space<vmem>>, vector<8x128xf32>
    %65 = arith.truncf %60 : vector<8x32xf32> to vector<8x32xbf16>
    %cst_30 = arith.constant dense<0.000000e+00> : vector<8x128xf32>
    %66 = tpu.matmul %65, %3, %cst_30 {dimension_numbers = #tpu.dot_dimension_numbers<[1], [0], [0], [1], [0, 0, 1, 1], [], []>} : vector<8x32xbf16>, vector<32x128xbf16>, vector<8x128xf32> -> vector<8x128xf32>
    %67 = arith.addf %64, %66 : vector<8x128xf32>
    %68 = vector.extract_strided_slice %67 {offsets = [0, 0], sizes = [8, 32], strides = [1, 1]} : vector<8x128xf32> to vector<8x32xf32>
    %69 = arith.negf %68 : vector<8x32xf32>
    %70 = math.exp %69 : vector<8x32xf32>
    %cst_31 = arith.constant 1.000000e+00 : f32
    %71 = vector.broadcast %cst_31 : f32 to vector<8x32xf32>
    %72 = arith.addf %71, %70 : vector<8x32xf32>
    %73 = arith.divf %71, %72 : vector<8x32xf32>
    %74 = vector.extract_strided_slice %67 {offsets = [0, 32], sizes = [8, 32], strides = [1, 1]} : vector<8x128xf32> to vector<8x32xf32>
    %75 = arith.negf %74 : vector<8x32xf32>
    %76 = math.exp %75 : vector<8x32xf32>
    %cst_32 = arith.constant 1.000000e+00 : f32
    %77 = vector.broadcast %cst_32 : f32 to vector<8x32xf32>
    %78 = arith.addf %77, %76 : vector<8x32xf32>
    %79 = arith.divf %77, %78 : vector<8x32xf32>
    %80 = vector.extract_strided_slice %67 {offsets = [0, 64], sizes = [8, 32], strides = [1, 1]} : vector<8x128xf32> to vector<8x32xf32>
    %81 = math.tanh %80 : vector<8x32xf32>
    %82 = vector.extract_strided_slice %67 {offsets = [0, 96], sizes = [8, 32], strides = [1, 1]} : vector<8x128xf32> to vector<8x32xf32>
    %83 = arith.negf %82 : vector<8x32xf32>
    %84 = math.exp %83 : vector<8x32xf32>
    %cst_33 = arith.constant 1.000000e+00 : f32
    %85 = vector.broadcast %cst_33 : f32 to vector<8x32xf32>
    %86 = arith.addf %85, %84 : vector<8x32xf32>
    %87 = arith.divf %85, %86 : vector<8x32xf32>
    %88 = arith.mulf %79, %58 : vector<8x32xf32>
    %89 = arith.mulf %73, %81 : vector<8x32xf32>
    %90 = arith.addf %88, %89 : vector<8x32xf32>
    %91 = math.tanh %90 : vector<8x32xf32>
    %92 = arith.mulf %87, %91 : vector<8x32xf32>
    %c2_i32 = arith.constant 2 : i32
    %c8_i32_34 = arith.constant 8 : i32
    %93 = arith.muli %c2_i32, %c8_i32_34 : i32
    %94 = tpu.assume_multiple %93, 8 : i32
    %95 = arith.index_cast %94 : i32 to index
    %c0_35 = arith.constant 0 : index
    %96 = vector.load %arg18[%95, %c0_35] : memref<48x128xf32, #tpu.memory_space<vmem>>, vector<8x128xf32>
    %97 = arith.truncf %92 : vector<8x32xf32> to vector<8x32xbf16>
    %cst_36 = arith.constant dense<0.000000e+00> : vector<8x128xf32>
    %98 = tpu.matmul %97, %3, %cst_36 {dimension_numbers = #tpu.dot_dimension_numbers<[1], [0], [0], [1], [0, 0, 1, 1], [], []>} : vector<8x32xbf16>, vector<32x128xbf16>, vector<8x128xf32> -> vector<8x128xf32>
    %99 = arith.addf %96, %98 : vector<8x128xf32>
    %100 = vector.extract_strided_slice %99 {offsets = [0, 0], sizes = [8, 32], strides = [1, 1]} : vector<8x128xf32> to vector<8x32xf32>
    %101 = arith.negf %100 : vector<8x32xf32>
    %102 = math.exp %101 : vector<8x32xf32>
    %cst_37 = arith.constant 1.000000e+00 : f32
    %103 = vector.broadcast %cst_37 : f32 to vector<8x32xf32>
    %104 = arith.addf %103, %102 : vector<8x32xf32>
    %105 = arith.divf %103, %104 : vector<8x32xf32>
    %106 = vector.extract_strided_slice %99 {offsets = [0, 32], sizes = [8, 32], strides = [1, 1]} : vector<8x128xf32> to vector<8x32xf32>
    %107 = arith.negf %106 : vector<8x32xf32>
    %108 = math.exp %107 : vector<8x32xf32>
    %cst_38 = arith.constant 1.000000e+00 : f32
    %109 = vector.broadcast %cst_38 : f32 to vector<8x32xf32>
    %110 = arith.addf %109, %108 : vector<8x32xf32>
    %111 = arith.divf %109, %110 : vector<8x32xf32>
    %112 = vector.extract_strided_slice %99 {offsets = [0, 64], sizes = [8, 32], strides = [1, 1]} : vector<8x128xf32> to vector<8x32xf32>
    %113 = math.tanh %112 : vector<8x32xf32>
    %114 = vector.extract_strided_slice %99 {offsets = [0, 96], sizes = [8, 32], strides = [1, 1]} : vector<8x128xf32> to vector<8x32xf32>
    %115 = arith.negf %114 : vector<8x32xf32>
    %116 = math.exp %115 : vector<8x32xf32>
    %cst_39 = arith.constant 1.000000e+00 : f32
    %117 = vector.broadcast %cst_39 : f32 to vector<8x32xf32>
    %118 = arith.addf %117, %116 : vector<8x32xf32>
    %119 = arith.divf %117, %118 : vector<8x32xf32>
    %120 = arith.mulf %111, %90 : vector<8x32xf32>
    %121 = arith.mulf %105, %113 : vector<8x32xf32>
    %122 = arith.addf %120, %121 : vector<8x32xf32>
    %123 = math.tanh %122 : vector<8x32xf32>
    %124 = arith.mulf %119, %123 : vector<8x32xf32>
    %c3_i32 = arith.constant 3 : i32
    %c8_i32_40 = arith.constant 8 : i32
    %125 = arith.muli %c3_i32, %c8_i32_40 : i32
    %126 = tpu.assume_multiple %125, 8 : i32
    %127 = arith.index_cast %126 : i32 to index
    %c0_41 = arith.constant 0 : index
    %128 = vector.load %arg18[%127, %c0_41] : memref<48x128xf32, #tpu.memory_space<vmem>>, vector<8x128xf32>
    %129 = arith.truncf %124 : vector<8x32xf32> to vector<8x32xbf16>
    %cst_42 = arith.constant dense<0.000000e+00> : vector<8x128xf32>
    %130 = tpu.matmul %129, %3, %cst_42 {dimension_numbers = #tpu.dot_dimension_numbers<[1], [0], [0], [1], [0, 0, 1, 1], [], []>} : vector<8x32xbf16>, vector<32x128xbf16>, vector<8x128xf32> -> vector<8x128xf32>
    %131 = arith.addf %128, %130 : vector<8x128xf32>
    %132 = vector.extract_strided_slice %131 {offsets = [0, 0], sizes = [8, 32], strides = [1, 1]} : vector<8x128xf32> to vector<8x32xf32>
    %133 = arith.negf %132 : vector<8x32xf32>
    %134 = math.exp %133 : vector<8x32xf32>
    %cst_43 = arith.constant 1.000000e+00 : f32
    %135 = vector.broadcast %cst_43 : f32 to vector<8x32xf32>
    %136 = arith.addf %135, %134 : vector<8x32xf32>
    %137 = arith.divf %135, %136 : vector<8x32xf32>
    %138 = vector.extract_strided_slice %131 {offsets = [0, 32], sizes = [8, 32], strides = [1, 1]} : vector<8x128xf32> to vector<8x32xf32>
    %139 = arith.negf %138 : vector<8x32xf32>
    %140 = math.exp %139 : vector<8x32xf32>
    %cst_44 = arith.constant 1.000000e+00 : f32
    %141 = vector.broadcast %cst_44 : f32 to vector<8x32xf32>
    %142 = arith.addf %141, %140 : vector<8x32xf32>
    %143 = arith.divf %141, %142 : vector<8x32xf32>
    %144 = vector.extract_strided_slice %131 {offsets = [0, 64], sizes = [8, 32], strides = [1, 1]} : vector<8x128xf32> to vector<8x32xf32>
    %145 = math.tanh %144 : vector<8x32xf32>
    %146 = vector.extract_strided_slice %131 {offsets = [0, 96], sizes = [8, 32], strides = [1, 1]} : vector<8x128xf32> to vector<8x32xf32>
    %147 = arith.negf %146 : vector<8x32xf32>
    %148 = math.exp %147 : vector<8x32xf32>
    %cst_45 = arith.constant 1.000000e+00 : f32
    %149 = vector.broadcast %cst_45 : f32 to vector<8x32xf32>
    %150 = arith.addf %149, %148 : vector<8x32xf32>
    %151 = arith.divf %149, %150 : vector<8x32xf32>
    %152 = arith.mulf %143, %122 : vector<8x32xf32>
    %153 = arith.mulf %137, %145 : vector<8x32xf32>
    %154 = arith.addf %152, %153 : vector<8x32xf32>
    %155 = math.tanh %154 : vector<8x32xf32>
    %156 = arith.mulf %151, %155 : vector<8x32xf32>
    %c4_i32 = arith.constant 4 : i32
    %c8_i32_46 = arith.constant 8 : i32
    %157 = arith.muli %c4_i32, %c8_i32_46 : i32
    %158 = tpu.assume_multiple %157, 8 : i32
    %159 = arith.index_cast %158 : i32 to index
    %c0_47 = arith.constant 0 : index
    %160 = vector.load %arg18[%159, %c0_47] : memref<48x128xf32, #tpu.memory_space<vmem>>, vector<8x128xf32>
    %161 = arith.truncf %156 : vector<8x32xf32> to vector<8x32xbf16>
    %cst_48 = arith.constant dense<0.000000e+00> : vector<8x128xf32>
    %162 = tpu.matmul %161, %3, %cst_48 {dimension_numbers = #tpu.dot_dimension_numbers<[1], [0], [0], [1], [0, 0, 1, 1], [], []>} : vector<8x32xbf16>, vector<32x128xbf16>, vector<8x128xf32> -> vector<8x128xf32>
    %163 = arith.addf %160, %162 : vector<8x128xf32>
    %164 = vector.extract_strided_slice %163 {offsets = [0, 0], sizes = [8, 32], strides = [1, 1]} : vector<8x128xf32> to vector<8x32xf32>
    %165 = arith.negf %164 : vector<8x32xf32>
    %166 = math.exp %165 : vector<8x32xf32>
    %cst_49 = arith.constant 1.000000e+00 : f32
    %167 = vector.broadcast %cst_49 : f32 to vector<8x32xf32>
    %168 = arith.addf %167, %166 : vector<8x32xf32>
    %169 = arith.divf %167, %168 : vector<8x32xf32>
    %170 = vector.extract_strided_slice %163 {offsets = [0, 32], sizes = [8, 32], strides = [1, 1]} : vector<8x128xf32> to vector<8x32xf32>
    %171 = arith.negf %170 : vector<8x32xf32>
    %172 = math.exp %171 : vector<8x32xf32>
    %cst_50 = arith.constant 1.000000e+00 : f32
    %173 = vector.broadcast %cst_50 : f32 to vector<8x32xf32>
    %174 = arith.addf %173, %172 : vector<8x32xf32>
    %175 = arith.divf %173, %174 : vector<8x32xf32>
    %176 = vector.extract_strided_slice %163 {offsets = [0, 64], sizes = [8, 32], strides = [1, 1]} : vector<8x128xf32> to vector<8x32xf32>
    %177 = math.tanh %176 : vector<8x32xf32>
    %178 = vector.extract_strided_slice %163 {offsets = [0, 96], sizes = [8, 32], strides = [1, 1]} : vector<8x128xf32> to vector<8x32xf32>
    %179 = arith.negf %178 : vector<8x32xf32>
    %180 = math.exp %179 : vector<8x32xf32>
    %cst_51 = arith.constant 1.000000e+00 : f32
    %181 = vector.broadcast %cst_51 : f32 to vector<8x32xf32>
    %182 = arith.addf %181, %180 : vector<8x32xf32>
    %183 = arith.divf %181, %182 : vector<8x32xf32>
    %184 = arith.mulf %175, %154 : vector<8x32xf32>
    %185 = arith.mulf %169, %177 : vector<8x32xf32>
    %186 = arith.addf %184, %185 : vector<8x32xf32>
    %187 = math.tanh %186 : vector<8x32xf32>
    %188 = arith.mulf %183, %187 : vector<8x32xf32>
    %c5_i32 = arith.constant 5 : i32
    %c8_i32_52 = arith.constant 8 : i32
    %189 = arith.muli %c5_i32, %c8_i32_52 : i32
    %190 = tpu.assume_multiple %189, 8 : i32
    %191 = arith.index_cast %190 : i32 to index
    %c0_53 = arith.constant 0 : index
    %192 = vector.load %arg18[%191, %c0_53] : memref<48x128xf32, #tpu.memory_space<vmem>>, vector<8x128xf32>
    %193 = arith.truncf %188 : vector<8x32xf32> to vector<8x32xbf16>
    %cst_54 = arith.constant dense<0.000000e+00> : vector<8x128xf32>
    %194 = tpu.matmul %193, %3, %cst_54 {dimension_numbers = #tpu.dot_dimension_numbers<[1], [0], [0], [1], [0, 0, 1, 1], [], []>} : vector<8x32xbf16>, vector<32x128xbf16>, vector<8x128xf32> -> vector<8x128xf32>
    %195 = arith.addf %192, %194 : vector<8x128xf32>
    %196 = vector.extract_strided_slice %195 {offsets = [0, 0], sizes = [8, 32], strides = [1, 1]} : vector<8x128xf32> to vector<8x32xf32>
    %197 = arith.negf %196 : vector<8x32xf32>
    %198 = math.exp %197 : vector<8x32xf32>
    %cst_55 = arith.constant 1.000000e+00 : f32
    %199 = vector.broadcast %cst_55 : f32 to vector<8x32xf32>
    %200 = arith.addf %199, %198 : vector<8x32xf32>
    %201 = arith.divf %199, %200 : vector<8x32xf32>
    %202 = vector.extract_strided_slice %195 {offsets = [0, 32], sizes = [8, 32], strides = [1, 1]} : vector<8x128xf32> to vector<8x32xf32>
    %203 = arith.negf %202 : vector<8x32xf32>
    %204 = math.exp %203 : vector<8x32xf32>
    %cst_56 = arith.constant 1.000000e+00 : f32
    %205 = vector.broadcast %cst_56 : f32 to vector<8x32xf32>
    %206 = arith.addf %205, %204 : vector<8x32xf32>
    %207 = arith.divf %205, %206 : vector<8x32xf32>
    %208 = vector.extract_strided_slice %195 {offsets = [0, 64], sizes = [8, 32], strides = [1, 1]} : vector<8x128xf32> to vector<8x32xf32>
    %209 = math.tanh %208 : vector<8x32xf32>
    %210 = vector.extract_strided_slice %195 {offsets = [0, 96], sizes = [8, 32], strides = [1, 1]} : vector<8x128xf32> to vector<8x32xf32>
    %211 = arith.negf %210 : vector<8x32xf32>
    %212 = math.exp %211 : vector<8x32xf32>
    %cst_57 = arith.constant 1.000000e+00 : f32
    %213 = vector.broadcast %cst_57 : f32 to vector<8x32xf32>
    %214 = arith.addf %213, %212 : vector<8x32xf32>
    %215 = arith.divf %213, %214 : vector<8x32xf32>
    %216 = arith.mulf %207, %186 : vector<8x32xf32>
    %217 = arith.mulf %201, %209 : vector<8x32xf32>
    %218 = arith.addf %216, %217 : vector<8x32xf32>
    %219 = math.tanh %218 : vector<8x32xf32>
    %220 = arith.mulf %215, %219 : vector<8x32xf32>
    %c6_i32 = arith.constant 6 : i32
    %221 = tpu.iota {dimensions = array<i32: 1>} : vector<8x128xi32>
    %222 = tpu.iota {dimensions = array<i32: 1>} : vector<8x128xi32>
    %223 = tpu.concatenate %220, %220 in 1 : vector<8x32xf32>, vector<8x32xf32> -> vector<8x64xf32>
    %224 = tpu.concatenate %218, %218 in 1 : vector<8x32xf32>, vector<8x32xf32> -> vector<8x64xf32>
    %c0_58 = arith.constant 0 : index
    %c0_59 = arith.constant 0 : index
    %225 = vector.load %arg5[%c0_58, %c0_59] : memref<8x128xf32, #tpu.memory_space<vmem>>, vector<8x128xf32>
    %c0_60 = arith.constant 0 : index
    %c0_61 = arith.constant 0 : index
    %226 = vector.load %arg6[%c0_60, %c0_61] : memref<8x1xf32, #tpu.memory_space<vmem>>, vector<8x1xf32>
    %cst_62 = arith.constant 0.000000e+00 : f32
    %227 = vector.broadcast %cst_62 : f32 to vector<8x128xf32>
    %cst_63 = arith.constant 1.000000e+00 : f32
    %cst_64 = arith.constant 0.000000e+00 : f32
    %c0_i32_65 = arith.constant 0 : i32
    %228 = tpu.concatenate %225, %226, %223 in 1 : vector<8x128xf32>, vector<8x1xf32>, vector<8x64xf32> -> vector<8x193xf32>
    %229 = arith.truncf %228 : vector<8x193xf32> to vector<8x193xbf16>
    %cst_66 = arith.constant dense<0.000000e+00> : vector<8x256xf32>
    %230 = tpu.matmul %229, %5, %cst_66 {dimension_numbers = #tpu.dot_dimension_numbers<[1], [0], [0], [1], [0, 0, 1, 1], [], []>} : vector<8x193xbf16>, vector<193x256xbf16>, vector<8x256xf32> -> vector<8x256xf32>
    %231 = arith.addf %230, %11 : vector<8x256xf32>
    %232 = vector.extract_strided_slice %231 {offsets = [0, 0], sizes = [8, 64], strides = [1, 1]} : vector<8x256xf32> to vector<8x64xf32>
    %233 = arith.negf %232 : vector<8x64xf32>
    %234 = math.exp %233 : vector<8x64xf32>
    %cst_67 = arith.constant 1.000000e+00 : f32
    %235 = vector.broadcast %cst_67 : f32 to vector<8x64xf32>
    %236 = arith.addf %235, %234 : vector<8x64xf32>
    %237 = arith.divf %235, %236 : vector<8x64xf32>
    %238 = vector.extract_strided_slice %231 {offsets = [0, 64], sizes = [8, 64], strides = [1, 1]} : vector<8x256xf32> to vector<8x64xf32>
    %239 = arith.negf %238 : vector<8x64xf32>
    %240 = math.exp %239 : vector<8x64xf32>
    %cst_68 = arith.constant 1.000000e+00 : f32
    %241 = vector.broadcast %cst_68 : f32 to vector<8x64xf32>
    %242 = arith.addf %241, %240 : vector<8x64xf32>
    %243 = arith.divf %241, %242 : vector<8x64xf32>
    %244 = vector.extract_strided_slice %231 {offsets = [0, 128], sizes = [8, 64], strides = [1, 1]} : vector<8x256xf32> to vector<8x64xf32>
    %245 = math.tanh %244 : vector<8x64xf32>
    %246 = vector.extract_strided_slice %231 {offsets = [0, 192], sizes = [8, 64], strides = [1, 1]} : vector<8x256xf32> to vector<8x64xf32>
    %247 = arith.negf %246 : vector<8x64xf32>
    %248 = math.exp %247 : vector<8x64xf32>
    %cst_69 = arith.constant 1.000000e+00 : f32
    %249 = vector.broadcast %cst_69 : f32 to vector<8x64xf32>
    %250 = arith.addf %249, %248 : vector<8x64xf32>
    %251 = arith.divf %249, %250 : vector<8x64xf32>
    %252 = arith.mulf %243, %224 : vector<8x64xf32>
    %253 = arith.mulf %237, %245 : vector<8x64xf32>
    %254 = arith.addf %252, %253 : vector<8x64xf32>
    %255 = math.tanh %254 : vector<8x64xf32>
    %256 = arith.mulf %251, %255 : vector<8x64xf32>
    %c8_i32_70 = arith.constant 8 : i32
    %257 = arith.muli %c0_i32_65, %c8_i32_70 : i32
    %258 = tpu.assume_multiple %257, 8 : i32
    %259 = arith.index_cast %258 : i32 to index
    %c0_71 = arith.constant 0 : index
    %260 = vector.load %arg19[%259, %c0_71] : memref<40x64xf32, #tpu.memory_space<vmem>>, vector<8x64xf32>
    tpu.vector_store %arg19[%259, %c0_71], %256 {strides = array<i32>} : memref<40x64xf32, #tpu.memory_space<vmem>>, vector<8x64xf32>,
    %261 = arith.mulf %256, %17 : vector<8x64xf32>
    %cst_72 = arith.constant dense<0.000000e+00> : vector<8xf32>
    %262 = vector.multi_reduction <add>, %261, %cst_72 [1] : vector<8x64xf32> to vector<8xf32>
    %263 = vector.shape_cast %262 : vector<8xf32> to vector<8x1xf32>
    %264 = arith.addf %263, %20 : vector<8x1xf32>
    %265 = vector.broadcast %c0_i32_65 : i32 to vector<8x128xi32>
    %266 = arith.cmpi eq, %222, %265 : vector<8x128xi32>
    %267 = vector.shape_cast %264 : vector<8x1xf32> to vector<8x1xf32>
    %268 = vector.broadcast %267 : vector<8x1xf32> to vector<8x128xf32>
    %269 = arith.select %266, %268, %227 : vector<8x128xi1>, vector<8x128xf32>
    %270 = arith.index_cast %c0_i32_65 : i32 to index
    %271 = memref.load %arg1[%270] : memref<5xi32, #tpu.memory_space<smem>>
    %c1_i32_73 = arith.constant 1 : i32
    %272 = arith.cmpi eq, %271, %c1_i32_73 : i32
    %273 = arith.extui %272 : i1 to i32
    %c0_i32_74 = arith.constant 0 : i32
    %274 = arith.cmpi ne, %273, %c0_i32_74 : i32
    %275 = scf.if %274 -> (vector<8x128xf32>) {
      %503 = arith.index_cast %c0_i32_65 : i32 to index
      %c0_141 = arith.constant 0 : index
      %c0_142 = arith.constant 0 : index
      %504 = vector.load %arg3[%503, %c0_141, %c0_142] : memref<5x8x1xi32, #tpu.memory_space<vmem>>, vector<1x8x1xi32>
      %505 = vector.shape_cast %504 : vector<1x8x1xi32> to vector<8x1xi32>
      %506 = vector.broadcast %505 : vector<8x1xi32> to vector<8x128xi32>
      %507 = arith.cmpi eq, %221, %506 : vector<8x128xi32>
      %c0_i32_143 = arith.constant 0 : i32
      %508 = vector.broadcast %c0_i32_143 : i32 to vector<8x128xi32>
      %509 = arith.cmpi ne, %221, %508 : vector<8x128xi32>
      %510 = arith.andi %507, %509 : vector<8x128xi1>
      %511 = vector.broadcast %cst_63 : f32 to vector<8x128xf32>
      %512 = vector.broadcast %cst_64 : f32 to vector<8x128xf32>
      %513 = arith.select %510, %511, %512 : vector<8x128xi1>, vector<8x128xf32>
      scf.yield %513 : vector<8x128xf32>
    } else {
      %503 = arith.truncf %256 : vector<8x64xf32> to vector<8x64xbf16>
      %cst_141 = arith.constant dense<0.000000e+00> : vector<8x128xf32>
      %504 = tpu.matmul %503, %7, %cst_141 {dimension_numbers = #tpu.dot_dimension_numbers<[1], [0], [0], [1], [0, 0, 1, 1], [], []>} : vector<8x64xbf16>, vector<64x128xbf16>, vector<8x128xf32> -> vector<8x128xf32>
      %505 = arith.addf %504, %14 : vector<8x128xf32>
      %cst_142 = arith.constant dense<0xFF800000> : vector<8xf32>
      %506 = vector.multi_reduction <maximumf>, %505, %cst_142 [1] : vector<8x128xf32> to vector<8xf32>
      %507 = vector.shape_cast %506 : vector<8xf32> to vector<8x1xf32>
      %508 = vector.broadcast %507 : vector<8x1xf32> to vector<8x128xf32>
      %509 = arith.cmpf oeq, %505, %508 : vector<8x128xf32>
      %c128_i32 = arith.constant 128 : i32
      %510 = vector.broadcast %c128_i32 : i32 to vector<8x128xi32>
      %511 = arith.select %509, %221, %510 : vector<8x128xi1>, vector<8x128xi32>
      %cst_143 = arith.constant dense<2147483647> : vector<8xi32>
      %512 = vector.multi_reduction <minsi>, %511, %cst_143 [1] : vector<8x128xi32> to vector<8xi32>
      %513 = vector.shape_cast %512 : vector<8xi32> to vector<8x1xi32>
      %514 = vector.broadcast %513 : vector<8x1xi32> to vector<8x128xi32>
      %515 = arith.cmpi eq, %221, %514 : vector<8x128xi32>
      %c0_i32_144 = arith.constant 0 : i32
      %516 = vector.broadcast %c0_i32_144 : i32 to vector<8x128xi32>
      %517 = arith.cmpi ne, %221, %516 : vector<8x128xi32>
      %518 = arith.andi %515, %517 : vector<8x128xi1>
      %519 = vector.broadcast %cst_63 : f32 to vector<8x128xf32>
      %520 = vector.broadcast %cst_64 : f32 to vector<8x128xf32>
      %521 = arith.select %518, %519, %520 : vector<8x128xi1>, vector<8x128xf32>
      scf.yield %521 : vector<8x128xf32>
    }
    %c1_i32_75 = arith.constant 1 : i32
    %276 = arith.cmpi eq, %271, %c1_i32_75 : i32
    %277 = arith.index_cast %c0_i32_65 : i32 to index
    %c0_76 = arith.constant 0 : index
    %c0_77 = arith.constant 0 : index
    %278 = vector.load %arg4[%277, %c0_76, %c0_77] : memref<5x8x1xf32, #tpu.memory_space<vmem>>, vector<1x8x1xf32>
    %279 = vector.shape_cast %278 : vector<1x8x1xf32> to vector<8x1xf32>
    %280 = arith.select %276, %279, %264 : vector<8x1xf32>
    %c1_i32_78 = arith.constant 1 : i32
    %281 = tpu.concatenate %275, %280, %256 in 1 : vector<8x128xf32>, vector<8x1xf32>, vector<8x64xf32> -> vector<8x193xf32>
    %282 = arith.truncf %281 : vector<8x193xf32> to vector<8x193xbf16>
    %cst_79 = arith.constant dense<0.000000e+00> : vector<8x256xf32>
    %283 = tpu.matmul %282, %5, %cst_79 {dimension_numbers = #tpu.dot_dimension_numbers<[1], [0], [0], [1], [0, 0, 1, 1], [], []>} : vector<8x193xbf16>, vector<193x256xbf16>, vector<8x256xf32> -> vector<8x256xf32>
    %284 = arith.addf %283, %11 : vector<8x256xf32>
    %285 = vector.extract_strided_slice %284 {offsets = [0, 0], sizes = [8, 64], strides = [1, 1]} : vector<8x256xf32> to vector<8x64xf32>
    %286 = arith.negf %285 : vector<8x64xf32>
    %287 = math.exp %286 : vector<8x64xf32>
    %cst_80 = arith.constant 1.000000e+00 : f32
    %288 = vector.broadcast %cst_80 : f32 to vector<8x64xf32>
    %289 = arith.addf %288, %287 : vector<8x64xf32>
    %290 = arith.divf %288, %289 : vector<8x64xf32>
    %291 = vector.extract_strided_slice %284 {offsets = [0, 64], sizes = [8, 64], strides = [1, 1]} : vector<8x256xf32> to vector<8x64xf32>
    %292 = arith.negf %291 : vector<8x64xf32>
    %293 = math.exp %292 : vector<8x64xf32>
    %cst_81 = arith.constant 1.000000e+00 : f32
    %294 = vector.broadcast %cst_81 : f32 to vector<8x64xf32>
    %295 = arith.addf %294, %293 : vector<8x64xf32>
    %296 = arith.divf %294, %295 : vector<8x64xf32>
    %297 = vector.extract_strided_slice %284 {offsets = [0, 128], sizes = [8, 64], strides = [1, 1]} : vector<8x256xf32> to vector<8x64xf32>
    %298 = math.tanh %297 : vector<8x64xf32>
    %299 = vector.extract_strided_slice %284 {offsets = [0, 192], sizes = [8, 64], strides = [1, 1]} : vector<8x256xf32> to vector<8x64xf32>
    %300 = arith.negf %299 : vector<8x64xf32>
    %301 = math.exp %300 : vector<8x64xf32>
    %cst_82 = arith.constant 1.000000e+00 : f32
    %302 = vector.broadcast %cst_82 : f32 to vector<8x64xf32>
    %303 = arith.addf %302, %301 : vector<8x64xf32>
    %304 = arith.divf %302, %303 : vector<8x64xf32>
    %305 = arith.mulf %296, %254 : vector<8x64xf32>
    %306 = arith.mulf %290, %298 : vector<8x64xf32>
    %307 = arith.addf %305, %306 : vector<8x64xf32>
    %308 = math.tanh %307 : vector<8x64xf32>
    %309 = arith.mulf %304, %308 : vector<8x64xf32>
    %c8_i32_83 = arith.constant 8 : i32
    %310 = arith.muli %c1_i32_78, %c8_i32_83 : i32
    %311 = tpu.assume_multiple %310, 8 : i32
    %312 = arith.index_cast %311 : i32 to index
    %c0_84 = arith.constant 0 : index
    %313 = vector.load %arg19[%312, %c0_84] : memref<40x64xf32, #tpu.memory_space<vmem>>, vector<8x64xf32>
    tpu.vector_store %arg19[%312, %c0_84], %309 {strides = array<i32>} : memref<40x64xf32, #tpu.memory_space<vmem>>, vector<8x64xf32>,
    %314 = arith.mulf %309, %17 : vector<8x64xf32>
    %cst_85 = arith.constant dense<0.000000e+00> : vector<8xf32>
    %315 = vector.multi_reduction <add>, %314, %cst_85 [1] : vector<8x64xf32> to vector<8xf32>
    %316 = vector.shape_cast %315 : vector<8xf32> to vector<8x1xf32>
    %317 = arith.addf %316, %20 : vector<8x1xf32>
    %318 = vector.broadcast %c1_i32_78 : i32 to vector<8x128xi32>
    %319 = arith.cmpi eq, %222, %318 : vector<8x128xi32>
    %320 = vector.shape_cast %317 : vector<8x1xf32> to vector<8x1xf32>
    %321 = vector.broadcast %320 : vector<8x1xf32> to vector<8x128xf32>
    %322 = arith.select %319, %321, %269 : vector<8x128xi1>, vector<8x128xf32>
    %323 = arith.index_cast %c1_i32_78 : i32 to index
    %324 = memref.load %arg1[%323] : memref<5xi32, #tpu.memory_space<smem>>
    %c1_i32_86 = arith.constant 1 : i32
    %325 = arith.cmpi eq, %324, %c1_i32_86 : i32
    %326 = arith.extui %325 : i1 to i32
    %c0_i32_87 = arith.constant 0 : i32
    %327 = arith.cmpi ne, %326, %c0_i32_87 : i32
    %328 = scf.if %327 -> (vector<8x128xf32>) {
      %503 = arith.index_cast %c1_i32_78 : i32 to index
      %c0_141 = arith.constant 0 : index
      %c0_142 = arith.constant 0 : index
      %504 = vector.load %arg3[%503, %c0_141, %c0_142] : memref<5x8x1xi32, #tpu.memory_space<vmem>>, vector<1x8x1xi32>
      %505 = vector.shape_cast %504 : vector<1x8x1xi32> to vector<8x1xi32>
      %506 = vector.broadcast %505 : vector<8x1xi32> to vector<8x128xi32>
      %507 = arith.cmpi eq, %221, %506 : vector<8x128xi32>
      %c0_i32_143 = arith.constant 0 : i32
      %508 = vector.broadcast %c0_i32_143 : i32 to vector<8x128xi32>
      %509 = arith.cmpi ne, %221, %508 : vector<8x128xi32>
      %510 = arith.andi %507, %509 : vector<8x128xi1>
      %511 = vector.broadcast %cst_63 : f32 to vector<8x128xf32>
      %512 = vector.broadcast %cst_64 : f32 to vector<8x128xf32>
      %513 = arith.select %510, %511, %512 : vector<8x128xi1>, vector<8x128xf32>
      scf.yield %513 : vector<8x128xf32>
    } else {
      %503 = arith.truncf %309 : vector<8x64xf32> to vector<8x64xbf16>
      %cst_141 = arith.constant dense<0.000000e+00> : vector<8x128xf32>
      %504 = tpu.matmul %503, %7, %cst_141 {dimension_numbers = #tpu.dot_dimension_numbers<[1], [0], [0], [1], [0, 0, 1, 1], [], []>} : vector<8x64xbf16>, vector<64x128xbf16>, vector<8x128xf32> -> vector<8x128xf32>
      %505 = arith.addf %504, %14 : vector<8x128xf32>
      %cst_142 = arith.constant dense<0xFF800000> : vector<8xf32>
      %506 = vector.multi_reduction <maximumf>, %505, %cst_142 [1] : vector<8x128xf32> to vector<8xf32>
      %507 = vector.shape_cast %506 : vector<8xf32> to vector<8x1xf32>
      %508 = vector.broadcast %507 : vector<8x1xf32> to vector<8x128xf32>
      %509 = arith.cmpf oeq, %505, %508 : vector<8x128xf32>
      %c128_i32 = arith.constant 128 : i32
      %510 = vector.broadcast %c128_i32 : i32 to vector<8x128xi32>
      %511 = arith.select %509, %221, %510 : vector<8x128xi1>, vector<8x128xi32>
      %cst_143 = arith.constant dense<2147483647> : vector<8xi32>
      %512 = vector.multi_reduction <minsi>, %511, %cst_143 [1] : vector<8x128xi32> to vector<8xi32>
      %513 = vector.shape_cast %512 : vector<8xi32> to vector<8x1xi32>
      %514 = vector.broadcast %513 : vector<8x1xi32> to vector<8x128xi32>
      %515 = arith.cmpi eq, %221, %514 : vector<8x128xi32>
      %c0_i32_144 = arith.constant 0 : i32
      %516 = vector.broadcast %c0_i32_144 : i32 to vector<8x128xi32>
      %517 = arith.cmpi ne, %221, %516 : vector<8x128xi32>
      %518 = arith.andi %515, %517 : vector<8x128xi1>
      %519 = vector.broadcast %cst_63 : f32 to vector<8x128xf32>
      %520 = vector.broadcast %cst_64 : f32 to vector<8x128xf32>
      %521 = arith.select %518, %519, %520 : vector<8x128xi1>, vector<8x128xf32>
      scf.yield %521 : vector<8x128xf32>
    }
    %c1_i32_88 = arith.constant 1 : i32
    %329 = arith.cmpi eq, %324, %c1_i32_88 : i32
    %330 = arith.index_cast %c1_i32_78 : i32 to index
    %c0_89 = arith.constant 0 : index
    %c0_90 = arith.constant 0 : index
    %331 = vector.load %arg4[%330, %c0_89, %c0_90] : memref<5x8x1xf32, #tpu.memory_space<vmem>>, vector<1x8x1xf32>
    %332 = vector.shape_cast %331 : vector<1x8x1xf32> to vector<8x1xf32>
    %333 = arith.select %329, %332, %317 : vector<8x1xf32>
    %c2_i32_91 = arith.constant 2 : i32
    %334 = tpu.concatenate %328, %333, %309 in 1 : vector<8x128xf32>, vector<8x1xf32>, vector<8x64xf32> -> vector<8x193xf32>
    %335 = arith.truncf %334 : vector<8x193xf32> to vector<8x193xbf16>
    %cst_92 = arith.constant dense<0.000000e+00> : vector<8x256xf32>
    %336 = tpu.matmul %335, %5, %cst_92 {dimension_numbers = #tpu.dot_dimension_numbers<[1], [0], [0], [1], [0, 0, 1, 1], [], []>} : vector<8x193xbf16>, vector<193x256xbf16>, vector<8x256xf32> -> vector<8x256xf32>
    %337 = arith.addf %336, %11 : vector<8x256xf32>
    %338 = vector.extract_strided_slice %337 {offsets = [0, 0], sizes = [8, 64], strides = [1, 1]} : vector<8x256xf32> to vector<8x64xf32>
    %339 = arith.negf %338 : vector<8x64xf32>
    %340 = math.exp %339 : vector<8x64xf32>
    %cst_93 = arith.constant 1.000000e+00 : f32
    %341 = vector.broadcast %cst_93 : f32 to vector<8x64xf32>
    %342 = arith.addf %341, %340 : vector<8x64xf32>
    %343 = arith.divf %341, %342 : vector<8x64xf32>
    %344 = vector.extract_strided_slice %337 {offsets = [0, 64], sizes = [8, 64], strides = [1, 1]} : vector<8x256xf32> to vector<8x64xf32>
    %345 = arith.negf %344 : vector<8x64xf32>
    %346 = math.exp %345 : vector<8x64xf32>
    %cst_94 = arith.constant 1.000000e+00 : f32
    %347 = vector.broadcast %cst_94 : f32 to vector<8x64xf32>
    %348 = arith.addf %347, %346 : vector<8x64xf32>
    %349 = arith.divf %347, %348 : vector<8x64xf32>
    %350 = vector.extract_strided_slice %337 {offsets = [0, 128], sizes = [8, 64], strides = [1, 1]} : vector<8x256xf32> to vector<8x64xf32>
    %351 = math.tanh %350 : vector<8x64xf32>
    %352 = vector.extract_strided_slice %337 {offsets = [0, 192], sizes = [8, 64], strides = [1, 1]} : vector<8x256xf32> to vector<8x64xf32>
    %353 = arith.negf %352 : vector<8x64xf32>
    %354 = math.exp %353 : vector<8x64xf32>
    %cst_95 = arith.constant 1.000000e+00 : f32
    %355 = vector.broadcast %cst_95 : f32 to vector<8x64xf32>
    %356 = arith.addf %355, %354 : vector<8x64xf32>
    %357 = arith.divf %355, %356 : vector<8x64xf32>
    %358 = arith.mulf %349, %307 : vector<8x64xf32>
    %359 = arith.mulf %343, %351 : vector<8x64xf32>
    %360 = arith.addf %358, %359 : vector<8x64xf32>
    %361 = math.tanh %360 : vector<8x64xf32>
    %362 = arith.mulf %357, %361 : vector<8x64xf32>
    %c8_i32_96 = arith.constant 8 : i32
    %363 = arith.muli %c2_i32_91, %c8_i32_96 : i32
    %364 = tpu.assume_multiple %363, 8 : i32
    %365 = arith.index_cast %364 : i32 to index
    %c0_97 = arith.constant 0 : index
    %366 = vector.load %arg19[%365, %c0_97] : memref<40x64xf32, #tpu.memory_space<vmem>>, vector<8x64xf32>
    tpu.vector_store %arg19[%365, %c0_97], %362 {strides = array<i32>} : memref<40x64xf32, #tpu.memory_space<vmem>>, vector<8x64xf32>,
    %367 = arith.mulf %362, %17 : vector<8x64xf32>
    %cst_98 = arith.constant dense<0.000000e+00> : vector<8xf32>
    %368 = vector.multi_reduction <add>, %367, %cst_98 [1] : vector<8x64xf32> to vector<8xf32>
    %369 = vector.shape_cast %368 : vector<8xf32> to vector<8x1xf32>
    %370 = arith.addf %369, %20 : vector<8x1xf32>
    %371 = vector.broadcast %c2_i32_91 : i32 to vector<8x128xi32>
    %372 = arith.cmpi eq, %222, %371 : vector<8x128xi32>
    %373 = vector.shape_cast %370 : vector<8x1xf32> to vector<8x1xf32>
    %374 = vector.broadcast %373 : vector<8x1xf32> to vector<8x128xf32>
    %375 = arith.select %372, %374, %322 : vector<8x128xi1>, vector<8x128xf32>
    %376 = arith.index_cast %c2_i32_91 : i32 to index
    %377 = memref.load %arg1[%376] : memref<5xi32, #tpu.memory_space<smem>>
    %c1_i32_99 = arith.constant 1 : i32
    %378 = arith.cmpi eq, %377, %c1_i32_99 : i32
    %379 = arith.extui %378 : i1 to i32
    %c0_i32_100 = arith.constant 0 : i32
    %380 = arith.cmpi ne, %379, %c0_i32_100 : i32
    %381 = scf.if %380 -> (vector<8x128xf32>) {
      %503 = arith.index_cast %c2_i32_91 : i32 to index
      %c0_141 = arith.constant 0 : index
      %c0_142 = arith.constant 0 : index
      %504 = vector.load %arg3[%503, %c0_141, %c0_142] : memref<5x8x1xi32, #tpu.memory_space<vmem>>, vector<1x8x1xi32>
      %505 = vector.shape_cast %504 : vector<1x8x1xi32> to vector<8x1xi32>
      %506 = vector.broadcast %505 : vector<8x1xi32> to vector<8x128xi32>
      %507 = arith.cmpi eq, %221, %506 : vector<8x128xi32>
      %c0_i32_143 = arith.constant 0 : i32
      %508 = vector.broadcast %c0_i32_143 : i32 to vector<8x128xi32>
      %509 = arith.cmpi ne, %221, %508 : vector<8x128xi32>
      %510 = arith.andi %507, %509 : vector<8x128xi1>
      %511 = vector.broadcast %cst_63 : f32 to vector<8x128xf32>
      %512 = vector.broadcast %cst_64 : f32 to vector<8x128xf32>
      %513 = arith.select %510, %511, %512 : vector<8x128xi1>, vector<8x128xf32>
      scf.yield %513 : vector<8x128xf32>
    } else {
      %503 = arith.truncf %362 : vector<8x64xf32> to vector<8x64xbf16>
      %cst_141 = arith.constant dense<0.000000e+00> : vector<8x128xf32>
      %504 = tpu.matmul %503, %7, %cst_141 {dimension_numbers = #tpu.dot_dimension_numbers<[1], [0], [0], [1], [0, 0, 1, 1], [], []>} : vector<8x64xbf16>, vector<64x128xbf16>, vector<8x128xf32> -> vector<8x128xf32>
      %505 = arith.addf %504, %14 : vector<8x128xf32>
      %cst_142 = arith.constant dense<0xFF800000> : vector<8xf32>
      %506 = vector.multi_reduction <maximumf>, %505, %cst_142 [1] : vector<8x128xf32> to vector<8xf32>
      %507 = vector.shape_cast %506 : vector<8xf32> to vector<8x1xf32>
      %508 = vector.broadcast %507 : vector<8x1xf32> to vector<8x128xf32>
      %509 = arith.cmpf oeq, %505, %508 : vector<8x128xf32>
      %c128_i32 = arith.constant 128 : i32
      %510 = vector.broadcast %c128_i32 : i32 to vector<8x128xi32>
      %511 = arith.select %509, %221, %510 : vector<8x128xi1>, vector<8x128xi32>
      %cst_143 = arith.constant dense<2147483647> : vector<8xi32>
      %512 = vector.multi_reduction <minsi>, %511, %cst_143 [1] : vector<8x128xi32> to vector<8xi32>
      %513 = vector.shape_cast %512 : vector<8xi32> to vector<8x1xi32>
      %514 = vector.broadcast %513 : vector<8x1xi32> to vector<8x128xi32>
      %515 = arith.cmpi eq, %221, %514 : vector<8x128xi32>
      %c0_i32_144 = arith.constant 0 : i32
      %516 = vector.broadcast %c0_i32_144 : i32 to vector<8x128xi32>
      %517 = arith.cmpi ne, %221, %516 : vector<8x128xi32>
      %518 = arith.andi %515, %517 : vector<8x128xi1>
      %519 = vector.broadcast %cst_63 : f32 to vector<8x128xf32>
      %520 = vector.broadcast %cst_64 : f32 to vector<8x128xf32>
      %521 = arith.select %518, %519, %520 : vector<8x128xi1>, vector<8x128xf32>
      scf.yield %521 : vector<8x128xf32>
    }
    %c1_i32_101 = arith.constant 1 : i32
    %382 = arith.cmpi eq, %377, %c1_i32_101 : i32
    %383 = arith.index_cast %c2_i32_91 : i32 to index
    %c0_102 = arith.constant 0 : index
    %c0_103 = arith.constant 0 : index
    %384 = vector.load %arg4[%383, %c0_102, %c0_103] : memref<5x8x1xf32, #tpu.memory_space<vmem>>, vector<1x8x1xf32>
    %385 = vector.shape_cast %384 : vector<1x8x1xf32> to vector<8x1xf32>
    %386 = arith.select %382, %385, %370 : vector<8x1xf32>
    %c3_i32_104 = arith.constant 3 : i32
    %387 = tpu.concatenate %381, %386, %362 in 1 : vector<8x128xf32>, vector<8x1xf32>, vector<8x64xf32> -> vector<8x193xf32>
    %388 = arith.truncf %387 : vector<8x193xf32> to vector<8x193xbf16>
    %cst_105 = arith.constant dense<0.000000e+00> : vector<8x256xf32>
    %389 = tpu.matmul %388, %5, %cst_105 {dimension_numbers = #tpu.dot_dimension_numbers<[1], [0], [0], [1], [0, 0, 1, 1], [], []>} : vector<8x193xbf16>, vector<193x256xbf16>, vector<8x256xf32> -> vector<8x256xf32>
    %390 = arith.addf %389, %11 : vector<8x256xf32>
    %391 = vector.extract_strided_slice %390 {offsets = [0, 0], sizes = [8, 64], strides = [1, 1]} : vector<8x256xf32> to vector<8x64xf32>
    %392 = arith.negf %391 : vector<8x64xf32>
    %393 = math.exp %392 : vector<8x64xf32>
    %cst_106 = arith.constant 1.000000e+00 : f32
    %394 = vector.broadcast %cst_106 : f32 to vector<8x64xf32>
    %395 = arith.addf %394, %393 : vector<8x64xf32>
    %396 = arith.divf %394, %395 : vector<8x64xf32>
    %397 = vector.extract_strided_slice %390 {offsets = [0, 64], sizes = [8, 64], strides = [1, 1]} : vector<8x256xf32> to vector<8x64xf32>
    %398 = arith.negf %397 : vector<8x64xf32>
    %399 = math.exp %398 : vector<8x64xf32>
    %cst_107 = arith.constant 1.000000e+00 : f32
    %400 = vector.broadcast %cst_107 : f32 to vector<8x64xf32>
    %401 = arith.addf %400, %399 : vector<8x64xf32>
    %402 = arith.divf %400, %401 : vector<8x64xf32>
    %403 = vector.extract_strided_slice %390 {offsets = [0, 128], sizes = [8, 64], strides = [1, 1]} : vector<8x256xf32> to vector<8x64xf32>
    %404 = math.tanh %403 : vector<8x64xf32>
    %405 = vector.extract_strided_slice %390 {offsets = [0, 192], sizes = [8, 64], strides = [1, 1]} : vector<8x256xf32> to vector<8x64xf32>
    %406 = arith.negf %405 : vector<8x64xf32>
    %407 = math.exp %406 : vector<8x64xf32>
    %cst_108 = arith.constant 1.000000e+00 : f32
    %408 = vector.broadcast %cst_108 : f32 to vector<8x64xf32>
    %409 = arith.addf %408, %407 : vector<8x64xf32>
    %410 = arith.divf %408, %409 : vector<8x64xf32>
    %411 = arith.mulf %402, %360 : vector<8x64xf32>
    %412 = arith.mulf %396, %404 : vector<8x64xf32>
    %413 = arith.addf %411, %412 : vector<8x64xf32>
    %414 = math.tanh %413 : vector<8x64xf32>
    %415 = arith.mulf %410, %414 : vector<8x64xf32>
    %c8_i32_109 = arith.constant 8 : i32
    %416 = arith.muli %c3_i32_104, %c8_i32_109 : i32
    %417 = tpu.assume_multiple %416, 8 : i32
    %418 = arith.index_cast %417 : i32 to index
    %c0_110 = arith.constant 0 : index
    %419 = vector.load %arg19[%418, %c0_110] : memref<40x64xf32, #tpu.memory_space<vmem>>, vector<8x64xf32>
    tpu.vector_store %arg19[%418, %c0_110], %415 {strides = array<i32>} : memref<40x64xf32, #tpu.memory_space<vmem>>, vector<8x64xf32>,
    %420 = arith.mulf %415, %17 : vector<8x64xf32>
    %cst_111 = arith.constant dense<0.000000e+00> : vector<8xf32>
    %421 = vector.multi_reduction <add>, %420, %cst_111 [1] : vector<8x64xf32> to vector<8xf32>
    %422 = vector.shape_cast %421 : vector<8xf32> to vector<8x1xf32>
    %423 = arith.addf %422, %20 : vector<8x1xf32>
    %424 = vector.broadcast %c3_i32_104 : i32 to vector<8x128xi32>
    %425 = arith.cmpi eq, %222, %424 : vector<8x128xi32>
    %426 = vector.shape_cast %423 : vector<8x1xf32> to vector<8x1xf32>
    %427 = vector.broadcast %426 : vector<8x1xf32> to vector<8x128xf32>
    %428 = arith.select %425, %427, %375 : vector<8x128xi1>, vector<8x128xf32>
    %429 = arith.index_cast %c3_i32_104 : i32 to index
    %430 = memref.load %arg1[%429] : memref<5xi32, #tpu.memory_space<smem>>
    %c1_i32_112 = arith.constant 1 : i32
    %431 = arith.cmpi eq, %430, %c1_i32_112 : i32
    %432 = arith.extui %431 : i1 to i32
    %c0_i32_113 = arith.constant 0 : i32
    %433 = arith.cmpi ne, %432, %c0_i32_113 : i32
    %434 = scf.if %433 -> (vector<8x128xf32>) {
      %503 = arith.index_cast %c3_i32_104 : i32 to index
      %c0_141 = arith.constant 0 : index
      %c0_142 = arith.constant 0 : index
      %504 = vector.load %arg3[%503, %c0_141, %c0_142] : memref<5x8x1xi32, #tpu.memory_space<vmem>>, vector<1x8x1xi32>
      %505 = vector.shape_cast %504 : vector<1x8x1xi32> to vector<8x1xi32>
      %506 = vector.broadcast %505 : vector<8x1xi32> to vector<8x128xi32>
      %507 = arith.cmpi eq, %221, %506 : vector<8x128xi32>
      %c0_i32_143 = arith.constant 0 : i32
      %508 = vector.broadcast %c0_i32_143 : i32 to vector<8x128xi32>
      %509 = arith.cmpi ne, %221, %508 : vector<8x128xi32>
      %510 = arith.andi %507, %509 : vector<8x128xi1>
      %511 = vector.broadcast %cst_63 : f32 to vector<8x128xf32>
      %512 = vector.broadcast %cst_64 : f32 to vector<8x128xf32>
      %513 = arith.select %510, %511, %512 : vector<8x128xi1>, vector<8x128xf32>
      scf.yield %513 : vector<8x128xf32>
    } else {
      %503 = arith.truncf %415 : vector<8x64xf32> to vector<8x64xbf16>
      %cst_141 = arith.constant dense<0.000000e+00> : vector<8x128xf32>
      %504 = tpu.matmul %503, %7, %cst_141 {dimension_numbers = #tpu.dot_dimension_numbers<[1], [0], [0], [1], [0, 0, 1, 1], [], []>} : vector<8x64xbf16>, vector<64x128xbf16>, vector<8x128xf32> -> vector<8x128xf32>
      %505 = arith.addf %504, %14 : vector<8x128xf32>
      %cst_142 = arith.constant dense<0xFF800000> : vector<8xf32>
      %506 = vector.multi_reduction <maximumf>, %505, %cst_142 [1] : vector<8x128xf32> to vector<8xf32>
      %507 = vector.shape_cast %506 : vector<8xf32> to vector<8x1xf32>
      %508 = vector.broadcast %507 : vector<8x1xf32> to vector<8x128xf32>
      %509 = arith.cmpf oeq, %505, %508 : vector<8x128xf32>
      %c128_i32 = arith.constant 128 : i32
      %510 = vector.broadcast %c128_i32 : i32 to vector<8x128xi32>
      %511 = arith.select %509, %221, %510 : vector<8x128xi1>, vector<8x128xi32>
      %cst_143 = arith.constant dense<2147483647> : vector<8xi32>
      %512 = vector.multi_reduction <minsi>, %511, %cst_143 [1] : vector<8x128xi32> to vector<8xi32>
      %513 = vector.shape_cast %512 : vector<8xi32> to vector<8x1xi32>
      %514 = vector.broadcast %513 : vector<8x1xi32> to vector<8x128xi32>
      %515 = arith.cmpi eq, %221, %514 : vector<8x128xi32>
      %c0_i32_144 = arith.constant 0 : i32
      %516 = vector.broadcast %c0_i32_144 : i32 to vector<8x128xi32>
      %517 = arith.cmpi ne, %221, %516 : vector<8x128xi32>
      %518 = arith.andi %515, %517 : vector<8x128xi1>
      %519 = vector.broadcast %cst_63 : f32 to vector<8x128xf32>
      %520 = vector.broadcast %cst_64 : f32 to vector<8x128xf32>
      %521 = arith.select %518, %519, %520 : vector<8x128xi1>, vector<8x128xf32>
      scf.yield %521 : vector<8x128xf32>
    }
    %c1_i32_114 = arith.constant 1 : i32
    %435 = arith.cmpi eq, %430, %c1_i32_114 : i32
    %436 = arith.index_cast %c3_i32_104 : i32 to index
    %c0_115 = arith.constant 0 : index
    %c0_116 = arith.constant 0 : index
    %437 = vector.load %arg4[%436, %c0_115, %c0_116] : memref<5x8x1xf32, #tpu.memory_space<vmem>>, vector<1x8x1xf32>
    %438 = vector.shape_cast %437 : vector<1x8x1xf32> to vector<8x1xf32>
    %439 = arith.select %435, %438, %423 : vector<8x1xf32>
    %c4_i32_117 = arith.constant 4 : i32
    %440 = tpu.concatenate %434, %439, %415 in 1 : vector<8x128xf32>, vector<8x1xf32>, vector<8x64xf32> -> vector<8x193xf32>
    %441 = arith.truncf %440 : vector<8x193xf32> to vector<8x193xbf16>
    %cst_118 = arith.constant dense<0.000000e+00> : vector<8x256xf32>
    %442 = tpu.matmul %441, %5, %cst_118 {dimension_numbers = #tpu.dot_dimension_numbers<[1], [0], [0], [1], [0, 0, 1, 1], [], []>} : vector<8x193xbf16>, vector<193x256xbf16>, vector<8x256xf32> -> vector<8x256xf32>
    %443 = arith.addf %442, %11 : vector<8x256xf32>
    %444 = vector.extract_strided_slice %443 {offsets = [0, 0], sizes = [8, 64], strides = [1, 1]} : vector<8x256xf32> to vector<8x64xf32>
    %445 = arith.negf %444 : vector<8x64xf32>
    %446 = math.exp %445 : vector<8x64xf32>
    %cst_119 = arith.constant 1.000000e+00 : f32
    %447 = vector.broadcast %cst_119 : f32 to vector<8x64xf32>
    %448 = arith.addf %447, %446 : vector<8x64xf32>
    %449 = arith.divf %447, %448 : vector<8x64xf32>
    %450 = vector.extract_strided_slice %443 {offsets = [0, 64], sizes = [8, 64], strides = [1, 1]} : vector<8x256xf32> to vector<8x64xf32>
    %451 = arith.negf %450 : vector<8x64xf32>
    %452 = math.exp %451 : vector<8x64xf32>
    %cst_120 = arith.constant 1.000000e+00 : f32
    %453 = vector.broadcast %cst_120 : f32 to vector<8x64xf32>
    %454 = arith.addf %453, %452 : vector<8x64xf32>
    %455 = arith.divf %453, %454 : vector<8x64xf32>
    %456 = vector.extract_strided_slice %443 {offsets = [0, 128], sizes = [8, 64], strides = [1, 1]} : vector<8x256xf32> to vector<8x64xf32>
    %457 = math.tanh %456 : vector<8x64xf32>
    %458 = vector.extract_strided_slice %443 {offsets = [0, 192], sizes = [8, 64], strides = [1, 1]} : vector<8x256xf32> to vector<8x64xf32>
    %459 = arith.negf %458 : vector<8x64xf32>
    %460 = math.exp %459 : vector<8x64xf32>
    %cst_121 = arith.constant 1.000000e+00 : f32
    %461 = vector.broadcast %cst_121 : f32 to vector<8x64xf32>
    %462 = arith.addf %461, %460 : vector<8x64xf32>
    %463 = arith.divf %461, %462 : vector<8x64xf32>
    %464 = arith.mulf %455, %413 : vector<8x64xf32>
    %465 = arith.mulf %449, %457 : vector<8x64xf32>
    %466 = arith.addf %464, %465 : vector<8x64xf32>
    %467 = math.tanh %466 : vector<8x64xf32>
    %468 = arith.mulf %463, %467 : vector<8x64xf32>
    %c8_i32_122 = arith.constant 8 : i32
    %469 = arith.muli %c4_i32_117, %c8_i32_122 : i32
    %470 = tpu.assume_multiple %469, 8 : i32
    %471 = arith.index_cast %470 : i32 to index
    %c0_123 = arith.constant 0 : index
    %472 = vector.load %arg19[%471, %c0_123] : memref<40x64xf32, #tpu.memory_space<vmem>>, vector<8x64xf32>
    tpu.vector_store %arg19[%471, %c0_123], %468 {strides = array<i32>} : memref<40x64xf32, #tpu.memory_space<vmem>>, vector<8x64xf32>,
    %473 = arith.mulf %468, %17 : vector<8x64xf32>
    %cst_124 = arith.constant dense<0.000000e+00> : vector<8xf32>
    %474 = vector.multi_reduction <add>, %473, %cst_124 [1] : vector<8x64xf32> to vector<8xf32>
    %475 = vector.shape_cast %474 : vector<8xf32> to vector<8x1xf32>
    %476 = arith.addf %475, %20 : vector<8x1xf32>
    %477 = vector.broadcast %c4_i32_117 : i32 to vector<8x128xi32>
    %478 = arith.cmpi eq, %222, %477 : vector<8x128xi32>
    %479 = vector.shape_cast %476 : vector<8x1xf32> to vector<8x1xf32>
    %480 = vector.broadcast %479 : vector<8x1xf32> to vector<8x128xf32>
    %481 = arith.select %478, %480, %428 : vector<8x128xi1>, vector<8x128xf32>
    %482 = arith.index_cast %c4_i32_117 : i32 to index
    %483 = memref.load %arg1[%482] : memref<5xi32, #tpu.memory_space<smem>>
    %c1_i32_125 = arith.constant 1 : i32
    %484 = arith.cmpi eq, %483, %c1_i32_125 : i32
    %485 = arith.extui %484 : i1 to i32
    %c0_i32_126 = arith.constant 0 : i32
    %486 = arith.cmpi ne, %485, %c0_i32_126 : i32
    %487 = scf.if %486 -> (vector<8x128xf32>) {
      %503 = arith.index_cast %c4_i32_117 : i32 to index
      %c0_141 = arith.constant 0 : index
      %c0_142 = arith.constant 0 : index
      %504 = vector.load %arg3[%503, %c0_141, %c0_142] : memref<5x8x1xi32, #tpu.memory_space<vmem>>, vector<1x8x1xi32>
      %505 = vector.shape_cast %504 : vector<1x8x1xi32> to vector<8x1xi32>
      %506 = vector.broadcast %505 : vector<8x1xi32> to vector<8x128xi32>
      %507 = arith.cmpi eq, %221, %506 : vector<8x128xi32>
      %c0_i32_143 = arith.constant 0 : i32
      %508 = vector.broadcast %c0_i32_143 : i32 to vector<8x128xi32>
      %509 = arith.cmpi ne, %221, %508 : vector<8x128xi32>
      %510 = arith.andi %507, %509 : vector<8x128xi1>
      %511 = vector.broadcast %cst_63 : f32 to vector<8x128xf32>
      %512 = vector.broadcast %cst_64 : f32 to vector<8x128xf32>
      %513 = arith.select %510, %511, %512 : vector<8x128xi1>, vector<8x128xf32>
      scf.yield %513 : vector<8x128xf32>
    } else {
      %503 = arith.truncf %468 : vector<8x64xf32> to vector<8x64xbf16>
      %cst_141 = arith.constant dense<0.000000e+00> : vector<8x128xf32>
      %504 = tpu.matmul %503, %7, %cst_141 {dimension_numbers = #tpu.dot_dimension_numbers<[1], [0], [0], [1], [0, 0, 1, 1], [], []>} : vector<8x64xbf16>, vector<64x128xbf16>, vector<8x128xf32> -> vector<8x128xf32>
      %505 = arith.addf %504, %14 : vector<8x128xf32>
      %cst_142 = arith.constant dense<0xFF800000> : vector<8xf32>
      %506 = vector.multi_reduction <maximumf>, %505, %cst_142 [1] : vector<8x128xf32> to vector<8xf32>
      %507 = vector.shape_cast %506 : vector<8xf32> to vector<8x1xf32>
      %508 = vector.broadcast %507 : vector<8x1xf32> to vector<8x128xf32>
      %509 = arith.cmpf oeq, %505, %508 : vector<8x128xf32>
      %c128_i32 = arith.constant 128 : i32
      %510 = vector.broadcast %c128_i32 : i32 to vector<8x128xi32>
      %511 = arith.select %509, %221, %510 : vector<8x128xi1>, vector<8x128xi32>
      %cst_143 = arith.constant dense<2147483647> : vector<8xi32>
      %512 = vector.multi_reduction <minsi>, %511, %cst_143 [1] : vector<8x128xi32> to vector<8xi32>
      %513 = vector.shape_cast %512 : vector<8xi32> to vector<8x1xi32>
      %514 = vector.broadcast %513 : vector<8x1xi32> to vector<8x128xi32>
      %515 = arith.cmpi eq, %221, %514 : vector<8x128xi32>
      %c0_i32_144 = arith.constant 0 : i32
      %516 = vector.broadcast %c0_i32_144 : i32 to vector<8x128xi32>
      %517 = arith.cmpi ne, %221, %516 : vector<8x128xi32>
      %518 = arith.andi %515, %517 : vector<8x128xi1>
      %519 = vector.broadcast %cst_63 : f32 to vector<8x128xf32>
      %520 = vector.broadcast %cst_64 : f32 to vector<8x128xf32>
      %521 = arith.select %518, %519, %520 : vector<8x128xi1>, vector<8x128xf32>
      scf.yield %521 : vector<8x128xf32>
    }
    %c1_i32_127 = arith.constant 1 : i32
    %488 = arith.cmpi eq, %483, %c1_i32_127 : i32
    %489 = arith.index_cast %c4_i32_117 : i32 to index
    %c0_128 = arith.constant 0 : index
    %c0_129 = arith.constant 0 : index
    %490 = vector.load %arg4[%489, %c0_128, %c0_129] : memref<5x8x1xf32, #tpu.memory_space<vmem>>, vector<1x8x1xf32>
    %491 = vector.shape_cast %490 : vector<1x8x1xf32> to vector<8x1xf32>
    %492 = arith.select %488, %491, %476 : vector<8x1xf32>
    %c5_i32_130 = arith.constant 5 : i32
    %c0_131 = arith.constant 0 : index
    %c0_132 = arith.constant 0 : index
    %493 = vector.load %arg17[%c0_131, %c0_132] : memref<8x128xf32, #tpu.memory_space<vmem>>, vector<8x128xf32>
    tpu.vector_store %arg17[%c0_131, %c0_132], %481 {strides = array<i32>} : memref<8x128xf32, #tpu.memory_space<vmem>>, vector<8x128xf32>,
    %c0_133 = arith.constant 0 : index
    %c0_134 = arith.constant 0 : index
    %494 = vector.load %arg19[%c0_133, %c0_134] : memref<40x64xf32, #tpu.memory_space<vmem>>, vector<40x64xf32>
    %495 = arith.truncf %494 : vector<40x64xf32> to vector<40x64xbf16>
    %cst_135 = arith.constant dense<0.000000e+00> : vector<40x128xf32>
    %496 = tpu.matmul %495, %7, %cst_135 {dimension_numbers = #tpu.dot_dimension_numbers<[1], [0], [0], [1], [0, 0, 1, 1], [], []>} : vector<40x64xbf16>, vector<64x128xbf16>, vector<40x128xf32> -> vector<40x128xf32>
    %c0_136 = arith.constant 0 : index
    %c0_137 = arith.constant 0 : index
    %497 = vector.load %arg13[%c0_136, %c0_137] : memref<1x128xf32, #tpu.memory_space<vmem>>, vector<1x128xf32>
    %498 = vector.shape_cast %497 : vector<1x128xf32> to vector<1x128xf32>
    %499 = vector.broadcast %498 : vector<1x128xf32> to vector<40x128xf32>
    %500 = arith.addf %496, %499 : vector<40x128xf32>
    %501 = vector.shape_cast %500 : vector<40x128xf32> to vector<5x8x128xf32>
    %c0_138 = arith.constant 0 : index
    %c0_139 = arith.constant 0 : index
    %c0_140 = arith.constant 0 : index
    %502 = vector.load %arg16[%c0_138, %c0_139, %c0_140] : memref<5x8x128xf32, #tpu.memory_space<vmem>>, vector<5x8x128xf32>
    tpu.vector_store %arg16[%c0_138, %c0_139, %c0_140], %501 {strides = array<i32>} : memref<5x8x128xf32, #tpu.memory_space<vmem>>, vector<5x8x128xf32>,
    return
  }
  func.func @transform_0(%arg0: i32) -> i32 {
    %c0_i32 = arith.constant 0 : i32
    %c0_i32_0 = arith.constant 0 : i32
    return %c0_i32 : i32
  }
  func.func @transform_1(%arg0: i32) -> (i32, i32, i32) {
    %c0_i32 = arith.constant 0 : i32
    %c0_i32_0 = arith.constant 0 : i32
    %c0_i32_1 = arith.constant 0 : i32
    return %c0_i32, %arg0, %c0_i32_0 : i32, i32, i32
  }
  func.func @transform_2(%arg0: i32) -> (i32, i32, i32) {
    %c0_i32 = arith.constant 0 : i32
    %c0_i32_0 = arith.constant 0 : i32
    %c0_i32_1 = arith.constant 0 : i32
    return %c0_i32, %arg0, %c0_i32_0 : i32, i32, i32
  }
  func.func @transform_3(%arg0: i32) -> (i32, i32, i32) {
    %c0_i32 = arith.constant 0 : i32
    %c0_i32_0 = arith.constant 0 : i32
    %c0_i32_1 = arith.constant 0 : i32
    return %c0_i32, %arg0, %c0_i32_0 : i32, i32, i32
  }
  func.func @transform_4(%arg0: i32) -> (i32, i32) {
    %c0_i32 = arith.constant 0 : i32
    %c0_i32_0 = arith.constant 0 : i32
    return %arg0, %c0_i32 : i32, i32
  }
  func.func @transform_5(%arg0: i32) -> (i32, i32) {
    %c0_i32 = arith.constant 0 : i32
    %c0_i32_0 = arith.constant 0 : i32
    return %arg0, %c0_i32 : i32, i32
  }
  func.func @transform_6(%arg0: i32) -> (i32, i32) {
    %c0_i32 = arith.constant 0 : i32
    %c0_i32_0 = arith.constant 0 : i32
    %c0_i32_1 = arith.constant 0 : i32
    return %c0_i32, %c0_i32_0 : i32, i32
  }
  func.func @transform_7(%arg0: i32) -> (i32, i32) {
    %c0_i32 = arith.constant 0 : i32
    %c0_i32_0 = arith.constant 0 : i32
    %c0_i32_1 = arith.constant 0 : i32
    return %c0_i32, %c0_i32_0 : i32, i32
  }
  func.func @transform_8(%arg0: i32) -> (i32, i32) {
    %c0_i32 = arith.constant 0 : i32
    %c0_i32_0 = arith.constant 0 : i32
    %c0_i32_1 = arith.constant 0 : i32
    return %c0_i32, %c0_i32_0 : i32, i32
  }
  func.func @transform_9(%arg0: i32) -> (i32, i32) {
    %c0_i32 = arith.constant 0 : i32
    %c0_i32_0 = arith.constant 0 : i32
    %c0_i32_1 = arith.constant 0 : i32
    return %c0_i32, %c0_i32_0 : i32, i32
  }
  func.func @transform_10(%arg0: i32) -> (i32, i32) {
    %c0_i32 = arith.constant 0 : i32
    %c0_i32_0 = arith.constant 0 : i32
    %c0_i32_1 = arith.constant 0 : i32
    return %c0_i32, %c0_i32_0 : i32, i32
  }
  func.func @transform_11(%arg0: i32) -> (i32, i32) {
    %c0_i32 = arith.constant 0 : i32
    %c0_i32_0 = arith.constant 0 : i32
    %c0_i32_1 = arith.constant 0 : i32
    return %c0_i32, %c0_i32_0 : i32, i32
  }
  func.func @transform_12(%arg0: i32) -> (i32, i32) {
    %c0_i32 = arith.constant 0 : i32
    %c0_i32_0 = arith.constant 0 : i32
    %c0_i32_1 = arith.constant 0 : i32
    return %c0_i32, %c0_i32_0 : i32, i32
  }
  func.func @transform_13(%arg0: i32) -> (i32, i32) {
    %c0_i32 = arith.constant 0 : i32
    %c0_i32_0 = arith.constant 0 : i32
    %c0_i32_1 = arith.constant 0 : i32
    return %c0_i32, %c0_i32_0 : i32, i32
  }
  func.func @transform_14(%arg0: i32) -> (i32, i32) {
    %c0_i32 = arith.constant 0 : i32
    %c0_i32_0 = arith.constant 0 : i32
    %c0_i32_1 = arith.constant 0 : i32
    return %c0_i32, %c0_i32_0 : i32, i32
  }
  func.func @transform_15(%arg0: i32) -> (i32, i32, i32) {
    %c0_i32 = arith.constant 0 : i32
    %c0_i32_0 = arith.constant 0 : i32
    %c0_i32_1 = arith.constant 0 : i32
    return %c0_i32, %arg0, %c0_i32_0 : i32, i32, i32
  }
  func.func @transform_16(%arg0: i32) -> (i32, i32) {
    %c0_i32 = arith.constant 0 : i32
    %c0_i32_0 = arith.constant 0 : i32
    return %arg0, %c0_i32 : i32, i32
  }
}

</mosaic_0001>

<llo_original>
// kernel: tpu_custom_call.1
$region0: #{tpu_custom_call.1}
  #allocation0 [shape = 'u32[]', space=smem, size = 0x4, offset = 0x4, fixed_abs, tag = 'smem constant byte address 0x4 - core index']
  #allocation1 [shape = 'u32[144,128]{1,0:T(1,128)}', space=vmem, size = 0x12000, scoped, tag = 'internal scratch']
  #allocation2 [shape = 'f32[48,128]{1,0:T(8,128)}', space=vmem, size = 0x6000, scoped, tag = 'scratch operand']
  #allocation3 [shape = 'f32[40,64]{1,0:T(8,128)}', space=vmem, size = 0x5000, scoped, tag = 'scratch operand']
  #allocation4 [shape = 'f32[1,1]{1,0:T(1,128)S(1)}', space=vmem, size = 0x200, scoped, tag = 'scoped memory for tpu_custom_call.1']
  %s0 = inlined_call_operand.vmem [shape: s32[5], index: 0, kind: input, shape index: {}]
  %s1 = inlined_call_operand.vmem [shape: f32[6,8,19], index: 1, kind: input, shape index: {}]
  %s2 = inlined_call_operand.vmem [shape: s32[5,8,1], index: 2, kind: input, shape index: {}]
  %s3 = inlined_call_operand.vmem [shape: f32[5,8,1], index: 3, kind: input, shape index: {}]
  %s4 = inlined_call_operand.vmem [shape: f32[8,128], index: 4, kind: input, shape index: {}]
  %s5 = inlined_call_operand.vmem [shape: f32[8,1], index: 5, kind: input, shape index: {}]
  %s6 = inlined_call_operand.hbm [shape: f32[19,128], index: 6, kind: input, shape index: {}]
  %s7 = inlined_call_operand.hbm [shape: f32[32,128], index: 7, kind: input, shape index: {}]
  %s8 = inlined_call_operand.vmem [shape: f32[1,128], index: 8, kind: input, shape index: {}]
  %s9 = inlined_call_operand.hbm [shape: f32[193,256], index: 9, kind: input, shape index: {}]
  %s10 = inlined_call_operand.vmem [shape: f32[1,256], index: 10, kind: input, shape index: {}]
  %s11 = inlined_call_operand.vmem [shape: f32[64,128], index: 11, kind: input, shape index: {}]
  %s12 = inlined_call_operand.vmem [shape: f32[1,128], index: 12, kind: input, shape index: {}]
  %s13 = inlined_call_operand.vmem [shape: f32[1,64], index: 13, kind: input, shape index: {}]
  %s14 = inlined_call_operand.<no memory space> [shape: f32[1,1], index: 14, kind: input, shape index: {}]
  %s15 = inlined_call_operand.hbm [shape: f32[5,8,128], index: 15, kind: output, shape index: {0}]
  %s16 = inlined_call_operand.hbm [shape: f32[8,128], index: 16, kind: output, shape index: {1}]
  %17 = xla_tuple %s15, %s16
  %s18 = sld [smem:[#allocation0]]
  $region126: #{tpu_custom_call.1} parent=0
    _
  %s20 = ssub.s32 1, %s18
  %s21 = scalar_select 0, %s20, %s18
  %v22 = vstv %s14
  %23 = vst [vmem:[#allocation4] sm:$0x1] %v22
  $region1: #{tpu_custom_call.1} parent=0
    #allocation5 [shape = 'u8[512]{0}', space=smem, size = 0x200, scoped, tag = 'input window, operand 0, single buffered']
    #allocation6 [shape = 's32[1]{0}', space=sflag, size = 0x4, scoped, tag = 'scoped memory for tpu_custom_call.1']
    #allocation7 [shape = 's32[1]{0}', space=sflag, size = 0x4, scoped, tag = 'scoped memory for tpu_custom_call.1']
    #allocation8 [shape = 's32[1]{0}', space=sflag, size = 0x4, scoped, tag = 'scoped memory for tpu_custom_call.1']
    #allocation9 [shape = 'u8[12288]{0}', space=vmem, size = 0x3000, scoped, tag = 'input window, operand 6, single buffered']
    #allocation10 [shape = 'u8[16384]{0}', space=vmem, size = 0x4000, scoped, tag = 'input window, operand 7, single buffered']
    #allocation11 [shape = 's32[1]{0}', space=sflag, size = 0x4, scoped, tag = 'scoped memory for tpu_custom_call.1']
    #allocation12 [shape = 'u8[204800]{0}', space=vmem, size = 0x32000, scoped, tag = 'input window, operand 9, single buffered']
    #allocation13 [shape = 'u8[20480]{0}', space=vmem, size = 0x5000, scoped, tag = 'output window, operand 0, single buffered']
    #allocation14 [shape = 'u8[4096]{0}', space=vmem, size = 0x1000, scoped, tag = 'output window, operand 1, single buffered']
    #allocation15 [shape = 's32[1]{0}', space=sflag, size = 0x4, scoped, tag = 'scoped memory for tpu_custom_call.1']
    %24 = vsyncpa [#allocation8], 0
    %25 = vsyncpa [#allocation6], 0
    %26 = vsyncpa [#allocation11], 0
    %27 = vsyncpa [#allocation7], 0
    %28 = vsyncpa [#allocation15], 0
    // Predicated region
    $region2: #{tpu_custom_call.1} parent=1 // pred_check
      _
    $region3: #{tpu_custom_call.1} parent=1 // pred_check_branch
      %30 = sbr.rel (0) target = $region5
    $region4: #{tpu_custom_call.1} parent=1 // pred_region
      %s32 = ssub.s32 16, 16
      %33 = vsyncadd [#allocation8], %s32
      %s35 = sshll.u32 %s0, 4
      %s36 = int_to_ptr.vmem [resolvable:$true] %s35
      %38 = dma.vmem_to_smem %s36, 16, [#allocation5], [#allocation8]
    $region5: #{tpu_custom_call.1} parent=1 // pred_fallthru
      _
    // Predicated region
    $region6: #{tpu_custom_call.1} parent=1 // pred_check
      _
    $region7: #{tpu_custom_call.1} parent=1 // pred_check_branch
      %40 = sbr.rel (0) target = $region9
    $region8: #{tpu_custom_call.1} parent=1 // pred_region
      _
    $region9: #{tpu_custom_call.1} parent=1 // pred_fallthru
      _
    // Predicated region
    $region10: #{tpu_custom_call.1} parent=1 // pred_check
      _
    $region11: #{tpu_custom_call.1} parent=1 // pred_check_branch
      %42 = sbr.rel (0) target = $region13
    $region12: #{tpu_custom_call.1} parent=1 // pred_region
      _
    $region13: #{tpu_custom_call.1} parent=1 // pred_fallthru
      _
    // Predicated region
    $region14: #{tpu_custom_call.1} parent=1 // pred_check
      _
    $region15: #{tpu_custom_call.1} parent=1 // pred_check_branch
      %44 = sbr.rel (0) target = $region17
    $region16: #{tpu_custom_call.1} parent=1 // pred_region
      _
    $region17: #{tpu_custom_call.1} parent=1 // pred_fallthru
      _
    // Predicated region
    $region18: #{tpu_custom_call.1} parent=1 // pred_check
      _
    $region19: #{tpu_custom_call.1} parent=1 // pred_check_branch
      %46 = sbr.rel (0) target = $region21
    $region20: #{tpu_custom_call.1} parent=1 // pred_region
      _
    $region21: #{tpu_custom_call.1} parent=1 // pred_fallthru
      _
    // Predicated region
    $region22: #{tpu_custom_call.1} parent=1 // pred_check
      _
    $region23: #{tpu_custom_call.1} parent=1 // pred_check_branch
      %48 = sbr.rel (0) target = $region25
    $region24: #{tpu_custom_call.1} parent=1 // pred_region
      _
    $region25: #{tpu_custom_call.1} parent=1 // pred_fallthru
      _
    // Predicated region
    $region26: #{tpu_custom_call.1} parent=1 // pred_check
      _
    $region27: #{tpu_custom_call.1} parent=1 // pred_check_branch
      %50 = sbr.rel (0) target = $region29
    $region28: #{tpu_custom_call.1} parent=1 // pred_region
      %s52 = ssub.s32 384, 384
      %53 = vsyncadd [#allocation6], %s52
      %s54 = sshll.u32 [#allocation9], 4
      %s55 = int_to_ptr.vmem [resolvable:$true] %s54
      %60 = dma.hbm_to_vmem [thread:$0]  %s6, 384, %s55, [#allocation6], 128, 128, 8
    $region29: #{tpu_custom_call.1} parent=1 // pred_fallthru
      _
    // Predicated region
    $region30: #{tpu_custom_call.1} parent=1 // pred_check
      _
    $region31: #{tpu_custom_call.1} parent=1 // pred_check_branch
      %62 = sbr.rel (0) target = $region33
    $region32: #{tpu_custom_call.1} parent=1 // pred_region
      %s64 = ssub.s32 512, 512
      %65 = vsyncadd [#allocation11], %s64
      %s66 = sshll.u32 [#allocation10], 4
      %s67 = int_to_ptr.vmem [resolvable:$true] %s66
      %72 = dma.hbm_to_vmem [thread:$0]  %s7, 512, %s67, [#allocation11], 128, 128, 8
    $region33: #{tpu_custom_call.1} parent=1 // pred_fallthru
      _
    // Predicated region
    $region34: #{tpu_custom_call.1} parent=1 // pred_check
      _
    $region35: #{tpu_custom_call.1} parent=1 // pred_check_branch
      %74 = sbr.rel (0) target = $region37
    $region36: #{tpu_custom_call.1} parent=1 // pred_region
      _
    $region37: #{tpu_custom_call.1} parent=1 // pred_fallthru
      _
    // Predicated region
    $region38: #{tpu_custom_call.1} parent=1 // pred_check
      _
    $region39: #{tpu_custom_call.1} parent=1 // pred_check_branch
      %76 = sbr.rel (0) target = $region41
    $region40: #{tpu_custom_call.1} parent=1 // pred_region
      %s78 = ssub.s32 6400, 6400
      %79 = vsyncadd [#allocation11], %s78
      %s80 = sshll.u32 [#allocation12], 4
      %s81 = int_to_ptr.vmem [resolvable:$true] %s80
      %86 = dma.hbm_to_vmem [thread:$0]  %s9, 6400, %s81, [#allocation11], 256, 256, 16
    $region41: #{tpu_custom_call.1} parent=1 // pred_fallthru
      _
    // Predicated region
    $region42: #{tpu_custom_call.1} parent=1 // pred_check
      _
    $region43: #{tpu_custom_call.1} parent=1 // pred_check_branch
      %88 = sbr.rel (0) target = $region45
    $region44: #{tpu_custom_call.1} parent=1 // pred_region
      _
    $region45: #{tpu_custom_call.1} parent=1 // pred_fallthru
      _
    // Predicated region
    $region46: #{tpu_custom_call.1} parent=1 // pred_check
      _
    $region47: #{tpu_custom_call.1} parent=1 // pred_check_branch
      %90 = sbr.rel (0) target = $region49
    $region48: #{tpu_custom_call.1} parent=1 // pred_region
      _
    $region49: #{tpu_custom_call.1} parent=1 // pred_fallthru
      _
    // Predicated region
    $region50: #{tpu_custom_call.1} parent=1 // pred_check
      _
    $region51: #{tpu_custom_call.1} parent=1 // pred_check_branch
      %92 = sbr.rel (0) target = $region53
    $region52: #{tpu_custom_call.1} parent=1 // pred_region
      _
    $region53: #{tpu_custom_call.1} parent=1 // pred_fallthru
      _
    // Predicated region
    $region54: #{tpu_custom_call.1} parent=1 // pred_check
      _
    $region55: #{tpu_custom_call.1} parent=1 // pred_check_branch
      %94 = sbr.rel (0) target = $region57
    $region56: #{tpu_custom_call.1} parent=1 // pred_region
      _
    $region57: #{tpu_custom_call.1} parent=1 // pred_fallthru
      _
    // Predicated region
    $region58: #{tpu_custom_call.1} parent=1 // pred_check
      _
    $region59: #{tpu_custom_call.1} parent=1 // pred_check_branch
      %96 = sbr.rel (0) target = $region61
    $region60: #{tpu_custom_call.1} parent=1 // pred_region
      _
    $region61: #{tpu_custom_call.1} parent=1 // pred_fallthru
      _
    // Predicated region
    $region62: #{tpu_custom_call.1} parent=1 // pred_check
      _
    $region63: #{tpu_custom_call.1} parent=1 // pred_check_branch
      %98 = sbr.rel (0) target = $region65
    $region64: #{tpu_custom_call.1} parent=1 // pred_region
      %99 = dma.done [#allocation8], 16
    $region65: #{tpu_custom_call.1} parent=1 // pred_fallthru
      _
    // Predicated region
    $region66: #{tpu_custom_call.1} parent=1 // pred_check
      _
    $region67: #{tpu_custom_call.1} parent=1 // pred_check_branch
      %101 = sbr.rel (0) target = $region69
    $region68: #{tpu_custom_call.1} parent=1 // pred_region
      %102 = dma.done [#allocation6], 384
    $region69: #{tpu_custom_call.1} parent=1 // pred_fallthru
      _
    // Predicated region
    $region70: #{tpu_custom_call.1} parent=1 // pred_check
      _
    $region71: #{tpu_custom_call.1} parent=1 // pred_check_branch
      %104 = sbr.rel (0) target = $region73
    $region72: #{tpu_custom_call.1} parent=1 // pred_region
      %105 = dma.done [#allocation11], 512
    $region73: #{tpu_custom_call.1} parent=1 // pred_fallthru
      _
    // Predicated region
    $region74: #{tpu_custom_call.1} parent=1 // pred_check
      _
    $region75: #{tpu_custom_call.1} parent=1 // pred_check_branch
      %107 = sbr.rel (0) target = $region77
    $region76: #{tpu_custom_call.1} parent=1 // pred_region
      %108 = dma.done [#allocation11], 6400
    $region77: #{tpu_custom_call.1} parent=1 // pred_fallthru
      _
    %109 = sfence
    %v111 = vld [vmem:[#allocation9] sm:$0xff]
    %v112 = vld [vmem:[#allocation9 + $0x8] sm:$0xff]
    %v113 = vld [vmem:[#allocation9 + $0x10] sm:$0x7]
    %v114 = vpack.c.bf16 %v112, %v111
    %v115 = vpack.c.bf16 %v113, %v113
    %v116 = vld [vmem:[#allocation10] sm:$0xff]
    %v117 = vld [vmem:[#allocation10 + $0x8] sm:$0xff]
    %v118 = vld [vmem:[#allocation10 + $0x10] sm:$0xff]
    %v119 = vld [vmem:[#allocation10 + $0x18] sm:$0xff]
    %v120 = vpack.c.bf16 %v117, %v116
    %v121 = vpack.c.bf16 %v119, %v118
    %v122 = vld [vmem:[#allocation12] sm:$0xff]
    %v123 = vld [vmem:[#allocation12 + $0x8] sm:$0xff]
    %v124 = vld [vmem:[#allocation12 + $0x10] sm:$0xff]
    %v125 = vld [vmem:[#allocation12 + $0x18] sm:$0xff]
    %v126 = vld [vmem:[#allocation12 + $0x20] sm:$0xff]
    %v127 = vld [vmem:[#allocation12 + $0x28] sm:$0xff]
    %v128 = vld [vmem:[#allocation12 + $0x30] sm:$0xff]
    %v129 = vld [vmem:[#allocation12 + $0x38] sm:$0xff]
    %v130 = vld [vmem:[#allocation12 + $0x40] sm:$0xff]
    %v131 = vld [vmem:[#allocation12 + $0x48] sm:$0xff]
    %v132 = vld [vmem:[#allocation12 + $0x50] sm:$0xff]
    %v133 = vld [vmem:[#allocation12 + $0x58] sm:$0xff]
    %v134 = vld [vmem:[#allocation12 + $0x60] sm:$0xff]
    %v135 = vld [vmem:[#allocation12 + $0x68] sm:$0xff]
    %v136 = vld [vmem:[#allocation12 + $0x70] sm:$0xff]
    %v137 = vld [vmem:[#allocation12 + $0x78] sm:$0xff]
    %v138 = vld [vmem:[#allocation12 + $0x80] sm:$0xff]
    %v139 = vld [vmem:[#allocation12 + $0x88] sm:$0xff]
    %v140 = vld [vmem:[#allocation12 + $0x90] sm:$0xff]
    %v141 = vld [vmem:[#allocation12 + $0x98] sm:$0xff]
    %v142 = vld [vmem:[#allocation12 + $0xa0] sm:$0xff]
    %v143 = vld [vmem:[#allocation12 + $0xa8] sm:$0xff]
    %v144 = vld [vmem:[#allocation12 + $0xb0] sm:$0xff]
    %v145 = vld [vmem:[#allocation12 + $0xb8] sm:$0xff]
    %v146 = vld [vmem:[#allocation12 + $0xc0] sm:$0xff]
    %v147 = vld [vmem:[#allocation12 + $0xc8] sm:$0xff]
    %v148 = vld [vmem:[#allocation12 + $0xd0] sm:$0xff]
    %v149 = vld [vmem:[#allocation12 + $0xd8] sm:$0xff]
    %v150 = vld [vmem:[#allocation12 + $0xe0] sm:$0xff]
    %v151 = vld [vmem:[#allocation12 + $0xe8] sm:$0xff]
    %v152 = vld [vmem:[#allocation12 + $0xf0] sm:$0xff]
    %v153 = vld [vmem:[#allocation12 + $0xf8] sm:$0xff]
    %v154 = vld [vmem:[#allocation12 + $0x100] sm:$0xff]
    %v155 = vld [vmem:[#allocation12 + $0x108] sm:$0xff]
    %v156 = vld [vmem:[#allocation12 + $0x110] sm:$0xff]
    %v157 = vld [vmem:[#allocation12 + $0x118] sm:$0xff]
    %v158 = vld [vmem:[#allocation12 + $0x120] sm:$0xff]
    %v159 = vld [vmem:[#allocation12 + $0x128] sm:$0xff]
    %v160 = vld [vmem:[#allocation12 + $0x130] sm:$0xff]
    %v161 = vld [vmem:[#allocation12 + $0x138] sm:$0xff]
    %v162 = vld [vmem:[#allocation12 + $0x140] sm:$0xff]
    %v163 = vld [vmem:[#allocation12 + $0x148] sm:$0xff]
    %v164 = vld [vmem:[#allocation12 + $0x150] sm:$0xff]
    %v165 = vld [vmem:[#allocation12 + $0x158] sm:$0xff]
    %v166 = vld [vmem:[#allocation12 + $0x160] sm:$0xff]
    %v167 = vld [vmem:[#allocation12 + $0x168] sm:$0xff]
    %v168 = vld [vmem:[#allocation12 + $0x170] sm:$0xff]
    %v169 = vld [vmem:[#allocation12 + $0x178] sm:$0xff]
    %v170 = vld [vmem:[#allocation12 + $0x180] sm:$0x1]
    %v171 = vld [vmem:[#allocation12 + $0x188] sm:$0x1]
    %v172 = vpack.c.bf16 %v124, %v122
    %v173 = vpack.c.bf16 %v125, %v123
    %v174 = vpack.c.bf16 %v128, %v126
    %v175 = vpack.c.bf16 %v129, %v127
    %v176 = vpack.c.bf16 %v132, %v130
    %v177 = vpack.c.bf16 %v133, %v131
    %v178 = vpack.c.bf16 %v136, %v134
    %v179 = vpack.c.bf16 %v137, %v135
    %v180 = vpack.c.bf16 %v140, %v138
    %v181 = vpack.c.bf16 %v141, %v139
    %v182 = vpack.c.bf16 %v144, %v142
    %v183 = vpack.c.bf16 %v145, %v143
    %v184 = vpack.c.bf16 %v148, %v146
    %v185 = vpack.c.bf16 %v149, %v147
    %v186 = vpack.c.bf16 %v152, %v150
    %v187 = vpack.c.bf16 %v153, %v151
    %v188 = vpack.c.bf16 %v156, %v154
    %v189 = vpack.c.bf16 %v157, %v155
    %v190 = vpack.c.bf16 %v160, %v158
    %v191 = vpack.c.bf16 %v161, %v159
    %v192 = vpack.c.bf16 %v164, %v162
    %v193 = vpack.c.bf16 %v165, %v163
    %v194 = vpack.c.bf16 %v168, %v166
    %v195 = vpack.c.bf16 %v169, %v167
    %v196 = vpack.c.bf16 %v170, %v170
    %v197 = vpack.c.bf16 %v171, %v171
    %v198 = vld [vmem:[%s11] sm:$0xff]
    %v199 = vld [vmem:[%s11 + $0x8] sm:$0xff]
    %v200 = vld [vmem:[%s11 + $0x10] sm:$0xff]
    %v201 = vld [vmem:[%s11 + $0x18] sm:$0xff]
    %v202 = vld [vmem:[%s11 + $0x20] sm:$0xff]
    %v203 = vld [vmem:[%s11 + $0x28] sm:$0xff]
    %v204 = vld [vmem:[%s11 + $0x30] sm:$0xff]
    %v205 = vld [vmem:[%s11 + $0x38] sm:$0xff]
    %v206 = vpack.c.bf16 %v199, %v198
    %v207 = vpack.c.bf16 %v201, %v200
    %v208 = vpack.c.bf16 %v203, %v202
    %v209 = vpack.c.bf16 %v205, %v204
    %v210 = vld [vmem:[%s8] sm:$0x1]
    %v211 = vld [vmem:[%s10] sm:$0x3]
    %v213 = vlaneseq
    %v214 = vshrl.u32 %v213, 7
    %v215 = vsub.s32 0, %v214
    %v216 = vrot.slane %v211, %v215
    %v217 = vlaneseq
    %v218 = vshrl.u32 %v217, 7
    %v219 = vsub.s32 1, %v218
    %v220 = vrot.slane %v211, %v219
    %v223 = vld [vmem:[%s12] sm:$0x1]
    %v225 = vlaneseq
    %v226 = vshrl.u32 %v225, 7
    %v227 = vsub.s32 0, %v226
    %v228 = vrot.slane %v223, %v227
    %v230 = vld [vmem:[%s13] sm:$0x1]
    %v232 = vlaneseq
    %v233 = vshrl.u32 %v232, 7
    %v234 = vsub.s32 0, %v233
    %v235 = vrot.slane %v230, %v234
    %v236 = vld [vmem:[#allocation4] sm:$0x1]
    %v238 = vlaneseq
    %v239 = vshrl.u32 %v238, 7
    %v240 = vsub.s32 0, %v239
    %v241 = vrot.slane %v236, %v240
    %v243 = vld [vmem:[%s1] sm:$0xff]
    %v244 = vld [vmem:[%s1 + $0x8] sm:$0xff]
    %v245 = vld [vmem:[%s1 + $0x10] sm:$0xff]
    %v246 = vld [vmem:[%s1 + $0x18] sm:$0xff]
    %v247 = vld [vmem:[%s1 + $0x20] sm:$0xff]
    %v248 = vld [vmem:[%s1 + $0x28] sm:$0xff]
    %v249 = vpack.c.bf16 %v244, %v243
    %v250 = vpack.c.bf16 %v246, %v245
    %v251 = vpack.c.bf16 %v248, %v247
    %v253 = vlaneseq
    %v254 = vshrl.u32 %v253, 7
    %v255 = vsub.s32 0, %v254
    %v256 = vrot.slane %v210, %v255
    %vm258 = vcmask 154624
    %v260 = vsel %vm258, %v249, 0
    %v263 = vsel %vm258, %v250, 0
    %v266 = vsel %vm258, %v251, 0
    %vm268 = vcmask 1040384
    %vm269 = vcmask 1041408
    %v270 = vsel %vm268, 4294967295, 65535
    %v271 = vsel %vm269, %v270, 0
    %v273 = vand.u32 %v115, %v271
    %275 = vmatprep.subr.bf16.mxu0 0
    %276 = vmatpush1.bf16.msra.mxu0 %v114
    %277 = vmatprep.subr.bf16.mxu0 0
    %278 = vmatpush1.bf16.msra.mxu0 %v273
    %279 = vmatprep.subr.bf16.mxu0 0
    %280 = vmatpush1.bf16.msra.mxu0 0
    %281 = vmatprep.subr.bf16.mxu0 0
    %282 = vmatpush1.bf16.msra.mxu0 0
    %283 = vmatprep.subr.bf16.mxu0 0
    %284 = vmatpush1.bf16.msra.mxu0 0
    %285 = vmatprep.subr.bf16.mxu0 0
    %286 = vmatpush1.bf16.msra.mxu0 0
    %287 = vmatprep.subr.bf16.mxu0 0
    %288 = vmatpush1.bf16.msra.mxu0 0
    %289 = vmatprep.subr.bf16.mxu0 0
    %290 = vmatpush1.bf16.msra.mxu0 0
    %291 = vmatprep.subr.bf16.mxu0 0
    %292 = vmatpush1.bf16.msra.mxu0 0
    %293 = vmatprep.subr.bf16.mxu0 0
    %294 = vmatpush1.bf16.msra.mxu0 0
    %295 = vmatprep.subr.bf16.mxu0 0
    %296 = vmatpush1.bf16.msra.mxu0 0
    %297 = vmatprep.subr.bf16.mxu0 0
    %298 = vmatpush1.bf16.msra.mxu0 0
    %299 = vmatprep.subr.bf16.mxu0 0
    %300 = vmatpush1.bf16.msra.mxu0 0
    %301 = vmatprep.subr.bf16.mxu0 0
    %302 = vmatpush1.bf16.msra.mxu0 0
    %303 = vmatprep.subr.bf16.mxu0 0
    %304 = vmatpush1.bf16.msra.mxu0 0
    %305 = vmatprep.subr.bf16.mxu0 0
    %306 = vmatpush1.bf16.msra.mxu0 0
    %307 = vmatprep.mubr.bf16.mxu0 0
    %308 = vmatmul.mubr.bf16.gmra.mrb[0].mxu0 %v260
    %v309 = vpop.f32.mrb[0].mxu0
    %v310 = vadd.f32 %v256, %v309
    %v311 = vpop.f32.mrb[0].mxu0
    %v312 = vpop.f32.mrb[0].mxu0
    %v313 = vadd.f32 %v256, %v312
    %v314 = vpop.f32.mrb[0].mxu0
    %315 = vmatprep.mubr.bf16.mxu0 0
    %316 = vmatmul.mubr.bf16.gmra.mrb[0].mxu0 %v263
    %v317 = vpop.f32.mrb[0].mxu0
    %v318 = vadd.f32 %v256, %v317
    %v319 = vpop.f32.mrb[0].mxu0
    %v320 = vpop.f32.mrb[0].mxu0
    %v321 = vadd.f32 %v256, %v320
    %v322 = vpop.f32.mrb[0].mxu0
    %323 = vmatprep.mubr.bf16.mxu0 0
    %324 = vmatmul.mubr.bf16.gmra.mrb[0].mxu0 %v266
    %v325 = vpop.f32.mrb[0].mxu0
    %v326 = vadd.f32 %v256, %v325
    %v327 = vpop.f32.mrb[0].mxu0
    %v328 = vpop.f32.mrb[0].mxu0
    %v329 = vadd.f32 %v256, %v328
    %v330 = vpop.f32.mrb[0].mxu0
    %331 = vdwg.mxu0
    %332 = vst [vmem:[#allocation2] sm:$0xff] %v310
    %333 = vst [vmem:[#allocation2 + $0x8] sm:$0xff] %v313
    %334 = vst [vmem:[#allocation2 + $0x10] sm:$0xff] %v318
    %335 = vst [vmem:[#allocation2 + $0x18] sm:$0xff] %v321
    %336 = vst [vmem:[#allocation2 + $0x20] sm:$0xff] %v326
    %337 = vst [vmem:[#allocation2 + $0x28] sm:$0xff] %v329
    %v338 = vld [vmem:[#allocation2] sm:$0xff]
    %vm339 = vcmask 261120
    %v341 = vsel %vm339, 0, 0
    %343 = vmatprep.subr.bf16.mxu0 0
    %344 = vmatpush1.bf16.msra.mxu0 %v120
    %345 = vmatprep.subr.bf16.mxu0 0
    %346 = vmatpush1.bf16.msra.mxu0 %v121
    %347 = vmatprep.subr.bf16.mxu0 0
    %348 = vmatpush1.bf16.msra.mxu0 0
    %349 = vmatprep.subr.bf16.mxu0 0
    %350 = vmatpush1.bf16.msra.mxu0 0
    %351 = vmatprep.subr.bf16.mxu0 0
    %352 = vmatpush1.bf16.msra.mxu0 0
    %353 = vmatprep.subr.bf16.mxu0 0
    %354 = vmatpush1.bf16.msra.mxu0 0
    %355 = vmatprep.subr.bf16.mxu0 0
    %356 = vmatpush1.bf16.msra.mxu0 0
    %357 = vmatprep.subr.bf16.mxu0 0
    %358 = vmatpush1.bf16.msra.mxu0 0
    %359 = vmatprep.subr.bf16.mxu0 0
    %360 = vmatpush1.bf16.msra.mxu0 0
    %361 = vmatprep.subr.bf16.mxu0 0
    %362 = vmatpush1.bf16.msra.mxu0 0
    %363 = vmatprep.subr.bf16.mxu0 0
    %364 = vmatpush1.bf16.msra.mxu0 0
    %365 = vmatprep.subr.bf16.mxu0 0
    %366 = vmatpush1.bf16.msra.mxu0 0
    %367 = vmatprep.subr.bf16.mxu0 0
    %368 = vmatpush1.bf16.msra.mxu0 0
    %369 = vmatprep.subr.bf16.mxu0 0
    %370 = vmatpush1.bf16.msra.mxu0 0
    %371 = vmatprep.subr.bf16.mxu0 0
    %372 = vmatpush1.bf16.msra.mxu0 0
    %373 = vmatprep.subr.bf16.mxu0 0
    %374 = vmatpush1.bf16.msra.mxu0 0
    %375 = vmatprep.mubr.bf16.mxu0 0
    %376 = vmatmul.mubr.bf16.gmra.mrb[0].mxu0 %v341
    %v377 = vpop.f32.mrb[0].mxu0
    %v378 = vadd.f32 0.0, %v377
    %v379 = vpop.f32.mrb[0].mxu0
    %v380 = vpop.f32.mrb[0].mxu0
    %v381 = vpop.f32.mrb[0].mxu0
    %382 = vdwg.mxu0
    %v383 = vadd.f32 %v338, %v378
    %v384 = vxor.u32 %v383, 2147483648
    %v385 = vmul.f32 %v384, 1.442695
    %v386 = vpow.pop %v385
    %v387 = vadd.f32 %v386, 1.0
    %v388 = vrcp.pop %v387
    %v389 = vmul.f32 1.0, %v388
    %v390 = vtanh.pop %v383
    %v391 = vmul.f32 %v389, 0.0
    %393 = vrot.lane.b32.xlu0 %v390, 64
    %v394 = vpop.permute.xlu0 %393
    %v396 = vmul.f32 %v389, %v394
    %398 = vrot.lane.b32.xlu0 %v396, 32
    %v399 = vpop.permute.xlu0 %398
    %v401 = vadd.f32 %v391, %v399
    %v402 = vtanh.pop %v401
    %404 = vrot.lane.b32.xlu0 %v402, 64
    %v405 = vpop.permute.xlu0 %404
    %v407 = vmul.f32 %v389, %v405
    %s408 = scalar_lea.vmem [#allocation2], 8
    %v409 = vld [vmem:[%s408] sm:$0xff]
    %v410 = vpack.c.bf16 %v407, %v407
    %412 = vrot.lane.b32.xlu0 %v410, 32
    %v413 = vpop.permute.xlu0 %412
    %v415 = vsel %vm339, %v413, 0
    %417 = vmatprep.subr.bf16.mxu0 0
    %418 = vmatpush1.bf16.msra.mxu0 %v120
    %419 = vmatprep.subr.bf16.mxu0 0
    %420 = vmatpush1.bf16.msra.mxu0 %v121
    %421 = vmatprep.subr.bf16.mxu0 0
    %422 = vmatpush1.bf16.msra.mxu0 0
    %423 = vmatprep.subr.bf16.mxu0 0
    %424 = vmatpush1.bf16.msra.mxu0 0
    %425 = vmatprep.subr.bf16.mxu0 0
    %426 = vmatpush1.bf16.msra.mxu0 0
    %427 = vmatprep.subr.bf16.mxu0 0
    %428 = vmatpush1.bf16.msra.mxu0 0
    %429 = vmatprep.subr.bf16.mxu0 0
    %430 = vmatpush1.bf16.msra.mxu0 0
    %431 = vmatprep.subr.bf16.mxu0 0
    %432 = vmatpush1.bf16.msra.mxu0 0
    %433 = vmatprep.subr.bf16.mxu0 0
    %434 = vmatpush1.bf16.msra.mxu0 0
    %435 = vmatprep.subr.bf16.mxu0 0
    %436 = vmatpush1.bf16.msra.mxu0 0
    %437 = vmatprep.subr.bf16.mxu0 0
    %438 = vmatpush1.bf16.msra.mxu0 0
    %439 = vmatprep.subr.bf16.mxu0 0
    %440 = vmatpush1.bf16.msra.mxu0 0
    %441 = vmatprep.subr.bf16.mxu0 0
    %442 = vmatpush1.bf16.msra.mxu0 0
    %443 = vmatprep.subr.bf16.mxu0 0
    %444 = vmatpush1.bf16.msra.mxu0 0
    %445 = vmatprep.subr.bf16.mxu0 0
    %446 = vmatpush1.bf16.msra.mxu0 0
    %447 = vmatprep.subr.bf16.mxu0 0
    %448 = vmatpush1.bf16.msra.mxu0 0
    %449 = vmatprep.mubr.bf16.mxu0 0
    %450 = vmatmul.mubr.bf16.gmra.mrb[0].mxu0 %v415
    %v451 = vpop.f32.mrb[0].mxu0
    %v452 = vadd.f32 0.0, %v451
    %v453 = vpop.f32.mrb[0].mxu0
    %v454 = vpop.f32.mrb[0].mxu0
    %v455 = vpop.f32.mrb[0].mxu0
    %456 = vdwg.mxu0
    %v457 = vadd.f32 %v409, %v452
    %v458 = vxor.u32 %v457, 2147483648
    %v459 = vmul.f32 %v458, 1.442695
    %v460 = vpow.pop %v459
    %v461 = vadd.f32 %v460, 1.0
    %v462 = vrcp.pop %v461
    %v463 = vmul.f32 1.0, %v462
    %v464 = vtanh.pop %v457
    %v465 = vmul.f32 %v463, %v401
    %467 = vrot.lane.b32.xlu0 %v464, 64
    %v468 = vpop.permute.xlu0 %467
    %v470 = vmul.f32 %v463, %v468
    %472 = vrot.lane.b32.xlu0 %v470, 32
    %v473 = vpop.permute.xlu0 %472
    %v475 = vadd.f32 %v465, %v473
    %v476 = vtanh.pop %v475
    %478 = vrot.lane.b32.xlu0 %v476, 64
    %v479 = vpop.permute.xlu0 %478
    %v481 = vmul.f32 %v463, %v479
    %s482 = scalar_lea.vmem [#allocation2], 16
    %v483 = vld [vmem:[%s482] sm:$0xff]
    %v484 = vpack.c.bf16 %v481, %v481
    %486 = vrot.lane.b32.xlu0 %v484, 32
    %v487 = vpop.permute.xlu0 %486
    %v489 = vsel %vm339, %v487, 0
    %491 = vmatprep.subr.bf16.mxu0 0
    %492 = vmatpush1.bf16.msra.mxu0 %v120
    %493 = vmatprep.subr.bf16.mxu0 0
    %494 = vmatpush1.bf16.msra.mxu0 %v121
    %495 = vmatprep.subr.bf16.mxu0 0
    %496 = vmatpush1.bf16.msra.mxu0 0
    %497 = vmatprep.subr.bf16.mxu0 0
    %498 = vmatpush1.bf16.msra.mxu0 0
    %499 = vmatprep.subr.bf16.mxu0 0
    %500 = vmatpush1.bf16.msra.mxu0 0
    %501 = vmatprep.subr.bf16.mxu0 0
    %502 = vmatpush1.bf16.msra.mxu0 0
    %503 = vmatprep.subr.bf16.mxu0 0
    %504 = vmatpush1.bf16.msra.mxu0 0
    %505 = vmatprep.subr.bf16.mxu0 0
    %506 = vmatpush1.bf16.msra.mxu0 0
    %507 = vmatprep.subr.bf16.mxu0 0
    %508 = vmatpush1.bf16.msra.mxu0 0
    %509 = vmatprep.subr.bf16.mxu0 0
    %510 = vmatpush1.bf16.msra.mxu0 0
    %511 = vmatprep.subr.bf16.mxu0 0
    %512 = vmatpush1.bf16.msra.mxu0 0
    %513 = vmatprep.subr.bf16.mxu0 0
    %514 = vmatpush1.bf16.msra.mxu0 0
    %515 = vmatprep.subr.bf16.mxu0 0
    %516 = vmatpush1.bf16.msra.mxu0 0
    %517 = vmatprep.subr.bf16.mxu0 0
    %518 = vmatpush1.bf16.msra.mxu0 0
    %519 = vmatprep.subr.bf16.mxu0 0
    %520 = vmatpush1.bf16.msra.mxu0 0
    %521 = vmatprep.subr.bf16.mxu0 0
    %522 = vmatpush1.bf16.msra.mxu0 0
    %523 = vmatprep.mubr.bf16.mxu0 0
    %524 = vmatmul.mubr.bf16.gmra.mrb[0].mxu0 %v489
    %v525 = vpop.f32.mrb[0].mxu0
    %v526 = vadd.f32 0.0, %v525
    %v527 = vpop.f32.mrb[0].mxu0
    %v528 = vpop.f32.mrb[0].mxu0
    %v529 = vpop.f32.mrb[0].mxu0
    %530 = vdwg.mxu0
    %v531 = vadd.f32 %v483, %v526
    %v532 = vxor.u32 %v531, 2147483648
    %v533 = vmul.f32 %v532, 1.442695
    %v534 = vpow.pop %v533
    %v535 = vadd.f32 %v534, 1.0
    %v536 = vrcp.pop %v535
    %v537 = vmul.f32 1.0, %v536
    %v538 = vtanh.pop %v531
    %v539 = vmul.f32 %v537, %v475
    %541 = vrot.lane.b32.xlu0 %v538, 64
    %v542 = vpop.permute.xlu0 %541
    %v544 = vmul.f32 %v537, %v542
    %546 = vrot.lane.b32.xlu0 %v544, 32
    %v547 = vpop.permute.xlu0 %546
    %v549 = vadd.f32 %v539, %v547
    %v550 = vtanh.pop %v549
    %552 = vrot.lane.b32.xlu0 %v550, 64
    %v553 = vpop.permute.xlu0 %552
    %v555 = vmul.f32 %v537, %v553
    %s556 = scalar_lea.vmem [#allocation2], 24
    %v557 = vld [vmem:[%s556] sm:$0xff]
    %v558 = vpack.c.bf16 %v555, %v555
    %560 = vrot.lane.b32.xlu0 %v558, 32
    %v561 = vpop.permute.xlu0 %560
    %v563 = vsel %vm339, %v561, 0
    %565 = vmatprep.subr.bf16.mxu0 0
    %566 = vmatpush1.bf16.msra.mxu0 %v120
    %567 = vmatprep.subr.bf16.mxu0 0
    %568 = vmatpush1.bf16.msra.mxu0 %v121
    %569 = vmatprep.subr.bf16.mxu0 0
    %570 = vmatpush1.bf16.msra.mxu0 0
    %571 = vmatprep.subr.bf16.mxu0 0
    %572 = vmatpush1.bf16.msra.mxu0 0
    %573 = vmatprep.subr.bf16.mxu0 0
    %574 = vmatpush1.bf16.msra.mxu0 0
    %575 = vmatprep.subr.bf16.mxu0 0
    %576 = vmatpush1.bf16.msra.mxu0 0
    %577 = vmatprep.subr.bf16.mxu0 0
    %578 = vmatpush1.bf16.msra.mxu0 0
    %579 = vmatprep.subr.bf16.mxu0 0
    %580 = vmatpush1.bf16.msra.mxu0 0
    %581 = vmatprep.subr.bf16.mxu0 0
    %582 = vmatpush1.bf16.msra.mxu0 0
    %583 = vmatprep.subr.bf16.mxu0 0
    %584 = vmatpush1.bf16.msra.mxu0 0
    %585 = vmatprep.subr.bf16.mxu0 0
    %586 = vmatpush1.bf16.msra.mxu0 0
    %587 = vmatprep.subr.bf16.mxu0 0
    %588 = vmatpush1.bf16.msra.mxu0 0
    %589 = vmatprep.subr.bf16.mxu0 0
    %590 = vmatpush1.bf16.msra.mxu0 0
    %591 = vmatprep.subr.bf16.mxu0 0
    %592 = vmatpush1.bf16.msra.mxu0 0
    %593 = vmatprep.subr.bf16.mxu0 0
    %594 = vmatpush1.bf16.msra.mxu0 0
    %595 = vmatprep.subr.bf16.mxu0 0
    %596 = vmatpush1.bf16.msra.mxu0 0
    %597 = vmatprep.mubr.bf16.mxu0 0
    %598 = vmatmul.mubr.bf16.gmra.mrb[0].mxu0 %v563
    %v599 = vpop.f32.mrb[0].mxu0
    %v600 = vadd.f32 0.0, %v599
    %v601 = vpop.f32.mrb[0].mxu0
    %v602 = vpop.f32.mrb[0].mxu0
    %v603 = vpop.f32.mrb[0].mxu0
    %604 = vdwg.mxu0
    %v605 = vadd.f32 %v557, %v600
    %v606 = vxor.u32 %v605, 2147483648
    %v607 = vmul.f32 %v606, 1.442695
    %v608 = vpow.pop %v607
    %v609 = vadd.f32 %v608, 1.0
    %v610 = vrcp.pop %v609
    %v611 = vmul.f32 1.0, %v610
    %v612 = vtanh.pop %v605
    %v613 = vmul.f32 %v611, %v549
    %615 = vrot.lane.b32.xlu0 %v612, 64
    %v616 = vpop.permute.xlu0 %615
    %v618 = vmul.f32 %v611, %v616
    %620 = vrot.lane.b32.xlu0 %v618, 32
    %v621 = vpop.permute.xlu0 %620
    %v623 = vadd.f32 %v613, %v621
    %v624 = vtanh.pop %v623
    %626 = vrot.lane.b32.xlu0 %v624, 64
    %v627 = vpop.permute.xlu0 %626
    %v629 = vmul.f32 %v611, %v627
    %s630 = scalar_lea.vmem [#allocation2], 32
    %v631 = vld [vmem:[%s630] sm:$0xff]
    %v632 = vpack.c.bf16 %v629, %v629
    %634 = vrot.lane.b32.xlu0 %v632, 32
    %v635 = vpop.permute.xlu0 %634
    %v637 = vsel %vm339, %v635, 0
    %639 = vmatprep.subr.bf16.mxu0 0
    %640 = vmatpush1.bf16.msra.mxu0 %v120
    %641 = vmatprep.subr.bf16.mxu0 0
    %642 = vmatpush1.bf16.msra.mxu0 %v121
    %643 = vmatprep.subr.bf16.mxu0 0
    %644 = vmatpush1.bf16.msra.mxu0 0
    %645 = vmatprep.subr.bf16.mxu0 0
    %646 = vmatpush1.bf16.msra.mxu0 0
    %647 = vmatprep.subr.bf16.mxu0 0
    %648 = vmatpush1.bf16.msra.mxu0 0
    %649 = vmatprep.subr.bf16.mxu0 0
    %650 = vmatpush1.bf16.msra.mxu0 0
    %651 = vmatprep.subr.bf16.mxu0 0
    %652 = vmatpush1.bf16.msra.mxu0 0
    %653 = vmatprep.subr.bf16.mxu0 0
    %654 = vmatpush1.bf16.msra.mxu0 0
    %655 = vmatprep.subr.bf16.mxu0 0
    %656 = vmatpush1.bf16.msra.mxu0 0
    %657 = vmatprep.subr.bf16.mxu0 0
    %658 = vmatpush1.bf16.msra.mxu0 0
    %659 = vmatprep.subr.bf16.mxu0 0
    %660 = vmatpush1.bf16.msra.mxu0 0
    %661 = vmatprep.subr.bf16.mxu0 0
    %662 = vmatpush1.bf16.msra.mxu0 0
    %663 = vmatprep.subr.bf16.mxu0 0
    %664 = vmatpush1.bf16.msra.mxu0 0
    %665 = vmatprep.subr.bf16.mxu0 0
    %666 = vmatpush1.bf16.msra.mxu0 0
    %667 = vmatprep.subr.bf16.mxu0 0
    %668 = vmatpush1.bf16.msra.mxu0 0
    %669 = vmatprep.subr.bf16.mxu0 0
    %670 = vmatpush1.bf16.msra.mxu0 0
    %671 = vmatprep.mubr.bf16.mxu0 0
    %672 = vmatmul.mubr.bf16.gmra.mrb[0].mxu0 %v637
    %v673 = vpop.f32.mrb[0].mxu0
    %v674 = vadd.f32 0.0, %v673
    %v675 = vpop.f32.mrb[0].mxu0
    %v676 = vpop.f32.mrb[0].mxu0
    %v677 = vpop.f32.mrb[0].mxu0
    %678 = vdwg.mxu0
    %v679 = vadd.f32 %v631, %v674
    %v680 = vxor.u32 %v679, 2147483648
    %v681 = vmul.f32 %v680, 1.442695
    %v682 = vpow.pop %v681
    %v683 = vadd.f32 %v682, 1.0
    %v684 = vrcp.pop %v683
    %v685 = vmul.f32 1.0, %v684
    %v686 = vtanh.pop %v679
    %v687 = vmul.f32 %v685, %v623
    %689 = vrot.lane.b32.xlu0 %v686, 64
    %v690 = vpop.permute.xlu0 %689
    %v692 = vmul.f32 %v685, %v690
    %694 = vrot.lane.b32.xlu0 %v692, 32
    %v695 = vpop.permute.xlu0 %694
    %v697 = vadd.f32 %v687, %v695
    %v698 = vtanh.pop %v697
    %700 = vrot.lane.b32.xlu0 %v698, 64
    %v701 = vpop.permute.xlu0 %700
    %v703 = vmul.f32 %v685, %v701
    %s704 = scalar_lea.vmem [#allocation2], 40
    %v705 = vld [vmem:[%s704] sm:$0xff]
    %v706 = vpack.c.bf16 %v703, %v703
    %708 = vrot.lane.b32.xlu0 %v706, 32
    %v709 = vpop.permute.xlu0 %708
    %v711 = vsel %vm339, %v709, 0
    %713 = vmatprep.subr.bf16.mxu0 0
    %714 = vmatpush1.bf16.msra.mxu0 %v120
    %715 = vmatprep.subr.bf16.mxu0 0
    %716 = vmatpush1.bf16.msra.mxu0 %v121
    %717 = vmatprep.subr.bf16.mxu0 0
    %718 = vmatpush1.bf16.msra.mxu0 0
    %719 = vmatprep.subr.bf16.mxu0 0
    %720 = vmatpush1.bf16.msra.mxu0 0
    %721 = vmatprep.subr.bf16.mxu0 0
    %722 = vmatpush1.bf16.msra.mxu0 0
    %723 = vmatprep.subr.bf16.mxu0 0
    %724 = vmatpush1.bf16.msra.mxu0 0
    %725 = vmatprep.subr.bf16.mxu0 0
    %726 = vmatpush1.bf16.msra.mxu0 0
    %727 = vmatprep.subr.bf16.mxu0 0
    %728 = vmatpush1.bf16.msra.mxu0 0
    %729 = vmatprep.subr.bf16.mxu0 0
    %730 = vmatpush1.bf16.msra.mxu0 0
    %731 = vmatprep.subr.bf16.mxu0 0
    %732 = vmatpush1.bf16.msra.mxu0 0
    %733 = vmatprep.subr.bf16.mxu0 0
    %734 = vmatpush1.bf16.msra.mxu0 0
    %735 = vmatprep.subr.bf16.mxu0 0
    %736 = vmatpush1.bf16.msra.mxu0 0
    %737 = vmatprep.subr.bf16.mxu0 0
    %738 = vmatpush1.bf16.msra.mxu0 0
    %739 = vmatprep.subr.bf16.mxu0 0
    %740 = vmatpush1.bf16.msra.mxu0 0
    %741 = vmatprep.subr.bf16.mxu0 0
    %742 = vmatpush1.bf16.msra.mxu0 0
    %743 = vmatprep.subr.bf16.mxu0 0
    %744 = vmatpush1.bf16.msra.mxu0 0
    %745 = vmatprep.mubr.bf16.mxu0 0
    %746 = vmatmul.mubr.bf16.gmra.mrb[0].mxu0 %v711
    %v747 = vpop.f32.mrb[0].mxu0
    %v748 = vadd.f32 0.0, %v747
    %v749 = vpop.f32.mrb[0].mxu0
    %v750 = vpop.f32.mrb[0].mxu0
    %v751 = vpop.f32.mrb[0].mxu0
    %752 = vdwg.mxu0
    %v753 = vadd.f32 %v705, %v748
    %v754 = vxor.u32 %v753, 2147483648
    %v755 = vmul.f32 %v754, 1.442695
    %v756 = vpow.pop %v755
    %v757 = vadd.f32 %v756, 1.0
    %v758 = vrcp.pop %v757
    %v759 = vmul.f32 1.0, %v758
    %v760 = vtanh.pop %v753
    %v761 = vmul.f32 %v759, %v697
    %763 = vrot.lane.b32.xlu0 %v760, 64
    %v764 = vpop.permute.xlu0 %763
    %v766 = vmul.f32 %v759, %v764
    %768 = vrot.lane.b32.xlu0 %v766, 32
    %v769 = vpop.permute.xlu0 %768
    %v771 = vadd.f32 %v761, %v769
    %v772 = vtanh.pop %v771
    %774 = vrot.lane.b32.xlu0 %v772, 64
    %v775 = vpop.permute.xlu0 %774
    %v777 = vmul.f32 %v759, %v775
    %v778 = vlaneseq
    %v779 = vand.u32 %v778, 127
    %781 = vrot.lane.b32.xlu0 %v777, 32
    %v782 = vpop.permute.xlu0 %781
    %784 = vrot.lane.b32.xlu0 %v777, 64
    %v785 = vpop.permute.xlu0 %784
    %v787 = vsel %vm339, %v782, %v785
    %789 = vrot.lane.b32.xlu0 %v771, 96
    %v790 = vpop.permute.xlu0 %789
    %v792 = vsel %vm339, %v790, %v771
    %v793 = vld [vmem:[%s4] sm:$0xff]
    %v794 = vld [vmem:[%s5] sm:$0xff]
    %796 = vrot.lane.b32.xlu0 %v787, 1
    %v797 = vpop.permute.xlu0 %796
    %vm799 = vcmask 7168
    %v800 = vsel %vm799, %v794, %v797
    %v801 = vpack.c.bf16 %v793, %v793
    %v802 = vpack.c.bf16 %v800, %v800
    %vm803 = vcmask 531456
    %v805 = vsel %vm803, %v802, 0
    %v807 = vsel 0, 4294967295, 65535
    %v808 = vsel %vm268, %v807, 0
    %v810 = vand.u32 %v196, %v808
    %v813 = vand.u32 %v197, %v808
    %815 = vmatprep.subr.bf16.mxu0 %v173
    %816 = vmatpush1.bf16.msra.mxu0 %v172
    %817 = vmatprep.subr.bf16.mxu0 %v175
    %818 = vmatpush1.bf16.msra.mxu0 %v174
    %819 = vmatprep.subr.bf16.mxu0 %v177
    %820 = vmatpush1.bf16.msra.mxu0 %v176
    %821 = vmatprep.subr.bf16.mxu0 %v179
    %822 = vmatpush1.bf16.msra.mxu0 %v178
    %823 = vmatprep.subr.bf16.mxu0 %v181
    %824 = vmatpush1.bf16.msra.mxu0 %v180
    %825 = vmatprep.subr.bf16.mxu0 %v183
    %826 = vmatpush1.bf16.msra.mxu0 %v182
    %827 = vmatprep.subr.bf16.mxu0 %v185
    %828 = vmatpush1.bf16.msra.mxu0 %v184
    %829 = vmatprep.subr.bf16.mxu0 %v187
    %830 = vmatpush1.bf16.msra.mxu0 %v186
    %831 = vmatprep.subr.bf16.mxu0 %v189
    %832 = vmatpush1.bf16.msra.mxu0 %v188
    %833 = vmatprep.subr.bf16.mxu0 %v191
    %834 = vmatpush1.bf16.msra.mxu0 %v190
    %835 = vmatprep.subr.bf16.mxu0 %v193
    %836 = vmatpush1.bf16.msra.mxu0 %v192
    %837 = vmatprep.subr.bf16.mxu0 %v195
    %838 = vmatpush1.bf16.msra.mxu0 %v194
    %839 = vmatprep.subr.bf16.mxu0 %v813
    %840 = vmatpush1.bf16.msra.mxu0 %v810
    %841 = vmatprep.subr.bf16.mxu0 0
    %842 = vmatpush1.bf16.msra.mxu0 0
    %843 = vmatprep.subr.bf16.mxu0 0
    %844 = vmatpush1.bf16.msra.mxu0 0
    %845 = vmatprep.subr.bf16.mxu0 0
    %846 = vmatpush1.bf16.msra.mxu0 0
    %847 = vmatprep.mubr.bf16.mxu0 %v805
    %848 = vmatmul.mubr.bf16.gmra.mrb[0].mxu0 %v801
    %v849 = vpop.f32.mrb[0].mxu0
    %v850 = vadd.f32 %v216, %v849
    %v851 = vpop.f32.mrb[0].mxu0
    %v852 = vadd.f32 %v220, %v851
    %v853 = vpop.f32.mrb[0].mxu0
    %v854 = vpop.f32.mrb[0].mxu0
    %855 = vdwg.mxu0
    %v856 = vxor.u32 %v850, 2147483648
    %v857 = vmul.f32 %v856, 1.442695
    %v858 = vpow.pop %v857
    %v859 = vadd.f32 %v858, 1.0
    %v860 = vrcp.pop %v859
    %v861 = vmul.f32 1.0, %v860
    %v862 = vtanh.pop %v852
    %v863 = vxor.u32 %v852, 2147483648
    %v864 = vmul.f32 %v863, 1.442695
    %v865 = vpow.pop %v864
    %v866 = vadd.f32 %v865, 1.0
    %v867 = vrcp.pop %v866
    %v868 = vmul.f32 1.0, %v867
    %870 = vrot.lane.b32.xlu0 %v792, 64
    %v871 = vpop.permute.xlu0 %870
    %v873 = vmul.f32 %v861, %v871
    %v874 = vmul.f32 %v861, %v862
    %876 = vrot.lane.b32.xlu0 %v874, 64
    %v877 = vpop.permute.xlu0 %876
    %v879 = vadd.f32 %v873, %v877
    %v880 = vtanh.pop %v879
    %v881 = vmul.f32 %v868, %v880
    %883 = vrot.lane.b32.xlu0 %v881, 64
    %v884 = vpop.permute.xlu0 %883
    %vm886 = vcmask 523264
    %887 = vst.msk [vmem:[#allocation3] sm:$0xff] %vm886, %v884
    %888 = vrot.lane.b32.xlu0 %v235, 64
    %v889 = vpop.permute.xlu0 %888
    %v891 = vmul.f32 %v881, %v889
    %893 = vrot.lane.b32.xlu0 %v891, 64
    %v894 = vpop.permute.xlu0 %893
    %v896 = vsel %vm886, %v894, 0.0
    %897 = vadd.xlane.f32.xlu0 %v896
    %v898 = vpop.xlane.xlu0 %897
    %v899 = vadd.f32 %v898, %v241
    %vm900 = vcmp.eq.s32.totalorder %v779, 0
    %902 = vset.pattern.permute.xlu0 0
    %903 = vperm.xlu0 %902, %v899
    %v904 = vpop.permute.xlu0 %903
    %v906 = vsel %vm900, %v904, 0.0
    %s907 = sld [smem:[#allocation5]]
    %p908 = scmp.eq.s32.totalorder %s907, 1
    // Predicated region
    $region78: #{tpu_custom_call.1} parent=1 // pred_check
      %p909 = pneg %p908
    $region79: #{tpu_custom_call.1} parent=1 // pred_check_branch
      %911 = sbr.rel (%p909) target = $region81
    $region80: #{tpu_custom_call.1} parent=1 // pred_region
      %v912 = vld [vmem:[%s2] sm:$0xff]
      %913 = vset.pattern.permute.xlu0 0
      %914 = vperm.xlu0 %913, %v912
      %v915 = vpop.permute.xlu0 %914
      %vm916 = vcmp.eq.s32.totalorder %v779, %v915
      %vm917 = vcmp.ne.s32.totalorder %v779, 0
      %vm918 = vmand %vm916, %vm917
      %v919 = vsel %vm918, 1.0, 0.0
    $region81: #{tpu_custom_call.1} parent=1 // pred_fallthru
      %v920 = vphi 0, %v919
    %p921 = pneg %p908
    // Predicated region
    $region82: #{tpu_custom_call.1} parent=1 // pred_check
      _
    $region83: #{tpu_custom_call.1} parent=1 // pred_check_branch
      %923 = sbr.rel (%p908) target = $region85
    $region84: #{tpu_custom_call.1} parent=1 // pred_region
      %v924 = vpack.c.bf16 %v881, %v881
      %926 = vrot.lane.b32.xlu0 %v924, 64
      %v927 = vpop.permute.xlu0 %926
      %v929 = vsel %vm886, %v927, 0
      %931 = vmatprep.subr.bf16.mxu0 0
      %932 = vmatpush1.bf16.msra.mxu0 %v206
      %933 = vmatprep.subr.bf16.mxu0 0
      %934 = vmatpush1.bf16.msra.mxu0 %v207
      %935 = vmatprep.subr.bf16.mxu0 0
      %936 = vmatpush1.bf16.msra.mxu0 %v208
      %937 = vmatprep.subr.bf16.mxu0 0
      %938 = vmatpush1.bf16.msra.mxu0 %v209
      %939 = vmatprep.subr.bf16.mxu0 0
      %940 = vmatpush1.bf16.msra.mxu0 0
      %941 = vmatprep.subr.bf16.mxu0 0
      %942 = vmatpush1.bf16.msra.mxu0 0
      %943 = vmatprep.subr.bf16.mxu0 0
      %944 = vmatpush1.bf16.msra.mxu0 0
      %945 = vmatprep.subr.bf16.mxu0 0
      %946 = vmatpush1.bf16.msra.mxu0 0
      %947 = vmatprep.subr.bf16.mxu0 0
      %948 = vmatpush1.bf16.msra.mxu0 0
      %949 = vmatprep.subr.bf16.mxu0 0
      %950 = vmatpush1.bf16.msra.mxu0 0
      %951 = vmatprep.subr.bf16.mxu0 0
      %952 = vmatpush1.bf16.msra.mxu0 0
      %953 = vmatprep.subr.bf16.mxu0 0
      %954 = vmatpush1.bf16.msra.mxu0 0
      %955 = vmatprep.subr.bf16.mxu0 0
      %956 = vmatpush1.bf16.msra.mxu0 0
      %957 = vmatprep.subr.bf16.mxu0 0
      %958 = vmatpush1.bf16.msra.mxu0 0
      %959 = vmatprep.subr.bf16.mxu0 0
      %960 = vmatpush1.bf16.msra.mxu0 0
      %961 = vmatprep.subr.bf16.mxu0 0
      %962 = vmatpush1.bf16.msra.mxu0 0
      %963 = vmatprep.mubr.bf16.mxu0 0
      %964 = vmatmul.mubr.bf16.gmra.mrb[0].mxu0 %v929
      %v965 = vpop.f32.mrb[0].mxu0
      %v966 = vadd.f32 %v228, %v965
      %v967 = vpop.f32.mrb[0].mxu0
      %v968 = vpop.f32.mrb[0].mxu0
      %v969 = vpop.f32.mrb[0].mxu0
      %970 = vdwg.mxu0
      %971 = vmax.xlane.f32.xlu0 %v966
      %v972 = vpop.xlane.xlu0 %971
      %vm973 = vcmp.eq.f32.partialorder %v966, %v972
      %v974 = vsel %vm973, %v779, 128
      %v975 = vand.u32 %v974, 65535
      %v976 = vshra.s32 %v974, 16
      %v977 = vcvt.s32.f32 %v975
      %v978 = vcvt.s32.f32 %v976
      %979 = vmin.xlane.f32.xlu0 %v978
      %v980 = vpop.xlane.xlu0 %979
      %vm981 = vcmp.eq.f32.partialorder %v978, %v980
      %v982 = vsel %vm981, %v977, inf
      %983 = vmin.xlane.f32.xlu0 %v982
      %v984 = vpop.xlane.xlu0 %983
      %v985 = vcvt.f32.s32 %v984
      %v986 = vcvt.f32.s32 %v980
      %v987 = vshll.u32 %v986, 16
      %v988 = vadd.s32 %v987, %v985
      %vm989 = vcmp.eq.s32.totalorder %v779, %v988
      %vm990 = vcmp.ne.s32.totalorder %v779, 0
      %vm991 = vmand %vm989, %vm990
      %v992 = vsel %vm991, 1.0, 0.0
    $region85: #{tpu_custom_call.1} parent=1 // pred_fallthru
      %v993 = vphi %v920, %v992
    %v994 = vld [vmem:[%s3] sm:$0xff]
    %s995 = scalar_select %p908, 1, 0
    %v996 = vstv %s995
    %vm997 = vcmp.eq.s32.totalorder %v996, 1
    %v998 = vsel %vm997, %v994, %v899
    %999 = vrot.lane.b32.xlu0 %v881, 65
    %v1000 = vpop.permute.xlu0 %999
    %v1002 = vsel %vm799, %v998, %v1000
    %v1003 = vpack.c.bf16 %v993, %v993
    %v1004 = vpack.c.bf16 %v1002, %v1002
    %v1006 = vsel %vm803, %v1004, 0
    %1008 = vmatprep.subr.bf16.mxu0 %v173
    %1009 = vmatpush1.bf16.msra.mxu0 %v172
    %1010 = vmatprep.subr.bf16.mxu0 %v175
    %1011 = vmatpush1.bf16.msra.mxu0 %v174
    %1012 = vmatprep.subr.bf16.mxu0 %v177
    %1013 = vmatpush1.bf16.msra.mxu0 %v176
    %1014 = vmatprep.subr.bf16.mxu0 %v179
    %1015 = vmatpush1.bf16.msra.mxu0 %v178
    %1016 = vmatprep.subr.bf16.mxu0 %v181
    %1017 = vmatpush1.bf16.msra.mxu0 %v180
    %1018 = vmatprep.subr.bf16.mxu0 %v183
    %1019 = vmatpush1.bf16.msra.mxu0 %v182
    %1020 = vmatprep.subr.bf16.mxu0 %v185
    %1021 = vmatpush1.bf16.msra.mxu0 %v184
    %1022 = vmatprep.subr.bf16.mxu0 %v187
    %1023 = vmatpush1.bf16.msra.mxu0 %v186
    %1024 = vmatprep.subr.bf16.mxu0 %v189
    %1025 = vmatpush1.bf16.msra.mxu0 %v188
    %1026 = vmatprep.subr.bf16.mxu0 %v191
    %1027 = vmatpush1.bf16.msra.mxu0 %v190
    %1028 = vmatprep.subr.bf16.mxu0 %v193
    %1029 = vmatpush1.bf16.msra.mxu0 %v192
    %1030 = vmatprep.subr.bf16.mxu0 %v195
    %1031 = vmatpush1.bf16.msra.mxu0 %v194
    %1032 = vmatprep.subr.bf16.mxu0 %v813
    %1033 = vmatpush1.bf16.msra.mxu0 %v810
    %1034 = vmatprep.subr.bf16.mxu0 0
    %1035 = vmatpush1.bf16.msra.mxu0 0
    %1036 = vmatprep.subr.bf16.mxu0 0
    %1037 = vmatpush1.bf16.msra.mxu0 0
    %1038 = vmatprep.subr.bf16.mxu0 0
    %1039 = vmatpush1.bf16.msra.mxu0 0
    %1040 = vmatprep.mubr.bf16.mxu0 %v1006
    %1041 = vmatmul.mubr.bf16.gmra.mrb[0].mxu0 %v1003
    %v1042 = vpop.f32.mrb[0].mxu0
    %v1043 = vadd.f32 %v216, %v1042
    %v1044 = vpop.f32.mrb[0].mxu0
    %v1045 = vadd.f32 %v220, %v1044
    %v1046 = vpop.f32.mrb[0].mxu0
    %v1047 = vpop.f32.mrb[0].mxu0
    %1048 = vdwg.mxu0
    %v1049 = vxor.u32 %v1043, 2147483648
    %v1050 = vmul.f32 %v1049, 1.442695
    %v1051 = vpow.pop %v1050
    %v1052 = vadd.f32 %v1051, 1.0
    %v1053 = vrcp.pop %v1052
    %v1054 = vmul.f32 1.0, %v1053
    %v1055 = vtanh.pop %v1045
    %v1056 = vxor.u32 %v1045, 2147483648
    %v1057 = vmul.f32 %v1056, 1.442695
    %v1058 = vpow.pop %v1057
    %v1059 = vadd.f32 %v1058, 1.0
    %v1060 = vrcp.pop %v1059
    %v1061 = vmul.f32 1.0, %v1060
    %v1062 = vmul.f32 %v1054, %v879
    %v1063 = vmul.f32 %v1054, %v1055
    %1065 = vrot.lane.b32.xlu0 %v1063, 64
    %v1066 = vpop.permute.xlu0 %1065
    %v1068 = vadd.f32 %v1062, %v1066
    %v1069 = vtanh.pop %v1068
    %v1070 = vmul.f32 %v1061, %v1069
    %1072 = vrot.lane.b32.xlu0 %v1070, 64
    %v1073 = vpop.permute.xlu0 %1072
    %s1075 = scalar_lea.vmem [#allocation3], 8
    %1076 = vst.msk [vmem:[%s1075] sm:$0xff] %vm886, %v1073
    %v1077 = vmul.f32 %v1070, %v889
    %1079 = vrot.lane.b32.xlu0 %v1077, 64
    %v1080 = vpop.permute.xlu0 %1079
    %v1082 = vsel %vm886, %v1080, 0.0
    %1083 = vadd.xlane.f32.xlu0 %v1082
    %v1084 = vpop.xlane.xlu0 %1083
    %v1085 = vadd.f32 %v1084, %v241
    %vm1086 = vcmp.eq.s32.totalorder %v779, 1
    %1088 = vset.pattern.permute.xlu0 0
    %1089 = vperm.xlu0 %1088, %v1085
    %v1090 = vpop.permute.xlu0 %1089
    %v1092 = vsel %vm1086, %v1090, %v906
    %s1093 = sld [smem:[#allocation5 + $0x1]]
    %p1094 = scmp.eq.s32.totalorder %s1093, 1
    // Predicated region
    $region86: #{tpu_custom_call.1} parent=1 // pred_check
      %p1095 = pneg %p1094
    $region87: #{tpu_custom_call.1} parent=1 // pred_check_branch
      %1097 = sbr.rel (%p1095) target = $region89
    $region88: #{tpu_custom_call.1} parent=1 // pred_region
      %s1098 = scalar_lea.vmem %s2, 8
      %v1099 = vld [vmem:[%s1098] sm:$0xff]
      %1100 = vset.pattern.permute.xlu0 0
      %1101 = vperm.xlu0 %1100, %v1099
      %v1102 = vpop.permute.xlu0 %1101
      %vm1103 = vcmp.eq.s32.totalorder %v779, %v1102
      %vm1104 = vcmp.ne.s32.totalorder %v779, 0
      %vm1105 = vmand %vm1103, %vm1104
      %v1106 = vsel %vm1105, 1.0, 0.0
    $region89: #{tpu_custom_call.1} parent=1 // pred_fallthru
      %v1107 = vphi 0, %v1106
    %p1108 = pneg %p1094
    // Predicated region
    $region90: #{tpu_custom_call.1} parent=1 // pred_check
      _
    $region91: #{tpu_custom_call.1} parent=1 // pred_check_branch
      %1110 = sbr.rel (%p1094) target = $region93
    $region92: #{tpu_custom_call.1} parent=1 // pred_region
      %v1111 = vpack.c.bf16 %v1070, %v1070
      %1113 = vrot.lane.b32.xlu0 %v1111, 64
      %v1114 = vpop.permute.xlu0 %1113
      %v1116 = vsel %vm886, %v1114, 0
      %1118 = vmatprep.subr.bf16.mxu0 0
      %1119 = vmatpush1.bf16.msra.mxu0 %v206
      %1120 = vmatprep.subr.bf16.mxu0 0
      %1121 = vmatpush1.bf16.msra.mxu0 %v207
      %1122 = vmatprep.subr.bf16.mxu0 0
      %1123 = vmatpush1.bf16.msra.mxu0 %v208
      %1124 = vmatprep.subr.bf16.mxu0 0
      %1125 = vmatpush1.bf16.msra.mxu0 %v209
      %1126 = vmatprep.subr.bf16.mxu0 0
      %1127 = vmatpush1.bf16.msra.mxu0 0
      %1128 = vmatprep.subr.bf16.mxu0 0
      %1129 = vmatpush1.bf16.msra.mxu0 0
      %1130 = vmatprep.subr.bf16.mxu0 0
      %1131 = vmatpush1.bf16.msra.mxu0 0
      %1132 = vmatprep.subr.bf16.mxu0 0
      %1133 = vmatpush1.bf16.msra.mxu0 0
      %1134 = vmatprep.subr.bf16.mxu0 0
      %1135 = vmatpush1.bf16.msra.mxu0 0
      %1136 = vmatprep.subr.bf16.mxu0 0
      %1137 = vmatpush1.bf16.msra.mxu0 0
      %1138 = vmatprep.subr.bf16.mxu0 0
      %1139 = vmatpush1.bf16.msra.mxu0 0
      %1140 = vmatprep.subr.bf16.mxu0 0
      %1141 = vmatpush1.bf16.msra.mxu0 0
      %1142 = vmatprep.subr.bf16.mxu0 0
      %1143 = vmatpush1.bf16.msra.mxu0 0
      %1144 = vmatprep.subr.bf16.mxu0 0
      %1145 = vmatpush1.bf16.msra.mxu0 0
      %1146 = vmatprep.subr.bf16.mxu0 0
      %1147 = vmatpush1.bf16.msra.mxu0 0
      %1148 = vmatprep.subr.bf16.mxu0 0
      %1149 = vmatpush1.bf16.msra.mxu0 0
      %1150 = vmatprep.mubr.bf16.mxu0 0
      %1151 = vmatmul.mubr.bf16.gmra.mrb[0].mxu0 %v1116
      %v1152 = vpop.f32.mrb[0].mxu0
      %v1153 = vadd.f32 %v228, %v1152
      %v1154 = vpop.f32.mrb[0].mxu0
      %v1155 = vpop.f32.mrb[0].mxu0
      %v1156 = vpop.f32.mrb[0].mxu0
      %1157 = vdwg.mxu0
      %1158 = vmax.xlane.f32.xlu0 %v1153
      %v1159 = vpop.xlane.xlu0 %1158
      %vm1160 = vcmp.eq.f32.partialorder %v1153, %v1159
      %v1161 = vsel %vm1160, %v779, 128
      %v1162 = vand.u32 %v1161, 65535
      %v1163 = vshra.s32 %v1161, 16
      %v1164 = vcvt.s32.f32 %v1162
      %v1165 = vcvt.s32.f32 %v1163
      %1166 = vmin.xlane.f32.xlu0 %v1165
      %v1167 = vpop.xlane.xlu0 %1166
      %vm1168 = vcmp.eq.f32.partialorder %v1165, %v1167
      %v1169 = vsel %vm1168, %v1164, inf
      %1170 = vmin.xlane.f32.xlu0 %v1169
      %v1171 = vpop.xlane.xlu0 %1170
      %v1172 = vcvt.f32.s32 %v1171
      %v1173 = vcvt.f32.s32 %v1167
      %v1174 = vshll.u32 %v1173, 16
      %v1175 = vadd.s32 %v1174, %v1172
      %vm1176 = vcmp.eq.s32.totalorder %v779, %v1175
      %vm1177 = vcmp.ne.s32.totalorder %v779, 0
      %vm1178 = vmand %vm1176, %vm1177
      %v1179 = vsel %vm1178, 1.0, 0.0
    $region93: #{tpu_custom_call.1} parent=1 // pred_fallthru
      %v1180 = vphi %v1107, %v1179
    %s1181 = scalar_lea.vmem %s3, 8
    %v1182 = vld [vmem:[%s1181] sm:$0xff]
    %s1183 = scalar_select %p1094, 1, 0
    %v1184 = vstv %s1183
    %vm1185 = vcmp.eq.s32.totalorder %v1184, 1
    %v1186 = vsel %vm1185, %v1182, %v1085
    %1187 = vrot.lane.b32.xlu0 %v1070, 65
    %v1188 = vpop.permute.xlu0 %1187
    %v1190 = vsel %vm799, %v1186, %v1188
    %v1191 = vpack.c.bf16 %v1180, %v1180
    %v1192 = vpack.c.bf16 %v1190, %v1190
    %v1194 = vsel %vm803, %v1192, 0
    %1196 = vmatprep.subr.bf16.mxu0 %v173
    %1197 = vmatpush1.bf16.msra.mxu0 %v172
    %1198 = vmatprep.subr.bf16.mxu0 %v175
    %1199 = vmatpush1.bf16.msra.mxu0 %v174
    %1200 = vmatprep.subr.bf16.mxu0 %v177
    %1201 = vmatpush1.bf16.msra.mxu0 %v176
    %1202 = vmatprep.subr.bf16.mxu0 %v179
    %1203 = vmatpush1.bf16.msra.mxu0 %v178
    %1204 = vmatprep.subr.bf16.mxu0 %v181
    %1205 = vmatpush1.bf16.msra.mxu0 %v180
    %1206 = vmatprep.subr.bf16.mxu0 %v183
    %1207 = vmatpush1.bf16.msra.mxu0 %v182
    %1208 = vmatprep.subr.bf16.mxu0 %v185
    %1209 = vmatpush1.bf16.msra.mxu0 %v184
    %1210 = vmatprep.subr.bf16.mxu0 %v187
    %1211 = vmatpush1.bf16.msra.mxu0 %v186
    %1212 = vmatprep.subr.bf16.mxu0 %v189
    %1213 = vmatpush1.bf16.msra.mxu0 %v188
    %1214 = vmatprep.subr.bf16.mxu0 %v191
    %1215 = vmatpush1.bf16.msra.mxu0 %v190
    %1216 = vmatprep.subr.bf16.mxu0 %v193
    %1217 = vmatpush1.bf16.msra.mxu0 %v192
    %1218 = vmatprep.subr.bf16.mxu0 %v195
    %1219 = vmatpush1.bf16.msra.mxu0 %v194
    %1220 = vmatprep.subr.bf16.mxu0 %v813
    %1221 = vmatpush1.bf16.msra.mxu0 %v810
    %1222 = vmatprep.subr.bf16.mxu0 0
    %1223 = vmatpush1.bf16.msra.mxu0 0
    %1224 = vmatprep.subr.bf16.mxu0 0
    %1225 = vmatpush1.bf16.msra.mxu0 0
    %1226 = vmatprep.subr.bf16.mxu0 0
    %1227 = vmatpush1.bf16.msra.mxu0 0
    %1228 = vmatprep.mubr.bf16.mxu0 %v1194
    %1229 = vmatmul.mubr.bf16.gmra.mrb[0].mxu0 %v1191
    %v1230 = vpop.f32.mrb[0].mxu0
    %v1231 = vadd.f32 %v216, %v1230
    %v1232 = vpop.f32.mrb[0].mxu0
    %v1233 = vadd.f32 %v220, %v1232
    %v1234 = vpop.f32.mrb[0].mxu0
    %v1235 = vpop.f32.mrb[0].mxu0
    %1236 = vdwg.mxu0
    %v1237 = vxor.u32 %v1231, 2147483648
    %v1238 = vmul.f32 %v1237, 1.442695
    %v1239 = vpow.pop %v1238
    %v1240 = vadd.f32 %v1239, 1.0
    %v1241 = vrcp.pop %v1240
    %v1242 = vmul.f32 1.0, %v1241
    %v1243 = vtanh.pop %v1233
    %v1244 = vxor.u32 %v1233, 2147483648
    %v1245 = vmul.f32 %v1244, 1.442695
    %v1246 = vpow.pop %v1245
    %v1247 = vadd.f32 %v1246, 1.0
    %v1248 = vrcp.pop %v1247
    %v1249 = vmul.f32 1.0, %v1248
    %v1250 = vmul.f32 %v1242, %v1068
    %v1251 = vmul.f32 %v1242, %v1243
    %1253 = vrot.lane.b32.xlu0 %v1251, 64
    %v1254 = vpop.permute.xlu0 %1253
    %v1256 = vadd.f32 %v1250, %v1254
    %v1257 = vtanh.pop %v1256
    %v1258 = vmul.f32 %v1249, %v1257
    %1260 = vrot.lane.b32.xlu0 %v1258, 64
    %v1261 = vpop.permute.xlu0 %1260
    %s1263 = scalar_lea.vmem [#allocation3], 16
    %1264 = vst.msk [vmem:[%s1263] sm:$0xff] %vm886, %v1261
    %v1265 = vmul.f32 %v1258, %v889
    %1267 = vrot.lane.b32.xlu0 %v1265, 64
    %v1268 = vpop.permute.xlu0 %1267
    %v1270 = vsel %vm886, %v1268, 0.0
    %1271 = vadd.xlane.f32.xlu0 %v1270
    %v1272 = vpop.xlane.xlu0 %1271
    %v1273 = vadd.f32 %v1272, %v241
    %vm1274 = vcmp.eq.s32.totalorder %v779, 2
    %1276 = vset.pattern.permute.xlu0 0
    %1277 = vperm.xlu0 %1276, %v1273
    %v1278 = vpop.permute.xlu0 %1277
    %v1280 = vsel %vm1274, %v1278, %v1092
    %s1281 = sld [smem:[#allocation5 + $0x2]]
    %p1282 = scmp.eq.s32.totalorder %s1281, 1
    // Predicated region
    $region94: #{tpu_custom_call.1} parent=1 // pred_check
      %p1283 = pneg %p1282
    $region95: #{tpu_custom_call.1} parent=1 // pred_check_branch
      %1285 = sbr.rel (%p1283) target = $region97
    $region96: #{tpu_custom_call.1} parent=1 // pred_region
      %s1286 = scalar_lea.vmem %s2, 16
      %v1287 = vld [vmem:[%s1286] sm:$0xff]
      %1288 = vset.pattern.permute.xlu0 0
      %1289 = vperm.xlu0 %1288, %v1287
      %v1290 = vpop.permute.xlu0 %1289
      %vm1291 = vcmp.eq.s32.totalorder %v779, %v1290
      %vm1292 = vcmp.ne.s32.totalorder %v779, 0
      %vm1293 = vmand %vm1291, %vm1292
      %v1294 = vsel %vm1293, 1.0, 0.0
    $region97: #{tpu_custom_call.1} parent=1 // pred_fallthru
      %v1295 = vphi 0, %v1294
    %p1296 = pneg %p1282
    // Predicated region
    $region98: #{tpu_custom_call.1} parent=1 // pred_check
      _
    $region99: #{tpu_custom_call.1} parent=1 // pred_check_branch
      %1298 = sbr.rel (%p1282) target = $region101
    $region100: #{tpu_custom_call.1} parent=1 // pred_region
      %v1299 = vpack.c.bf16 %v1258, %v1258
      %1301 = vrot.lane.b32.xlu0 %v1299, 64
      %v1302 = vpop.permute.xlu0 %1301
      %v1304 = vsel %vm886, %v1302, 0
      %1306 = vmatprep.subr.bf16.mxu0 0
      %1307 = vmatpush1.bf16.msra.mxu0 %v206
      %1308 = vmatprep.subr.bf16.mxu0 0
      %1309 = vmatpush1.bf16.msra.mxu0 %v207
      %1310 = vmatprep.subr.bf16.mxu0 0
      %1311 = vmatpush1.bf16.msra.mxu0 %v208
      %1312 = vmatprep.subr.bf16.mxu0 0
      %1313 = vmatpush1.bf16.msra.mxu0 %v209
      %1314 = vmatprep.subr.bf16.mxu0 0
      %1315 = vmatpush1.bf16.msra.mxu0 0
      %1316 = vmatprep.subr.bf16.mxu0 0
      %1317 = vmatpush1.bf16.msra.mxu0 0
      %1318 = vmatprep.subr.bf16.mxu0 0
      %1319 = vmatpush1.bf16.msra.mxu0 0
      %1320 = vmatprep.subr.bf16.mxu0 0
      %1321 = vmatpush1.bf16.msra.mxu0 0
      %1322 = vmatprep.subr.bf16.mxu0 0
      %1323 = vmatpush1.bf16.msra.mxu0 0
      %1324 = vmatprep.subr.bf16.mxu0 0
      %1325 = vmatpush1.bf16.msra.mxu0 0
      %1326 = vmatprep.subr.bf16.mxu0 0
      %1327 = vmatpush1.bf16.msra.mxu0 0
      %1328 = vmatprep.subr.bf16.mxu0 0
      %1329 = vmatpush1.bf16.msra.mxu0 0
      %1330 = vmatprep.subr.bf16.mxu0 0
      %1331 = vmatpush1.bf16.msra.mxu0 0
      %1332 = vmatprep.subr.bf16.mxu0 0
      %1333 = vmatpush1.bf16.msra.mxu0 0
      %1334 = vmatprep.subr.bf16.mxu0 0
      %1335 = vmatpush1.bf16.msra.mxu0 0
      %1336 = vmatprep.subr.bf16.mxu0 0
      %1337 = vmatpush1.bf16.msra.mxu0 0
      %1338 = vmatprep.mubr.bf16.mxu0 0
      %1339 = vmatmul.mubr.bf16.gmra.mrb[0].mxu0 %v1304
      %v1340 = vpop.f32.mrb[0].mxu0
      %v1341 = vadd.f32 %v228, %v1340
      %v1342 = vpop.f32.mrb[0].mxu0
      %v1343 = vpop.f32.mrb[0].mxu0
      %v1344 = vpop.f32.mrb[0].mxu0
      %1345 = vdwg.mxu0
      %1346 = vmax.xlane.f32.xlu0 %v1341
      %v1347 = vpop.xlane.xlu0 %1346
      %vm1348 = vcmp.eq.f32.partialorder %v1341, %v1347
      %v1349 = vsel %vm1348, %v779, 128
      %v1350 = vand.u32 %v1349, 65535
      %v1351 = vshra.s32 %v1349, 16
      %v1352 = vcvt.s32.f32 %v1350
      %v1353 = vcvt.s32.f32 %v1351
      %1354 = vmin.xlane.f32.xlu0 %v1353
      %v1355 = vpop.xlane.xlu0 %1354
      %vm1356 = vcmp.eq.f32.partialorder %v1353, %v1355
      %v1357 = vsel %vm1356, %v1352, inf
      %1358 = vmin.xlane.f32.xlu0 %v1357
      %v1359 = vpop.xlane.xlu0 %1358
      %v1360 = vcvt.f32.s32 %v1359
      %v1361 = vcvt.f32.s32 %v1355
      %v1362 = vshll.u32 %v1361, 16
      %v1363 = vadd.s32 %v1362, %v1360
      %vm1364 = vcmp.eq.s32.totalorder %v779, %v1363
      %vm1365 = vcmp.ne.s32.totalorder %v779, 0
      %vm1366 = vmand %vm1364, %vm1365
      %v1367 = vsel %vm1366, 1.0, 0.0
    $region101: #{tpu_custom_call.1} parent=1 // pred_fallthru
      %v1368 = vphi %v1295, %v1367
    %s1369 = scalar_lea.vmem %s3, 16
    %v1370 = vld [vmem:[%s1369] sm:$0xff]
    %s1371 = scalar_select %p1282, 1, 0
    %v1372 = vstv %s1371
    %vm1373 = vcmp.eq.s32.totalorder %v1372, 1
    %v1374 = vsel %vm1373, %v1370, %v1273
    %1375 = vrot.lane.b32.xlu0 %v1258, 65
    %v1376 = vpop.permute.xlu0 %1375
    %v1378 = vsel %vm799, %v1374, %v1376
    %v1379 = vpack.c.bf16 %v1368, %v1368
    %v1380 = vpack.c.bf16 %v1378, %v1378
    %v1382 = vsel %vm803, %v1380, 0
    %1384 = vmatprep.subr.bf16.mxu0 %v173
    %1385 = vmatpush1.bf16.msra.mxu0 %v172
    %1386 = vmatprep.subr.bf16.mxu0 %v175
    %1387 = vmatpush1.bf16.msra.mxu0 %v174
    %1388 = vmatprep.subr.bf16.mxu0 %v177
    %1389 = vmatpush1.bf16.msra.mxu0 %v176
    %1390 = vmatprep.subr.bf16.mxu0 %v179
    %1391 = vmatpush1.bf16.msra.mxu0 %v178
    %1392 = vmatprep.subr.bf16.mxu0 %v181
    %1393 = vmatpush1.bf16.msra.mxu0 %v180
    %1394 = vmatprep.subr.bf16.mxu0 %v183
    %1395 = vmatpush1.bf16.msra.mxu0 %v182
    %1396 = vmatprep.subr.bf16.mxu0 %v185
    %1397 = vmatpush1.bf16.msra.mxu0 %v184
    %1398 = vmatprep.subr.bf16.mxu0 %v187
    %1399 = vmatpush1.bf16.msra.mxu0 %v186
    %1400 = vmatprep.subr.bf16.mxu0 %v189
    %1401 = vmatpush1.bf16.msra.mxu0 %v188
    %1402 = vmatprep.subr.bf16.mxu0 %v191
    %1403 = vmatpush1.bf16.msra.mxu0 %v190
    %1404 = vmatprep.subr.bf16.mxu0 %v193
    %1405 = vmatpush1.bf16.msra.mxu0 %v192
    %1406 = vmatprep.subr.bf16.mxu0 %v195
    %1407 = vmatpush1.bf16.msra.mxu0 %v194
    %1408 = vmatprep.subr.bf16.mxu0 %v813
    %1409 = vmatpush1.bf16.msra.mxu0 %v810
    %1410 = vmatprep.subr.bf16.mxu0 0
    %1411 = vmatpush1.bf16.msra.mxu0 0
    %1412 = vmatprep.subr.bf16.mxu0 0
    %1413 = vmatpush1.bf16.msra.mxu0 0
    %1414 = vmatprep.subr.bf16.mxu0 0
    %1415 = vmatpush1.bf16.msra.mxu0 0
    %1416 = vmatprep.mubr.bf16.mxu0 %v1382
    %1417 = vmatmul.mubr.bf16.gmra.mrb[0].mxu0 %v1379
    %v1418 = vpop.f32.mrb[0].mxu0
    %v1419 = vadd.f32 %v216, %v1418
    %v1420 = vpop.f32.mrb[0].mxu0
    %v1421 = vadd.f32 %v220, %v1420
    %v1422 = vpop.f32.mrb[0].mxu0
    %v1423 = vpop.f32.mrb[0].mxu0
    %1424 = vdwg.mxu0
    %v1425 = vxor.u32 %v1419, 2147483648
    %v1426 = vmul.f32 %v1425, 1.442695
    %v1427 = vpow.pop %v1426
    %v1428 = vadd.f32 %v1427, 1.0
    %v1429 = vrcp.pop %v1428
    %v1430 = vmul.f32 1.0, %v1429
    %v1431 = vtanh.pop %v1421
    %v1432 = vxor.u32 %v1421, 2147483648
    %v1433 = vmul.f32 %v1432, 1.442695
    %v1434 = vpow.pop %v1433
    %v1435 = vadd.f32 %v1434, 1.0
    %v1436 = vrcp.pop %v1435
    %v1437 = vmul.f32 1.0, %v1436
    %v1438 = vmul.f32 %v1430, %v1256
    %v1439 = vmul.f32 %v1430, %v1431
    %1441 = vrot.lane.b32.xlu0 %v1439, 64
    %v1442 = vpop.permute.xlu0 %1441
    %v1444 = vadd.f32 %v1438, %v1442
    %v1445 = vtanh.pop %v1444
    %v1446 = vmul.f32 %v1437, %v1445
    %1448 = vrot.lane.b32.xlu0 %v1446, 64
    %v1449 = vpop.permute.xlu0 %1448
    %s1451 = scalar_lea.vmem [#allocation3], 24
    %1452 = vst.msk [vmem:[%s1451] sm:$0xff] %vm886, %v1449
    %v1453 = vmul.f32 %v1446, %v889
    %1455 = vrot.lane.b32.xlu0 %v1453, 64
    %v1456 = vpop.permute.xlu0 %1455
    %v1458 = vsel %vm886, %v1456, 0.0
    %1459 = vadd.xlane.f32.xlu0 %v1458
    %v1460 = vpop.xlane.xlu0 %1459
    %v1461 = vadd.f32 %v1460, %v241
    %vm1462 = vcmp.eq.s32.totalorder %v779, 3
    %1464 = vset.pattern.permute.xlu0 0
    %1465 = vperm.xlu0 %1464, %v1461
    %v1466 = vpop.permute.xlu0 %1465
    %v1468 = vsel %vm1462, %v1466, %v1280
    %s1469 = sld [smem:[#allocation5 + $0x3]]
    %p1470 = scmp.eq.s32.totalorder %s1469, 1
    // Predicated region
    $region102: #{tpu_custom_call.1} parent=1 // pred_check
      %p1471 = pneg %p1470
    $region103: #{tpu_custom_call.1} parent=1 // pred_check_branch
      %1473 = sbr.rel (%p1471) target = $region105
    $region104: #{tpu_custom_call.1} parent=1 // pred_region
      %s1474 = scalar_lea.vmem %s2, 24
      %v1475 = vld [vmem:[%s1474] sm:$0xff]
      %1476 = vset.pattern.permute.xlu0 0
      %1477 = vperm.xlu0 %1476, %v1475
      %v1478 = vpop.permute.xlu0 %1477
      %vm1479 = vcmp.eq.s32.totalorder %v779, %v1478
      %vm1480 = vcmp.ne.s32.totalorder %v779, 0
      %vm1481 = vmand %vm1479, %vm1480
      %v1482 = vsel %vm1481, 1.0, 0.0
    $region105: #{tpu_custom_call.1} parent=1 // pred_fallthru
      %v1483 = vphi 0, %v1482
    %p1484 = pneg %p1470
    // Predicated region
    $region106: #{tpu_custom_call.1} parent=1 // pred_check
      _
    $region107: #{tpu_custom_call.1} parent=1 // pred_check_branch
      %1486 = sbr.rel (%p1470) target = $region109
    $region108: #{tpu_custom_call.1} parent=1 // pred_region
      %v1487 = vpack.c.bf16 %v1446, %v1446
      %1489 = vrot.lane.b32.xlu0 %v1487, 64
      %v1490 = vpop.permute.xlu0 %1489
      %v1492 = vsel %vm886, %v1490, 0
      %1494 = vmatprep.subr.bf16.mxu0 0
      %1495 = vmatpush1.bf16.msra.mxu0 %v206
      %1496 = vmatprep.subr.bf16.mxu0 0
      %1497 = vmatpush1.bf16.msra.mxu0 %v207
      %1498 = vmatprep.subr.bf16.mxu0 0
      %1499 = vmatpush1.bf16.msra.mxu0 %v208
      %1500 = vmatprep.subr.bf16.mxu0 0
      %1501 = vmatpush1.bf16.msra.mxu0 %v209
      %1502 = vmatprep.subr.bf16.mxu0 0
      %1503 = vmatpush1.bf16.msra.mxu0 0
      %1504 = vmatprep.subr.bf16.mxu0 0
      %1505 = vmatpush1.bf16.msra.mxu0 0
      %1506 = vmatprep.subr.bf16.mxu0 0
      %1507 = vmatpush1.bf16.msra.mxu0 0
      %1508 = vmatprep.subr.bf16.mxu0 0
      %1509 = vmatpush1.bf16.msra.mxu0 0
      %1510 = vmatprep.subr.bf16.mxu0 0
      %1511 = vmatpush1.bf16.msra.mxu0 0
      %1512 = vmatprep.subr.bf16.mxu0 0
      %1513 = vmatpush1.bf16.msra.mxu0 0
      %1514 = vmatprep.subr.bf16.mxu0 0
      %1515 = vmatpush1.bf16.msra.mxu0 0
      %1516 = vmatprep.subr.bf16.mxu0 0
      %1517 = vmatpush1.bf16.msra.mxu0 0
      %1518 = vmatprep.subr.bf16.mxu0 0
      %1519 = vmatpush1.bf16.msra.mxu0 0
      %1520 = vmatprep.subr.bf16.mxu0 0
      %1521 = vmatpush1.bf16.msra.mxu0 0
      %1522 = vmatprep.subr.bf16.mxu0 0
      %1523 = vmatpush1.bf16.msra.mxu0 0
      %1524 = vmatprep.subr.bf16.mxu0 0
      %1525 = vmatpush1.bf16.msra.mxu0 0
      %1526 = vmatprep.mubr.bf16.mxu0 0
      %1527 = vmatmul.mubr.bf16.gmra.mrb[0].mxu0 %v1492
      %v1528 = vpop.f32.mrb[0].mxu0
      %v1529 = vadd.f32 %v228, %v1528
      %v1530 = vpop.f32.mrb[0].mxu0
      %v1531 = vpop.f32.mrb[0].mxu0
      %v1532 = vpop.f32.mrb[0].mxu0
      %1533 = vdwg.mxu0
      %1534 = vmax.xlane.f32.xlu0 %v1529
      %v1535 = vpop.xlane.xlu0 %1534
      %vm1536 = vcmp.eq.f32.partialorder %v1529, %v1535
      %v1537 = vsel %vm1536, %v779, 128
      %v1538 = vand.u32 %v1537, 65535
      %v1539 = vshra.s32 %v1537, 16
      %v1540 = vcvt.s32.f32 %v1538
      %v1541 = vcvt.s32.f32 %v1539
      %1542 = vmin.xlane.f32.xlu0 %v1541
      %v1543 = vpop.xlane.xlu0 %1542
      %vm1544 = vcmp.eq.f32.partialorder %v1541, %v1543
      %v1545 = vsel %vm1544, %v1540, inf
      %1546 = vmin.xlane.f32.xlu0 %v1545
      %v1547 = vpop.xlane.xlu0 %1546
      %v1548 = vcvt.f32.s32 %v1547
      %v1549 = vcvt.f32.s32 %v1543
      %v1550 = vshll.u32 %v1549, 16
      %v1551 = vadd.s32 %v1550, %v1548
      %vm1552 = vcmp.eq.s32.totalorder %v779, %v1551
      %vm1553 = vcmp.ne.s32.totalorder %v779, 0
      %vm1554 = vmand %vm1552, %vm1553
      %v1555 = vsel %vm1554, 1.0, 0.0
    $region109: #{tpu_custom_call.1} parent=1 // pred_fallthru
      %v1556 = vphi %v1483, %v1555
    %s1557 = scalar_lea.vmem %s3, 24
    %v1558 = vld [vmem:[%s1557] sm:$0xff]
    %s1559 = scalar_select %p1470, 1, 0
    %v1560 = vstv %s1559
    %vm1561 = vcmp.eq.s32.totalorder %v1560, 1
    %v1562 = vsel %vm1561, %v1558, %v1461
    %1563 = vrot.lane.b32.xlu0 %v1446, 65
    %v1564 = vpop.permute.xlu0 %1563
    %v1566 = vsel %vm799, %v1562, %v1564
    %v1567 = vpack.c.bf16 %v1556, %v1556
    %v1568 = vpack.c.bf16 %v1566, %v1566
    %v1570 = vsel %vm803, %v1568, 0
    %1572 = vmatprep.subr.bf16.mxu0 %v173
    %1573 = vmatpush1.bf16.msra.mxu0 %v172
    %1574 = vmatprep.subr.bf16.mxu0 %v175
    %1575 = vmatpush1.bf16.msra.mxu0 %v174
    %1576 = vmatprep.subr.bf16.mxu0 %v177
    %1577 = vmatpush1.bf16.msra.mxu0 %v176
    %1578 = vmatprep.subr.bf16.mxu0 %v179
    %1579 = vmatpush1.bf16.msra.mxu0 %v178
    %1580 = vmatprep.subr.bf16.mxu0 %v181
    %1581 = vmatpush1.bf16.msra.mxu0 %v180
    %1582 = vmatprep.subr.bf16.mxu0 %v183
    %1583 = vmatpush1.bf16.msra.mxu0 %v182
    %1584 = vmatprep.subr.bf16.mxu0 %v185
    %1585 = vmatpush1.bf16.msra.mxu0 %v184
    %1586 = vmatprep.subr.bf16.mxu0 %v187
    %1587 = vmatpush1.bf16.msra.mxu0 %v186
    %1588 = vmatprep.subr.bf16.mxu0 %v189
    %1589 = vmatpush1.bf16.msra.mxu0 %v188
    %1590 = vmatprep.subr.bf16.mxu0 %v191
    %1591 = vmatpush1.bf16.msra.mxu0 %v190
    %1592 = vmatprep.subr.bf16.mxu0 %v193
    %1593 = vmatpush1.bf16.msra.mxu0 %v192
    %1594 = vmatprep.subr.bf16.mxu0 %v195
    %1595 = vmatpush1.bf16.msra.mxu0 %v194
    %1596 = vmatprep.subr.bf16.mxu0 %v813
    %1597 = vmatpush1.bf16.msra.mxu0 %v810
    %1598 = vmatprep.subr.bf16.mxu0 0
    %1599 = vmatpush1.bf16.msra.mxu0 0
    %1600 = vmatprep.subr.bf16.mxu0 0
    %1601 = vmatpush1.bf16.msra.mxu0 0
    %1602 = vmatprep.subr.bf16.mxu0 0
    %1603 = vmatpush1.bf16.msra.mxu0 0
    %1604 = vmatprep.mubr.bf16.mxu0 %v1570
    %1605 = vmatmul.mubr.bf16.gmra.mrb[0].mxu0 %v1567
    %v1606 = vpop.f32.mrb[0].mxu0
    %v1607 = vadd.f32 %v216, %v1606
    %v1608 = vpop.f32.mrb[0].mxu0
    %v1609 = vadd.f32 %v220, %v1608
    %v1610 = vpop.f32.mrb[0].mxu0
    %v1611 = vpop.f32.mrb[0].mxu0
    %1612 = vdwg.mxu0
    %v1613 = vxor.u32 %v1607, 2147483648
    %v1614 = vmul.f32 %v1613, 1.442695
    %v1615 = vpow.pop %v1614
    %v1616 = vadd.f32 %v1615, 1.0
    %v1617 = vrcp.pop %v1616
    %v1618 = vmul.f32 1.0, %v1617
    %v1619 = vtanh.pop %v1609
    %v1620 = vxor.u32 %v1609, 2147483648
    %v1621 = vmul.f32 %v1620, 1.442695
    %v1622 = vpow.pop %v1621
    %v1623 = vadd.f32 %v1622, 1.0
    %v1624 = vrcp.pop %v1623
    %v1625 = vmul.f32 1.0, %v1624
    %v1626 = vmul.f32 %v1618, %v1444
    %v1627 = vmul.f32 %v1618, %v1619
    %1629 = vrot.lane.b32.xlu0 %v1627, 64
    %v1630 = vpop.permute.xlu0 %1629
    %v1632 = vadd.f32 %v1626, %v1630
    %v1633 = vtanh.pop %v1632
    %v1634 = vmul.f32 %v1625, %v1633
    %1636 = vrot.lane.b32.xlu0 %v1634, 64
    %v1637 = vpop.permute.xlu0 %1636
    %s1639 = scalar_lea.vmem [#allocation3], 32
    %1640 = vst.msk [vmem:[%s1639] sm:$0xff] %vm886, %v1637
    %v1641 = vmul.f32 %v1634, %v889
    %1643 = vrot.lane.b32.xlu0 %v1641, 64
    %v1644 = vpop.permute.xlu0 %1643
    %v1646 = vsel %vm886, %v1644, 0.0
    %1647 = vadd.xlane.f32.xlu0 %v1646
    %v1648 = vpop.xlane.xlu0 %1647
    %v1649 = vadd.f32 %v1648, %v241
    %vm1650 = vcmp.eq.s32.totalorder %v779, 4
    %1652 = vset.pattern.permute.xlu0 0
    %1653 = vperm.xlu0 %1652, %v1649
    %v1654 = vpop.permute.xlu0 %1653
    %v1656 = vsel %vm1650, %v1654, %v1468
    %1657 = vst [vmem:[#allocation14] sm:$0xff] %v1656
    %v1658 = vld [vmem:[#allocation3] sm:$0xff]
    %v1659 = vld [vmem:[#allocation3 + $0x8] sm:$0xff]
    %v1660 = vld [vmem:[#allocation3 + $0x10] sm:$0xff]
    %v1661 = vld [vmem:[#allocation3 + $0x18] sm:$0xff]
    %v1662 = vld [vmem:[#allocation3 + $0x20] sm:$0xff]
    %v1663 = vpack.c.bf16 %v1659, %v1658
    %v1664 = vpack.c.bf16 %v1661, %v1660
    %v1665 = vpack.c.bf16 %v1662, %v1662
    %v1666 = vld [vmem:[%s12] sm:$0x1]
    %v1668 = vlaneseq
    %v1669 = vshrl.u32 %v1668, 7
    %v1670 = vsub.s32 0, %v1669
    %v1671 = vrot.slane %v1666, %v1670
    %v1674 = vsel %vm886, %v1663, 0
    %v1677 = vsel %vm886, %v1664, 0
    %v1680 = vsel %vm886, %v1665, 0
    %1682 = vmatprep.subr.bf16.mxu0 0
    %1683 = vmatpush1.bf16.msra.mxu0 %v206
    %1684 = vmatprep.subr.bf16.mxu0 0
    %1685 = vmatpush1.bf16.msra.mxu0 %v207
    %1686 = vmatprep.subr.bf16.mxu0 0
    %1687 = vmatpush1.bf16.msra.mxu0 %v208
    %1688 = vmatprep.subr.bf16.mxu0 0
    %1689 = vmatpush1.bf16.msra.mxu0 %v209
    %1690 = vmatprep.subr.bf16.mxu0 0
    %1691 = vmatpush1.bf16.msra.mxu0 0
    %1692 = vmatprep.subr.bf16.mxu0 0
    %1693 = vmatpush1.bf16.msra.mxu0 0
    %1694 = vmatprep.subr.bf16.mxu0 0
    %1695 = vmatpush1.bf16.msra.mxu0 0
    %1696 = vmatprep.subr.bf16.mxu0 0
    %1697 = vmatpush1.bf16.msra.mxu0 0
    %1698 = vmatprep.subr.bf16.mxu0 0
    %1699 = vmatpush1.bf16.msra.mxu0 0
    %1700 = vmatprep.subr.bf16.mxu0 0
    %1701 = vmatpush1.bf16.msra.mxu0 0
    %1702 = vmatprep.subr.bf16.mxu0 0
    %1703 = vmatpush1.bf16.msra.mxu0 0
    %1704 = vmatprep.subr.bf16.mxu0 0
    %1705 = vmatpush1.bf16.msra.mxu0 0
    %1706 = vmatprep.subr.bf16.mxu0 0
    %1707 = vmatpush1.bf16.msra.mxu0 0
    %1708 = vmatprep.subr.bf16.mxu0 0
    %1709 = vmatpush1.bf16.msra.mxu0 0
    %1710 = vmatprep.subr.bf16.mxu0 0
    %1711 = vmatpush1.bf16.msra.mxu0 0
    %1712 = vmatprep.subr.bf16.mxu0 0
    %1713 = vmatpush1.bf16.msra.mxu0 0
    %1714 = vmatprep.mubr.bf16.mxu0 0
    %1715 = vmatmul.mubr.bf16.gmra.mrb[0].mxu0 %v1674
    %v1716 = vpop.f32.mrb[0].mxu0
    %v1717 = vadd.f32 %v1671, %v1716
    %v1718 = vpop.f32.mrb[0].mxu0
    %v1719 = vpop.f32.mrb[0].mxu0
    %v1720 = vadd.f32 %v1671, %v1719
    %v1721 = vpop.f32.mrb[0].mxu0
    %1722 = vmatprep.mubr.bf16.mxu0 0
    %1723 = vmatmul.mubr.bf16.gmra.mrb[0].mxu0 %v1677
    %v1724 = vpop.f32.mrb[0].mxu0
    %v1725 = vadd.f32 %v1671, %v1724
    %v1726 = vpop.f32.mrb[0].mxu0
    %v1727 = vpop.f32.mrb[0].mxu0
    %v1728 = vadd.f32 %v1671, %v1727
    %v1729 = vpop.f32.mrb[0].mxu0
    %1730 = vmatprep.mubr.bf16.mxu0 0
    %1731 = vmatmul.mubr.bf16.gmra.mrb[0].mxu0 %v1680
    %v1732 = vpop.f32.mrb[0].mxu0
    %v1733 = vadd.f32 %v1671, %v1732
    %v1734 = vpop.f32.mrb[0].mxu0
    %v1735 = vpop.f32.mrb[0].mxu0
    %v1736 = vpop.f32.mrb[0].mxu0
    %1737 = vdwg.mxu0
    %1738 = vst [vmem:[#allocation13] sm:$0xff] %v1717
    %1739 = vst [vmem:[#allocation13 + $0x8] sm:$0xff] %v1720
    %1740 = vst [vmem:[#allocation13 + $0x10] sm:$0xff] %v1725
    %1741 = vst [vmem:[#allocation13 + $0x18] sm:$0xff] %v1728
    %1742 = vst [vmem:[#allocation13 + $0x20] sm:$0xff] %v1733
    // Predicated region
    $region110: #{tpu_custom_call.1} parent=1 // pred_check
      _
    $region111: #{tpu_custom_call.1} parent=1 // pred_check_branch
      %1744 = sbr.rel (0) target = $region113
    $region112: #{tpu_custom_call.1} parent=1 // pred_region
      %s1746 = ssub.s32 640, 640
      %1747 = vsyncadd [#allocation7], %s1746
      %s1748 = sshll.u32 [#allocation13], 4
      %s1749 = int_to_ptr.vmem [resolvable:$true] %s1748
      %1754 = dma.vmem_to_hbm [thread:$0]  %s1749, 640, %s15, [#allocation7], 128, 128, 8
    $region113: #{tpu_custom_call.1} parent=1 // pred_fallthru
      _
    // Predicated region
    $region114: #{tpu_custom_call.1} parent=1 // pred_check
      _
    $region115: #{tpu_custom_call.1} parent=1 // pred_check_branch
      %1756 = sbr.rel (0) target = $region117
    $region116: #{tpu_custom_call.1} parent=1 // pred_region
      %s1758 = ssub.s32 128, 128
      %1759 = vsyncadd [#allocation15], %s1758
      %s1761 = sshll.u32 [#allocation14], 4
      %s1762 = int_to_ptr.vmem [resolvable:$true] %s1761
      %1764 = dma.vmem_to_hbm [thread:$0]  %s1762, 128, %s16, [#allocation15]
    $region117: #{tpu_custom_call.1} parent=1 // pred_fallthru
      _
    // Predicated region
    $region118: #{tpu_custom_call.1} parent=1 // pred_check
      _
    $region119: #{tpu_custom_call.1} parent=1 // pred_check_branch
      %1766 = sbr.rel (0) target = $region121
    $region120: #{tpu_custom_call.1} parent=1 // pred_region
      %1767 = dma.done [#allocation7], 640
    $region121: #{tpu_custom_call.1} parent=1 // pred_fallthru
      _
    // Predicated region
    $region122: #{tpu_custom_call.1} parent=1 // pred_check
      _
    $region123: #{tpu_custom_call.1} parent=1 // pred_check_branch
      %1769 = sbr.rel (0) target = $region125
    $region124: #{tpu_custom_call.1} parent=1 // pred_region
      %1770 = dma.done [#allocation15], 128
    $region125: #{tpu_custom_call.1} parent=1 // pred_fallthru
      _
    %1771 = vsyncpa [#allocation6], 1
    %1772 = vsyncpa [#allocation11], 1
    %1773 = vsyncpa [#allocation7], 1
    %1774 = vsyncpa [#allocation15], 1
    %1775 = vsyncpa [#allocation8], 1

</llo_original>
